<compile_context>
chip_gen: v5e
topology: v5e:2x2
jax: 0.10.0
libtpu: 0.0.40
codegen_flags: <defaults>
</compile_context>

<pallas_src>
import functools
import math

import jax
import jax.numpy as jnp
from jax.experimental import pallas as pl
from jax.experimental.pallas import tpu as pltpu


# ----------------------------------------------------------------------------
# tile selection helper (full extent at demo sizes; aligned tiles at real sizes)
# ----------------------------------------------------------------------------
def _pick_tile(dim, target, align):
    """Largest tile <= target that is a multiple of `align` and divides dim; else full dim."""
    if dim <= target:
        return dim
    t = (target // align) * align
    while t >= align:
        if dim % t == 0:
            return t
        t -= align
    return dim


# ----------------------------------------------------------------------------
# Pallas kernels
# ----------------------------------------------------------------------------
def _linear_split_kernel(x_ref, w_ref, b_ref, *out_refs):
    """y = x @ W + b, with the N axis split across several outputs (fused QKV / KV)."""
    x = x_ref[...].astype(jnp.bfloat16)
    y = jnp.dot(x, w_ref[...], preferred_element_type=jnp.float32) + b_ref[...]
    off = 0
    for o_ref in out_refs:
        n = o_ref.shape[-1]
        o_ref[...] = y[:, off:off + n]
        off += n


def _linear_res_ln_kernel(x_ref, w_ref, b_ref, res_ref, g_ref, beta_ref, o_ref, *, eps):
    """LayerNorm(residual + (x @ W + b)) fused epilogue (attention output projection)."""
    x = x_ref[...].astype(jnp.bfloat16)
    y = jnp.dot(x, w_ref[...], preferred_element_type=jnp.float32) + b_ref[...]
    z = y + res_ref[...]
    mean = jnp.mean(z, axis=-1, keepdims=True)
    var = jnp.mean(jnp.square(z - mean), axis=-1, keepdims=True)
    o_ref[...] = (z - mean) * jax.lax.rsqrt(var + eps) * g_ref[...] + beta_ref[...]


def _ffn_res_ln_kernel(x_ref, w1_ref, b1_ref, w2_ref, b2_ref, g_ref, beta_ref, o_ref, *, eps):
    """LayerNorm(x + W2 @ relu(W1 @ x + b1) + b2); [tm, F] intermediate stays in VMEM."""
    x_f32 = x_ref[...]
    x = x_f32.astype(jnp.bfloat16)
    h = jnp.dot(x, w1_ref[...], preferred_element_type=jnp.float32) + b1_ref[...]
    h = jnp.maximum(h, 0.0)
    y = jnp.dot(h.astype(jnp.bfloat16), w2_ref[...],
                preferred_element_type=jnp.float32) + b2_ref[...]
    z = y + x_f32
    mean = jnp.mean(z, axis=-1, keepdims=True)
    var = jnp.mean(jnp.square(z - mean), axis=-1, keepdims=True)
    o_ref[...] = (z - mean) * jax.lax.rsqrt(var + eps) * g_ref[...] + beta_ref[...]


def _tiled_matmul_kernel(x_ref, w_ref, b_ref, o_ref, acc_ref):
    """(M,N,K)-tiled matmul with f32 VMEM accumulator; bias added at finalize."""
    @pl.when(pl.program_id(2) == 0)
    def _():
        acc_ref[...] = jnp.zeros_like(acc_ref)

    acc_ref[...] += jnp.dot(x_ref[...].astype(jnp.bfloat16), w_ref[...],
                            preferred_element_type=jnp.float32)

    @pl.when(pl.program_id(2) == pl.num_programs(2) - 1)
    def _():
        o_ref[...] = acc_ref[...] + b_ref[...]


def _attention_kernel(q_ref, kv_ref, m_ref, o_ref, *, num_heads, causal, scale):
    """Multi-head attention for one batch element.

    q_ref : (Sq, D)   kv_ref : (Sk, 2D) = [K | V]   m_ref : (1, Sk) key-padding mask.
    Mask (padding + optional causal) is generated in-register; heads are processed
    with 2-D lane slices so no head transpose ever exists in HBM; output is lane-dense (Sq, D).
    """
    Sq, D = q_ref.shape
    Sk = kv_ref.shape[0]
    Dh = D // num_heads

    q = q_ref[...].astype(jnp.bfloat16)
    kv = kv_ref[...].astype(jnp.bfloat16)

    allowed = jnp.broadcast_to(m_ref[...] > 0.5, (Sq, Sk))
    if causal:
        row = jax.lax.broadcasted_iota(jnp.int32, (Sq, Sk), 0)
        col = jax.lax.broadcasted_iota(jnp.int32, (Sq, Sk), 1)
        allowed = jnp.logical_and(allowed, row >= col)

    # TODO(synk): for long sequences convert this to a flash-style KV-tiled online softmax
    # (grid axis over Sk blocks with m/l/acc scratch) to fit v7x's 64 MiB VMEM.
    ctx_heads = []
    for h in range(num_heads):
        qh = q[:, h * Dh:(h + 1) * Dh]                    # (Sq, Dh)
        kh = kv[:, h * Dh:(h + 1) * Dh]                   # (Sk, Dh)
        vh = kv[:, D + h * Dh:D + (h + 1) * Dh]           # (Sk, Dh)
        # q @ k^T expressed via dot_general contraction (no materialized transpose).
        s = jax.lax.dot_general(qh, kh, (((1,), (1,)), ((), ())),
                                preferred_element_type=jnp.float32) * scale
        s = jnp.where(allowed, s, -1e9)
        s = s - jnp.max(s, axis=-1, keepdims=True)
        p = jnp.exp(s)
        p = p * pl.reciprocal(jnp.sum(p, axis=-1, keepdims=True), approx=True)
        ctx_heads.append(jnp.dot(p.astype(jnp.bfloat16), vh,
                                 preferred_element_type=jnp.float32))
    o_ref[...] = jnp.concatenate(ctx_heads, axis=-1)       # (Sq, D), lane-dense


# ----------------------------------------------------------------------------
# Pallas wrappers
# ----------------------------------------------------------------------------
_PARAMS_1D = pltpu.CompilerParams(dimension_semantics=("parallel",))


def linear_multi(x, w, b, out_widths):
    """x:[M,K] @ w:[K,sum(widths)] + b, split along N into len(widths) outputs."""
    M, K = x.shape
    n_tot = w.shape[1]
    tm = _pick_tile(M, 256, 8)
    out_shape = tuple(jax.ShapeDtypeStruct((M, n), jnp.float32) for n in out_widths)
    out_specs = tuple(pl.BlockSpec((tm, n), lambda i: (i, 0)) for n in out_widths)
    res = pl.pallas_call(
        _linear_split_kernel,
        out_shape=out_shape,
        grid=(M // tm,),
        in_specs=[pl.BlockSpec((tm, K), lambda i: (i, 0)),
                  pl.BlockSpec((K, n_tot), lambda i: (0, 0)),
                  pl.BlockSpec((1, n_tot), lambda i: (0, 0))],
        out_specs=out_specs,
        compiler_params=_PARAMS_1D,
    )(x, w, b)
    if not isinstance(res, (tuple, list)):
        res = (res,)
    return tuple(res)


def linear_res_ln(x, w, b, residual, g, beta, eps=1e-5):
    """LayerNorm(residual + x @ w + b), fused, tiled over rows."""
    M, K = x.shape
    N = w.shape[1]
    tm = _pick_tile(M, 256, 8)
    return pl.pallas_call(
        functools.partial(_linear_res_ln_kernel, eps=eps),
        out_shape=jax.ShapeDtypeStruct((M, N), jnp.float32),
        grid=(M // tm,),
        in_specs=[pl.BlockSpec((tm, K), lambda i: (i, 0)),
                  pl.BlockSpec((K, N), lambda i: (0, 0)),
                  pl.BlockSpec((1, N), lambda i: (0, 0)),
                  pl.BlockSpec((tm, N), lambda i: (i, 0)),
                  pl.BlockSpec((1, N), lambda i: (0, 0)),
                  pl.BlockSpec((1, N), lambda i: (0, 0))],
        out_specs=pl.BlockSpec((tm, N), lambda i: (i, 0)),
        compiler_params=_PARAMS_1D,
    )(x, w, b, residual, g, beta)


def ffn_res_ln(x, w1, b1, w2, b2, g, beta, eps=1e-5):
    """LayerNorm(x + FFN(x)), fully fused, tiled over rows."""
    M, D = x.shape
    F = w1.shape[1]
    tm = _pick_tile(M, 256, 8)
    return pl.pallas_call(
        functools.partial(_ffn_res_ln_kernel, eps=eps),
        out_shape=jax.ShapeDtypeStruct((M, D), jnp.float32),
        grid=(M // tm,),
        in_specs=[pl.BlockSpec((tm, D), lambda i: (i, 0)),
                  pl.BlockSpec((D, F), lambda i: (0, 0)),
                  pl.BlockSpec((1, F), lambda i: (0, 0)),
                  pl.BlockSpec((F, D), lambda i: (0, 0)),
                  pl.BlockSpec((1, D), lambda i: (0, 0)),
                  pl.BlockSpec((1, D), lambda i: (0, 0)),
                  pl.BlockSpec((1, D), lambda i: (0, 0))],
        out_specs=pl.BlockSpec((tm, D), lambda i: (i, 0)),
        compiler_params=_PARAMS_1D,
    )(x, w1, b1, w2, b2, g, beta)


def tiled_linear(x, w, b):
    """Fully tiled (M,N,K) matmul + bias with a VMEM accumulator (LM head)."""
    M, K = x.shape
    N = w.shape[1]
    tm = _pick_tile(M, 256, 8)
    tn = _pick_tile(N, 256, 128)
    tk = _pick_tile(K, 512, 128)
    return pl.pallas_call(
        _tiled_matmul_kernel,
        out_shape=jax.ShapeDtypeStruct((M, N), jnp.float32),
        grid=(M // tm, N // tn, K // tk),
        in_specs=[pl.BlockSpec((tm, tk), lambda i, j, k: (i, k)),
                  pl.BlockSpec((tk, tn), lambda i, j, k: (k, j)),
                  pl.BlockSpec((1, tn), lambda i, j, k: (0, j))],
        out_specs=pl.BlockSpec((tm, tn), lambda i, j, k: (i, j)),
        scratch_shapes=[pltpu.VMEM((tm, tn), jnp.float32)],
        compiler_params=pltpu.CompilerParams(
            dimension_semantics=("parallel", "parallel", "arbitrary")),
    )(x, w, b)


def attention_core(q, kv, kvmask, num_heads, causal):
    """q:[B,Sq,D], kv:[B,Sk,2D], kvmask:[B,1,Sk] -> [B,Sq,D]."""
    B, Sq, D = q.shape
    Sk = kv.shape[1]
    Dh = D // num_heads
    scale = 1.0 / math.sqrt(Dh)
    kernel = functools.partial(_attention_kernel, num_heads=num_heads,
                               causal=causal, scale=scale)
    return pl.pallas_call(
        kernel,
        out_shape=jax.ShapeDtypeStruct((B, Sq, D), jnp.float32),
        grid=(B,),
        in_specs=[pl.BlockSpec((pl.Squeezed(), Sq, D), lambda b: (b, 0, 0)),
                  pl.BlockSpec((pl.Squeezed(), Sk, 2 * D), lambda b: (b, 0, 0)),
                  pl.BlockSpec((pl.Squeezed(), 1, Sk), lambda b: (b, 0, 0))],
        out_specs=pl.BlockSpec((pl.Squeezed(), Sq, D), lambda b: (b, 0, 0)),
        compiler_params=_PARAMS_1D,
    )(q, kv, kvmask)


# ----------------------------------------------------------------------------
# Model glue
# ----------------------------------------------------------------------------
@functools.lru_cache(maxsize=None)
def sinusoidal_pe(seq_len, d):
    pos = jnp.arange(seq_len, dtype=jnp.float32)[:, None]
    i = jnp.arange(d, dtype=jnp.float32)[None, :]
    rates = jnp.power(10000.0, -(2.0 * jnp.floor(i / 2.0)) / d)
    angles = pos * rates
    pe = jnp.where((jnp.arange(d) % 2) == 0, jnp.sin(angles), jnp.cos(angles))
    return pe[None, :, :]  # [1, S, D]


def self_attention_block(x, kvmask, causal, p, ln, num_heads):
    B, S, D = x.shape
    x2d = x.reshape(B * S, D)
    q2d, kv2d = linear_multi(x2d, p["w_qkv"], p["b_qkv"], out_widths=(D, 2 * D))
    ctx = attention_core(q2d.reshape(B, S, D), kv2d.reshape(B, S, 2 * D),
                         kvmask, num_heads, causal)
    out = linear_res_ln(ctx.reshape(B * S, D), p["wo"], p["bo"], x2d, ln["g"], ln["b"])
    return out.reshape(B, S, D)


def cross_attention_block(y, enc_out, kvmask, p, ln, num_heads):
    B, Sd, D = y.shape
    Se = enc_out.shape[1]
    y2d = y.reshape(B * Sd, D)
    (q2d,) = linear_multi(y2d, p["wq"], p["bq"], out_widths=(D,))
    (kv2d,) = linear_multi(enc_out.reshape(B * Se, D), p["w_kv"], p["b_kv"],
                           out_widths=(2 * D,))
    ctx = attention_core(q2d.reshape(B, Sd, D), kv2d.reshape(B, Se, 2 * D),
                         kvmask, num_heads, causal=False)
    out = linear_res_ln(ctx.reshape(B * Sd, D), p["wo"], p["bo"], y2d, ln["g"], ln["b"])
    return out.reshape(B, Sd, D)


def transformer_forward(params, enc_ids, enc_mask, dec_ids, dec_mask, num_heads):
    D = params["embed"].shape[1]
    B, Se = enc_ids.shape
    _, Sd = dec_ids.shape

    # Embeddings + sinusoidal positional encoding (plain-JAX glue).
    # TODO(synk): the reference repo may scale embeddings by sqrt(D) inside the PE module; not applied here.
    enc_x = params["embed"][enc_ids] + sinusoidal_pe(Se, D)
    dec_x = params["embed"][dec_ids] + sinusoidal_pe(Sd, D)

    # Only the 1-D key-padding masks are shipped to the kernels ([B,1,S]); the full
    # [B,Sq,Sk] additive masks are built in-register inside the attention kernel.
    enc_kvmask = enc_mask.astype(jnp.float32).reshape(B, 1, Se)
    dec_kvmask = dec_mask.astype(jnp.float32).reshape(B, 1, Sd)

    # -------- encoder (post-LN) --------
    x = enc_x
    for lp in params["enc"]:
        x = self_attention_block(x, enc_kvmask, False, lp["attn"], lp["ln1"], num_heads)
        x = ffn_res_ln(x.reshape(B * Se, D),
                       lp["ffn"]["w1"], lp["ffn"]["b1"], lp["ffn"]["w2"], lp["ffn"]["b2"],
                       lp["ln2"]["g"], lp["ln2"]["b"]).reshape(B, Se, D)
    enc_out = x

    # -------- decoder (post-LN, masked self-attn + cross-attn) --------
    y = dec_x
    for lp in params["dec"]:
        y = self_attention_block(y, dec_kvmask, True, lp["self_attn"], lp["ln1"], num_heads)
        y = cross_attention_block(y, enc_out, enc_kvmask, lp["cross_attn"], lp["ln2"], num_heads)
        y = ffn_res_ln(y.reshape(B * Sd, D),
                       lp["ffn"]["w1"], lp["ffn"]["b1"], lp["ffn"]["w2"], lp["ffn"]["b2"],
                       lp["ln3"]["g"], lp["ln3"]["b"]).reshape(B, Sd, D)

    # -------- LM head (tiled matmul with accumulator; N = vocab can be large) ----
    V = params["lm_w"].shape[1]
    logits = tiled_linear(y.reshape(B * Sd, D), params["lm_w"], params["lm_b"])
    return logits.reshape(B, Sd, V)


# ----------------------------------------------------------------------------
# Deterministic parameter init (fused QKV / KV weight layouts, bf16 matmul weights)
# ----------------------------------------------------------------------------
def init_params(key, vocab, num_stacks, D, F):
    keys = iter(jax.random.split(key, 1024))

    def nrm(shape, dtype=jnp.bfloat16):
        return (0.02 * jax.random.normal(next(keys), shape, jnp.float32)).astype(dtype)

    def self_attn_p():
        return {"w_qkv": nrm((D, 3 * D)), "b_qkv": jnp.zeros((1, 3 * D), jnp.float32),
                "wo": nrm((D, D)), "bo": jnp.zeros((1, D), jnp.float32)}

    def cross_attn_p():
        return {"wq": nrm((D, D)), "bq": jnp.zeros((1, D), jnp.float32),
                "w_kv": nrm((D, 2 * D)), "b_kv": jnp.zeros((1, 2 * D), jnp.float32),
                "wo": nrm((D, D)), "bo": jnp.zeros((1, D), jnp.float32)}

    def ln_p():
        return {"g": jnp.ones((1, D), jnp.float32), "b": jnp.zeros((1, D), jnp.float32)}

    def ffn_p():
        return {"w1": nrm((D, F)), "b1": jnp.zeros((1, F), jnp.float32),
                "w2": nrm((F, D)), "b2": jnp.zeros((1, D), jnp.float32)}

    params = {"embed": nrm((vocab, D), jnp.float32),
              "lm_w": nrm((D, vocab)), "lm_b": jnp.zeros((1, vocab), jnp.float32),
              "enc": [], "dec": []}
    for _ in range(num_stacks):
        params["enc"].append({"attn": self_attn_p(), "ln1": ln_p(),
                              "ffn": ffn_p(), "ln2": ln_p()})
        params["dec"].append({"self_attn": self_attn_p(), "ln1": ln_p(),
                              "cross_attn": cross_attn_p(), "ln2": ln_p(),
                              "ffn": ffn_p(), "ln3": ln_p()})
    return params


# ----------------------------------------------------------------------------
if __name__ == "__main__":
    vocab_size, num_stacks, embed_dim, num_heads, ff_dim = 64, 2, 32, 4, 64
    B, S_enc, S_dec = 2, 8, 8

    root = jax.random.PRNGKey(0)
    pkey, k1, k2 = jax.random.split(root, 3)
    params = init_params(pkey, vocab_size, num_stacks, embed_dim, ff_dim)

    encoder_input = jax.random.randint(k1, (B, S_enc), 0, vocab_size, dtype=jnp.int32)
    decoder_input = jax.random.randint(k2, (B, S_dec), 0, vocab_size, dtype=jnp.int32)
    # padding masks: 1 = real token, 0 = pad
    encoder_attention_mask = jnp.ones((B, S_enc), jnp.int32).at[1, S_enc - 2:].set(0)
    decoder_attention_mask = jnp.ones((B, S_dec), jnp.int32).at[1, S_dec - 1:].set(0)

    fwd = jax.jit(functools.partial(transformer_forward, num_heads=num_heads))
    logits = fwd(params, encoder_input, encoder_attention_mask,
                 decoder_input, decoder_attention_mask)
    jax.block_until_ready(logits)
    assert logits.shape == (B, S_dec, vocab_size)
    assert bool(jnp.all(jnp.isfinite(logits)))
    print("KERNEL_OK")
</pallas_src>

<mosaic_0001>
module attributes {stable_mosaic.version = 11 : i64} {
  func.func @_linear_res_ln_kernel(%arg0: i32, %arg1: memref<16x32xf32, #tpu.memory_space<vmem>>, %arg2: memref<32x32xbf16, #tpu.memory_space<vmem>>, %arg3: memref<1x32xf32, #tpu.memory_space<vmem>>, %arg4: memref<16x32xf32, #tpu.memory_space<vmem>>, %arg5: memref<1x32xf32, #tpu.memory_space<vmem>>, %arg6: memref<1x32xf32, #tpu.memory_space<vmem>>, %arg7: memref<16x32xf32, #tpu.memory_space<vmem>>) attributes {dimension_semantics = [#tpu.dimension_semantics<parallel>], iteration_bounds = array<i64: 1>, scalar_prefetch = 0 : i64, scratch_operands = 0 : i64, tpu.core_type = #tpu.core_type<tc>, window_params = [{transform_indices = @transform_0, window_bounds = array<i64: 16, 32>}, {pipeline_mode = #tpu.pipeline_mode<synchronous>, transform_indices = @transform_1, window_bounds = array<i64: 32, 32>}, {pipeline_mode = #tpu.pipeline_mode<synchronous>, transform_indices = @transform_2, window_bounds = array<i64: 1, 32>}, {transform_indices = @transform_3, window_bounds = array<i64: 16, 32>}, {pipeline_mode = #tpu.pipeline_mode<synchronous>, transform_indices = @transform_4, window_bounds = array<i64: 1, 32>}, {pipeline_mode = #tpu.pipeline_mode<synchronous>, transform_indices = @transform_5, window_bounds = array<i64: 1, 32>}, {transform_indices = @transform_6, window_bounds = array<i64: 16, 32>}]} {
    %c0 = arith.constant 0 : index
    %c0_0 = arith.constant 0 : index
    %0 = vector.load %arg1[%c0, %c0_0] : memref<16x32xf32, #tpu.memory_space<vmem>>, vector<16x32xf32>
    %1 = arith.truncf %0 : vector<16x32xf32> to vector<16x32xbf16>
    %c0_1 = arith.constant 0 : index
    %c0_2 = arith.constant 0 : index
    %2 = vector.load %arg2[%c0_1, %c0_2] : memref<32x32xbf16, #tpu.memory_space<vmem>>, vector<32x32xbf16>
    %cst = arith.constant dense<0.000000e+00> : vector<16x32xf32>
    %3 = tpu.matmul %1, %2, %cst {dimension_numbers = #tpu.dot_dimension_numbers<[1], [0], [0], [1], [0, 0, 1, 1], [], []>} : vector<16x32xbf16>, vector<32x32xbf16>, vector<16x32xf32> -> vector<16x32xf32>
    %c0_3 = arith.constant 0 : index
    %c0_4 = arith.constant 0 : index
    %4 = vector.load %arg3[%c0_3, %c0_4] : memref<1x32xf32, #tpu.memory_space<vmem>>, vector<1x32xf32>
    %5 = vector.broadcast %4 : vector<1x32xf32> to vector<16x32xf32>
    %6 = arith.addf %3, %5 : vector<16x32xf32>
    %c0_5 = arith.constant 0 : index
    %c0_6 = arith.constant 0 : index
    %7 = vector.load %arg4[%c0_5, %c0_6] : memref<16x32xf32, #tpu.memory_space<vmem>>, vector<16x32xf32>
    %8 = arith.addf %6, %7 : vector<16x32xf32>
    %cst_7 = arith.constant dense<0.000000e+00> : vector<16xf32>
    %9 = vector.multi_reduction <add>, %8, %cst_7 [1] : vector<16x32xf32> to vector<16xf32>
    %10 = vector.shape_cast %9 : vector<16xf32> to vector<16x1xf32>
    %cst_8 = arith.constant 3.200000e+01 : f32
    %11 = vector.broadcast %cst_8 : f32 to vector<16x1xf32>
    %12 = arith.divf %10, %11 : vector<16x1xf32>
    %13 = vector.broadcast %12 : vector<16x1xf32> to vector<16x32xf32>
    %14 = arith.subf %8, %13 : vector<16x32xf32>
    %15 = arith.mulf %14, %14 : vector<16x32xf32>
    %cst_9 = arith.constant dense<0.000000e+00> : vector<16xf32>
    %16 = vector.multi_reduction <add>, %15, %cst_9 [1] : vector<16x32xf32> to vector<16xf32>
    %17 = vector.shape_cast %16 : vector<16xf32> to vector<16x1xf32>
    %cst_10 = arith.constant 3.200000e+01 : f32
    %18 = vector.broadcast %cst_10 : f32 to vector<16x1xf32>
    %19 = arith.divf %17, %18 : vector<16x1xf32>
    %20 = vector.broadcast %12 : vector<16x1xf32> to vector<16x32xf32>
    %21 = arith.subf %8, %20 : vector<16x32xf32>
    %cst_11 = arith.constant 9.99999974E-6 : f32
    %22 = vector.broadcast %cst_11 : f32 to vector<16x1xf32>
    %23 = arith.addf %19, %22 : vector<16x1xf32>
    %24 = math.rsqrt %23 : vector<16x1xf32>
    %25 = vector.broadcast %24 : vector<16x1xf32> to vector<16x32xf32>
    %26 = arith.mulf %21, %25 : vector<16x32xf32>
    %c0_12 = arith.constant 0 : index
    %c0_13 = arith.constant 0 : index
    %27 = vector.load %arg5[%c0_12, %c0_13] : memref<1x32xf32, #tpu.memory_space<vmem>>, vector<1x32xf32>
    %28 = vector.broadcast %27 : vector<1x32xf32> to vector<16x32xf32>
    %29 = arith.mulf %26, %28 : vector<16x32xf32>
    %c0_14 = arith.constant 0 : index
    %c0_15 = arith.constant 0 : index
    %30 = vector.load %arg6[%c0_14, %c0_15] : memref<1x32xf32, #tpu.memory_space<vmem>>, vector<1x32xf32>
    %31 = vector.broadcast %30 : vector<1x32xf32> to vector<16x32xf32>
    %32 = arith.addf %29, %31 : vector<16x32xf32>
    %c0_16 = arith.constant 0 : index
    %c0_17 = arith.constant 0 : index
    %33 = vector.load %arg7[%c0_16, %c0_17] : memref<16x32xf32, #tpu.memory_space<vmem>>, vector<16x32xf32>
    tpu.vector_store %arg7[%c0_16, %c0_17], %32 {strides = array<i32>} : memref<16x32xf32, #tpu.memory_space<vmem>>, vector<16x32xf32>,
    return
  }
  func.func @transform_0(%arg0: i32) -> (i32, i32) {
    %c0_i32 = arith.constant 0 : i32
    %c0_i32_0 = arith.constant 0 : i32
    return %arg0, %c0_i32 : i32, i32
  }
  func.func @transform_1(%arg0: i32) -> (i32, i32) {
    %c0_i32 = arith.constant 0 : i32
    %c0_i32_0 = arith.constant 0 : i32
    %c0_i32_1 = arith.constant 0 : i32
    return %c0_i32, %c0_i32_0 : i32, i32
  }
  func.func @transform_2(%arg0: i32) -> (i32, i32) {
    %c0_i32 = arith.constant 0 : i32
    %c0_i32_0 = arith.constant 0 : i32
    %c0_i32_1 = arith.constant 0 : i32
    return %c0_i32, %c0_i32_0 : i32, i32
  }
  func.func @transform_3(%arg0: i32) -> (i32, i32) {
    %c0_i32 = arith.constant 0 : i32
    %c0_i32_0 = arith.constant 0 : i32
    return %arg0, %c0_i32 : i32, i32
  }
  func.func @transform_4(%arg0: i32) -> (i32, i32) {
    %c0_i32 = arith.constant 0 : i32
    %c0_i32_0 = arith.constant 0 : i32
    %c0_i32_1 = arith.constant 0 : i32
    return %c0_i32, %c0_i32_0 : i32, i32
  }
  func.func @transform_5(%arg0: i32) -> (i32, i32) {
    %c0_i32 = arith.constant 0 : i32
    %c0_i32_0 = arith.constant 0 : i32
    %c0_i32_1 = arith.constant 0 : i32
    return %c0_i32, %c0_i32_0 : i32, i32
  }
  func.func @transform_6(%arg0: i32) -> (i32, i32) {
    %c0_i32 = arith.constant 0 : i32
    %c0_i32_0 = arith.constant 0 : i32
    return %arg0, %c0_i32 : i32, i32
  }
}

module attributes {stable_mosaic.version = 11 : i64} {
  func.func @_linear_split_kernel(%arg0: i32, %arg1: memref<16x32xf32, #tpu.memory_space<vmem>>, %arg2: memref<32x96xbf16, #tpu.memory_space<vmem>>, %arg3: memref<1x96xf32, #tpu.memory_space<vmem>>, %arg4: memref<16x32xf32, #tpu.memory_space<vmem>>, %arg5: memref<16x64xf32, #tpu.memory_space<vmem>>) attributes {dimension_semantics = [#tpu.dimension_semantics<parallel>], iteration_bounds = array<i64: 1>, scalar_prefetch = 0 : i64, scratch_operands = 0 : i64, tpu.core_type = #tpu.core_type<tc>, window_params = [{transform_indices = @transform_0, window_bounds = array<i64: 16, 32>}, {pipeline_mode = #tpu.pipeline_mode<synchronous>, transform_indices = @transform_1, window_bounds = array<i64: 32, 96>}, {pipeline_mode = #tpu.pipeline_mode<synchronous>, transform_indices = @transform_2, window_bounds = array<i64: 1, 96>}, {transform_indices = @transform_3, window_bounds = array<i64: 16, 32>}, {transform_indices = @transform_4, window_bounds = array<i64: 16, 64>}]} {
    %c0 = arith.constant 0 : index
    %c0_0 = arith.constant 0 : index
    %0 = vector.load %arg1[%c0, %c0_0] : memref<16x32xf32, #tpu.memory_space<vmem>>, vector<16x32xf32>
    %1 = arith.truncf %0 : vector<16x32xf32> to vector<16x32xbf16>
    %c0_1 = arith.constant 0 : index
    %c0_2 = arith.constant 0 : index
    %2 = vector.load %arg2[%c0_1, %c0_2] : memref<32x96xbf16, #tpu.memory_space<vmem>>, vector<32x96xbf16>
    %cst = arith.constant dense<0.000000e+00> : vector<16x96xf32>
    %3 = tpu.matmul %1, %2, %cst {dimension_numbers = #tpu.dot_dimension_numbers<[1], [0], [0], [1], [0, 0, 1, 1], [], []>} : vector<16x32xbf16>, vector<32x96xbf16>, vector<16x96xf32> -> vector<16x96xf32>
    %c0_3 = arith.constant 0 : index
    %c0_4 = arith.constant 0 : index
    %4 = vector.load %arg3[%c0_3, %c0_4] : memref<1x96xf32, #tpu.memory_space<vmem>>, vector<1x96xf32>
    %5 = vector.broadcast %4 : vector<1x96xf32> to vector<16x96xf32>
    %6 = arith.addf %3, %5 : vector<16x96xf32>
    %7 = vector.extract_strided_slice %6 {offsets = [0, 0], sizes = [16, 32], strides = [1, 1]} : vector<16x96xf32> to vector<16x32xf32>
    %c0_5 = arith.constant 0 : index
    %c0_6 = arith.constant 0 : index
    %8 = vector.load %arg4[%c0_5, %c0_6] : memref<16x32xf32, #tpu.memory_space<vmem>>, vector<16x32xf32>
    tpu.vector_store %arg4[%c0_5, %c0_6], %7 {strides = array<i32>} : memref<16x32xf32, #tpu.memory_space<vmem>>, vector<16x32xf32>,
    %9 = vector.extract_strided_slice %6 {offsets = [0, 32], sizes = [16, 64], strides = [1, 1]} : vector<16x96xf32> to vector<16x64xf32>
    %c0_7 = arith.constant 0 : index
    %c0_8 = arith.constant 0 : index
    %10 = vector.load %arg5[%c0_7, %c0_8] : memref<16x64xf32, #tpu.memory_space<vmem>>, vector<16x64xf32>
    tpu.vector_store %arg5[%c0_7, %c0_8], %9 {strides = array<i32>} : memref<16x64xf32, #tpu.memory_space<vmem>>, vector<16x64xf32>,
    return
  }
  func.func @transform_0(%arg0: i32) -> (i32, i32) {
    %c0_i32 = arith.constant 0 : i32
    %c0_i32_0 = arith.constant 0 : i32
    return %arg0, %c0_i32 : i32, i32
  }
  func.func @transform_1(%arg0: i32) -> (i32, i32) {
    %c0_i32 = arith.constant 0 : i32
    %c0_i32_0 = arith.constant 0 : i32
    %c0_i32_1 = arith.constant 0 : i32
    return %c0_i32, %c0_i32_0 : i32, i32
  }
  func.func @transform_2(%arg0: i32) -> (i32, i32) {
    %c0_i32 = arith.constant 0 : i32
    %c0_i32_0 = arith.constant 0 : i32
    %c0_i32_1 = arith.constant 0 : i32
    return %c0_i32, %c0_i32_0 : i32, i32
  }
  func.func @transform_3(%arg0: i32) -> (i32, i32) {
    %c0_i32 = arith.constant 0 : i32
    %c0_i32_0 = arith.constant 0 : i32
    return %arg0, %c0_i32 : i32, i32
  }
  func.func @transform_4(%arg0: i32) -> (i32, i32) {
    %c0_i32 = arith.constant 0 : i32
    %c0_i32_0 = arith.constant 0 : i32
    return %arg0, %c0_i32 : i32, i32
  }
}

module attributes {stable_mosaic.version = 11 : i64} {
  func.func @_attention_kernel(%arg0: i32, %arg1: memref<1x8x32xf32, #tpu.memory_space<vmem>>, %arg2: memref<1x8x64xf32, #tpu.memory_space<vmem>>, %arg3: memref<1x1x8xf32, #tpu.memory_space<vmem>>, %arg4: memref<1x8x32xf32, #tpu.memory_space<vmem>>) attributes {dimension_semantics = [#tpu.dimension_semantics<parallel>], iteration_bounds = array<i64: 2>, scalar_prefetch = 0 : i64, scratch_operands = 0 : i64, tpu.core_type = #tpu.core_type<tc>, window_params = [{transform_indices = @transform_0, window_bounds = array<i64: 1, 8, 32>}, {transform_indices = @transform_1, window_bounds = array<i64: 1, 8, 64>}, {transform_indices = @transform_2, window_bounds = array<i64: 1, 1, 8>}, {transform_indices = @transform_3, window_bounds = array<i64: 1, 8, 32>}]} {
    %c0 = arith.constant 0 : index
    %c0_0 = arith.constant 0 : index
    %c0_1 = arith.constant 0 : index
    %0 = vector.load %arg1[%c0, %c0_0, %c0_1] : memref<1x8x32xf32, #tpu.memory_space<vmem>>, vector<1x8x32xf32>
    %1 = vector.shape_cast %0 : vector<1x8x32xf32> to vector<8x32xf32>
    %2 = arith.truncf %1 : vector<8x32xf32> to vector<8x32xbf16>
    %c0_2 = arith.constant 0 : index
    %c0_3 = arith.constant 0 : index
    %c0_4 = arith.constant 0 : index
    %3 = vector.load %arg2[%c0_2, %c0_3, %c0_4] : memref<1x8x64xf32, #tpu.memory_space<vmem>>, vector<1x8x64xf32>
    %4 = vector.shape_cast %3 : vector<1x8x64xf32> to vector<8x64xf32>
    %5 = arith.truncf %4 : vector<8x64xf32> to vector<8x64xbf16>
    %c0_5 = arith.constant 0 : index
    %c0_6 = arith.constant 0 : index
    %c0_7 = arith.constant 0 : index
    %6 = vector.load %arg3[%c0_5, %c0_6, %c0_7] : memref<1x1x8xf32, #tpu.memory_space<vmem>>, vector<1x1x8xf32>
    %7 = vector.shape_cast %6 : vector<1x1x8xf32> to vector<1x8xf32>
    %cst = arith.constant 5.000000e-01 : f32
    %8 = vector.broadcast %cst : f32 to vector<1x8xf32>
    %9 = arith.cmpf ogt, %7, %8 : vector<1x8xf32>
    %10 = vector.shape_cast %9 : vector<1x8xi1> to vector<1x8xi1>
    %11 = vector.broadcast %10 : vector<1x8xi1> to vector<8x8xi1>
    %12 = vector.extract_strided_slice %2 {offsets = [0, 0], sizes = [8, 8], strides = [1, 1]} : vector<8x32xbf16> to vector<8x8xbf16>
    %13 = vector.extract_strided_slice %5 {offsets = [0, 0], sizes = [8, 8], strides = [1, 1]} : vector<8x64xbf16> to vector<8x8xbf16>
    %14 = vector.extract_strided_slice %5 {offsets = [0, 32], sizes = [8, 8], strides = [1, 1]} : vector<8x64xbf16> to vector<8x8xbf16>
    %cst_8 = arith.constant dense<0.000000e+00> : vector<8x8xf32>
    %15 = tpu.matmul %12, %13, %cst_8 {dimension_numbers = #tpu.dot_dimension_numbers<[1], [1], [0], [0], [0, 0, 1, 0], [], []>} : vector<8x8xbf16>, vector<8x8xbf16>, vector<8x8xf32> -> vector<8x8xf32>
    %cst_9 = arith.constant 0.353553385 : f32
    %16 = vector.broadcast %cst_9 : f32 to vector<8x8xf32>
    %17 = arith.mulf %15, %16 : vector<8x8xf32>
    %cst_10 = arith.constant -1.000000e+09 : f32
    %18 = vector.broadcast %cst_10 : f32 to vector<8x8xf32>
    %19 = arith.select %11, %17, %18 : vector<8x8xi1>, vector<8x8xf32>
    %cst_11 = arith.constant dense<0xFF800000> : vector<8xf32>
    %20 = vector.multi_reduction <maximumf>, %19, %cst_11 [1] : vector<8x8xf32> to vector<8xf32>
    %21 = vector.shape_cast %20 : vector<8xf32> to vector<8x1xf32>
    %22 = vector.broadcast %21 : vector<8x1xf32> to vector<8x8xf32>
    %23 = arith.subf %19, %22 : vector<8x8xf32>
    %24 = math.exp %23 : vector<8x8xf32>
    %cst_12 = arith.constant dense<0.000000e+00> : vector<8xf32>
    %25 = vector.multi_reduction <add>, %24, %cst_12 [1] : vector<8x8xf32> to vector<8xf32>
    %26 = vector.shape_cast %25 : vector<8xf32> to vector<8x1xf32>
    %27 = tpu.reciprocal %26 {approx = true} : vector<8x1xf32> -> vector<8x1xf32>
    %28 = vector.broadcast %27 : vector<8x1xf32> to vector<8x8xf32>
    %29 = arith.mulf %24, %28 : vector<8x8xf32>
    %30 = arith.truncf %29 : vector<8x8xf32> to vector<8x8xbf16>
    %cst_13 = arith.constant dense<0.000000e+00> : vector<8x8xf32>
    %31 = tpu.matmul %30, %14, %cst_13 {dimension_numbers = #tpu.dot_dimension_numbers<[1], [0], [0], [1], [0, 0, 1, 1], [], []>} : vector<8x8xbf16>, vector<8x8xbf16>, vector<8x8xf32> -> vector<8x8xf32>
    %32 = vector.extract_strided_slice %2 {offsets = [0, 8], sizes = [8, 8], strides = [1, 1]} : vector<8x32xbf16> to vector<8x8xbf16>
    %33 = vector.extract_strided_slice %5 {offsets = [0, 8], sizes = [8, 8], strides = [1, 1]} : vector<8x64xbf16> to vector<8x8xbf16>
    %34 = vector.extract_strided_slice %5 {offsets = [0, 40], sizes = [8, 8], strides = [1, 1]} : vector<8x64xbf16> to vector<8x8xbf16>
    %cst_14 = arith.constant dense<0.000000e+00> : vector<8x8xf32>
    %35 = tpu.matmul %32, %33, %cst_14 {dimension_numbers = #tpu.dot_dimension_numbers<[1], [1], [0], [0], [0, 0, 1, 0], [], []>} : vector<8x8xbf16>, vector<8x8xbf16>, vector<8x8xf32> -> vector<8x8xf32>
    %cst_15 = arith.constant 0.353553385 : f32
    %36 = vector.broadcast %cst_15 : f32 to vector<8x8xf32>
    %37 = arith.mulf %35, %36 : vector<8x8xf32>
    %cst_16 = arith.constant -1.000000e+09 : f32
    %38 = vector.broadcast %cst_16 : f32 to vector<8x8xf32>
    %39 = arith.select %11, %37, %38 : vector<8x8xi1>, vector<8x8xf32>
    %cst_17 = arith.constant dense<0xFF800000> : vector<8xf32>
    %40 = vector.multi_reduction <maximumf>, %39, %cst_17 [1] : vector<8x8xf32> to vector<8xf32>
    %41 = vector.shape_cast %40 : vector<8xf32> to vector<8x1xf32>
    %42 = vector.broadcast %41 : vector<8x1xf32> to vector<8x8xf32>
    %43 = arith.subf %39, %42 : vector<8x8xf32>
    %44 = math.exp %43 : vector<8x8xf32>
    %cst_18 = arith.constant dense<0.000000e+00> : vector<8xf32>
    %45 = vector.multi_reduction <add>, %44, %cst_18 [1] : vector<8x8xf32> to vector<8xf32>
    %46 = vector.shape_cast %45 : vector<8xf32> to vector<8x1xf32>
    %47 = tpu.reciprocal %46 {approx = true} : vector<8x1xf32> -> vector<8x1xf32>
    %48 = vector.broadcast %47 : vector<8x1xf32> to vector<8x8xf32>
    %49 = arith.mulf %44, %48 : vector<8x8xf32>
    %50 = arith.truncf %49 : vector<8x8xf32> to vector<8x8xbf16>
    %cst_19 = arith.constant dense<0.000000e+00> : vector<8x8xf32>
    %51 = tpu.matmul %50, %34, %cst_19 {dimension_numbers = #tpu.dot_dimension_numbers<[1], [0], [0], [1], [0, 0, 1, 1], [], []>} : vector<8x8xbf16>, vector<8x8xbf16>, vector<8x8xf32> -> vector<8x8xf32>
    %52 = vector.extract_strided_slice %2 {offsets = [0, 16], sizes = [8, 8], strides = [1, 1]} : vector<8x32xbf16> to vector<8x8xbf16>
    %53 = vector.extract_strided_slice %5 {offsets = [0, 16], sizes = [8, 8], strides = [1, 1]} : vector<8x64xbf16> to vector<8x8xbf16>
    %54 = vector.extract_strided_slice %5 {offsets = [0, 48], sizes = [8, 8], strides = [1, 1]} : vector<8x64xbf16> to vector<8x8xbf16>
    %cst_20 = arith.constant dense<0.000000e+00> : vector<8x8xf32>
    %55 = tpu.matmul %52, %53, %cst_20 {dimension_numbers = #tpu.dot_dimension_numbers<[1], [1], [0], [0], [0, 0, 1, 0], [], []>} : vector<8x8xbf16>, vector<8x8xbf16>, vector<8x8xf32> -> vector<8x8xf32>
    %cst_21 = arith.constant 0.353553385 : f32
    %56 = vector.broadcast %cst_21 : f32 to vector<8x8xf32>
    %57 = arith.mulf %55, %56 : vector<8x8xf32>
    %cst_22 = arith.constant -1.000000e+09 : f32
    %58 = vector.broadcast %cst_22 : f32 to vector<8x8xf32>
    %59 = arith.select %11, %57, %58 : vector<8x8xi1>, vector<8x8xf32>
    %cst_23 = arith.constant dense<0xFF800000> : vector<8xf32>
    %60 = vector.multi_reduction <maximumf>, %59, %cst_23 [1] : vector<8x8xf32> to vector<8xf32>
    %61 = vector.shape_cast %60 : vector<8xf32> to vector<8x1xf32>
    %62 = vector.broadcast %61 : vector<8x1xf32> to vector<8x8xf32>
    %63 = arith.subf %59, %62 : vector<8x8xf32>
    %64 = math.exp %63 : vector<8x8xf32>
    %cst_24 = arith.constant dense<0.000000e+00> : vector<8xf32>
    %65 = vector.multi_reduction <add>, %64, %cst_24 [1] : vector<8x8xf32> to vector<8xf32>
    %66 = vector.shape_cast %65 : vector<8xf32> to vector<8x1xf32>
    %67 = tpu.reciprocal %66 {approx = true} : vector<8x1xf32> -> vector<8x1xf32>
    %68 = vector.broadcast %67 : vector<8x1xf32> to vector<8x8xf32>
    %69 = arith.mulf %64, %68 : vector<8x8xf32>
    %70 = arith.truncf %69 : vector<8x8xf32> to vector<8x8xbf16>
    %cst_25 = arith.constant dense<0.000000e+00> : vector<8x8xf32>
    %71 = tpu.matmul %70, %54, %cst_25 {dimension_numbers = #tpu.dot_dimension_numbers<[1], [0], [0], [1], [0, 0, 1, 1], [], []>} : vector<8x8xbf16>, vector<8x8xbf16>, vector<8x8xf32> -> vector<8x8xf32>
    %72 = vector.extract_strided_slice %2 {offsets = [0, 24], sizes = [8, 8], strides = [1, 1]} : vector<8x32xbf16> to vector<8x8xbf16>
    %73 = vector.extract_strided_slice %5 {offsets = [0, 24], sizes = [8, 8], strides = [1, 1]} : vector<8x64xbf16> to vector<8x8xbf16>
    %74 = vector.extract_strided_slice %5 {offsets = [0, 56], sizes = [8, 8], strides = [1, 1]} : vector<8x64xbf16> to vector<8x8xbf16>
    %cst_26 = arith.constant dense<0.000000e+00> : vector<8x8xf32>
    %75 = tpu.matmul %72, %73, %cst_26 {dimension_numbers = #tpu.dot_dimension_numbers<[1], [1], [0], [0], [0, 0, 1, 0], [], []>} : vector<8x8xbf16>, vector<8x8xbf16>, vector<8x8xf32> -> vector<8x8xf32>
    %cst_27 = arith.constant 0.353553385 : f32
    %76 = vector.broadcast %cst_27 : f32 to vector<8x8xf32>
    %77 = arith.mulf %75, %76 : vector<8x8xf32>
    %cst_28 = arith.constant -1.000000e+09 : f32
    %78 = vector.broadcast %cst_28 : f32 to vector<8x8xf32>
    %79 = arith.select %11, %77, %78 : vector<8x8xi1>, vector<8x8xf32>
    %cst_29 = arith.constant dense<0xFF800000> : vector<8xf32>
    %80 = vector.multi_reduction <maximumf>, %79, %cst_29 [1] : vector<8x8xf32> to vector<8xf32>
    %81 = vector.shape_cast %80 : vector<8xf32> to vector<8x1xf32>
    %82 = vector.broadcast %81 : vector<8x1xf32> to vector<8x8xf32>
    %83 = arith.subf %79, %82 : vector<8x8xf32>
    %84 = math.exp %83 : vector<8x8xf32>
    %cst_30 = arith.constant dense<0.000000e+00> : vector<8xf32>
    %85 = vector.multi_reduction <add>, %84, %cst_30 [1] : vector<8x8xf32> to vector<8xf32>
    %86 = vector.shape_cast %85 : vector<8xf32> to vector<8x1xf32>
    %87 = tpu.reciprocal %86 {approx = true} : vector<8x1xf32> -> vector<8x1xf32>
    %88 = vector.broadcast %87 : vector<8x1xf32> to vector<8x8xf32>
    %89 = arith.mulf %84, %88 : vector<8x8xf32>
    %90 = arith.truncf %89 : vector<8x8xf32> to vector<8x8xbf16>
    %cst_31 = arith.constant dense<0.000000e+00> : vector<8x8xf32>
    %91 = tpu.matmul %90, %74, %cst_31 {dimension_numbers = #tpu.dot_dimension_numbers<[1], [0], [0], [1], [0, 0, 1, 1], [], []>} : vector<8x8xbf16>, vector<8x8xbf16>, vector<8x8xf32> -> vector<8x8xf32>
    %92 = tpu.concatenate %31, %51, %71, %91 in 1 : vector<8x8xf32>, vector<8x8xf32>, vector<8x8xf32>, vector<8x8xf32> -> vector<8x32xf32>
    %c0_32 = arith.constant 0 : index
    %c0_33 = arith.constant 0 : index
    %c0_34 = arith.constant 0 : index
    %93 = vector.load %arg4[%c0_32, %c0_33, %c0_34] : memref<1x8x32xf32, #tpu.memory_space<vmem>>, vector<1x8x32xf32>
    %94 = vector.shape_cast %93 : vector<1x8x32xf32> to vector<8x32xf32>
    %95 = vector.shape_cast %92 : vector<8x32xf32> to vector<1x8x32xf32>
    tpu.vector_store %arg4[%c0_32, %c0_33, %c0_34], %95 {strides = array<i32>} : memref<1x8x32xf32, #tpu.memory_space<vmem>>, vector<1x8x32xf32>,
    return
  }
  func.func @transform_0(%arg0: i32) -> (i32, i32, i32) {
    %c0_i32 = arith.constant 0 : i32
    %c0_i32_0 = arith.constant 0 : i32
    %c0_i32_1 = arith.constant 0 : i32
    return %arg0, %c0_i32, %c0_i32_0 : i32, i32, i32
  }
  func.func @transform_1(%arg0: i32) -> (i32, i32, i32) {
    %c0_i32 = arith.constant 0 : i32
    %c0_i32_0 = arith.constant 0 : i32
    %c0_i32_1 = arith.constant 0 : i32
    return %arg0, %c0_i32, %c0_i32_0 : i32, i32, i32
  }
  func.func @transform_2(%arg0: i32) -> (i32, i32, i32) {
    %c0_i32 = arith.constant 0 : i32
    %c0_i32_0 = arith.constant 0 : i32
    %c0_i32_1 = arith.constant 0 : i32
    return %arg0, %c0_i32, %c0_i32_0 : i32, i32, i32
  }
  func.func @transform_3(%arg0: i32) -> (i32, i32, i32) {
    %c0_i32 = arith.constant 0 : i32
    %c0_i32_0 = arith.constant 0 : i32
    %c0_i32_1 = arith.constant 0 : i32
    return %arg0, %c0_i32, %c0_i32_0 : i32, i32, i32
  }
}

module attributes {stable_mosaic.version = 11 : i64} {
  func.func @_ffn_res_ln_kernel(%arg0: i32, %arg1: memref<16x32xf32, #tpu.memory_space<vmem>>, %arg2: memref<32x64xbf16, #tpu.memory_space<vmem>>, %arg3: memref<1x64xf32, #tpu.memory_space<vmem>>, %arg4: memref<64x32xbf16, #tpu.memory_space<vmem>>, %arg5: memref<1x32xf32, #tpu.memory_space<vmem>>, %arg6: memref<1x32xf32, #tpu.memory_space<vmem>>, %arg7: memref<1x32xf32, #tpu.memory_space<vmem>>, %arg8: memref<16x32xf32, #tpu.memory_space<vmem>>) attributes {dimension_semantics = [#tpu.dimension_semantics<parallel>], iteration_bounds = array<i64: 1>, scalar_prefetch = 0 : i64, scratch_operands = 0 : i64, tpu.core_type = #tpu.core_type<tc>, window_params = [{transform_indices = @transform_0, window_bounds = array<i64: 16, 32>}, {pipeline_mode = #tpu.pipeline_mode<synchronous>, transform_indices = @transform_1, window_bounds = array<i64: 32, 64>}, {pipeline_mode = #tpu.pipeline_mode<synchronous>, transform_indices = @transform_2, window_bounds = array<i64: 1, 64>}, {pipeline_mode = #tpu.pipeline_mode<synchronous>, transform_indices = @transform_3, window_bounds = array<i64: 64, 32>}, {pipeline_mode = #tpu.pipeline_mode<synchronous>, transform_indices = @transform_4, window_bounds = array<i64: 1, 32>}, {pipeline_mode = #tpu.pipeline_mode<synchronous>, transform_indices = @transform_5, window_bounds = array<i64: 1, 32>}, {pipeline_mode = #tpu.pipeline_mode<synchronous>, transform_indices = @transform_6, window_bounds = array<i64: 1, 32>}, {transform_indices = @transform_7, window_bounds = array<i64: 16, 32>}]} {
    %c0 = arith.constant 0 : index
    %c0_0 = arith.constant 0 : index
    %0 = vector.load %arg1[%c0, %c0_0] : memref<16x32xf32, #tpu.memory_space<vmem>>, vector<16x32xf32>
    %1 = arith.truncf %0 : vector<16x32xf32> to vector<16x32xbf16>
    %c0_1 = arith.constant 0 : index
    %c0_2 = arith.constant 0 : index
    %2 = vector.load %arg2[%c0_1, %c0_2] : memref<32x64xbf16, #tpu.memory_space<vmem>>, vector<32x64xbf16>
    %cst = arith.constant dense<0.000000e+00> : vector<16x64xf32>
    %3 = tpu.matmul %1, %2, %cst {dimension_numbers = #tpu.dot_dimension_numbers<[1], [0], [0], [1], [0, 0, 1, 1], [], []>} : vector<16x32xbf16>, vector<32x64xbf16>, vector<16x64xf32> -> vector<16x64xf32>
    %c0_3 = arith.constant 0 : index
    %c0_4 = arith.constant 0 : index
    %4 = vector.load %arg3[%c0_3, %c0_4] : memref<1x64xf32, #tpu.memory_space<vmem>>, vector<1x64xf32>
    %5 = vector.broadcast %4 : vector<1x64xf32> to vector<16x64xf32>
    %6 = arith.addf %3, %5 : vector<16x64xf32>
    %cst_5 = arith.constant 0.000000e+00 : f32
    %7 = vector.broadcast %cst_5 : f32 to vector<16x64xf32>
    %8 = arith.maximumf %6, %7 : vector<16x64xf32>
    %9 = arith.truncf %8 : vector<16x64xf32> to vector<16x64xbf16>
    %c0_6 = arith.constant 0 : index
    %c0_7 = arith.constant 0 : index
    %10 = vector.load %arg4[%c0_6, %c0_7] : memref<64x32xbf16, #tpu.memory_space<vmem>>, vector<64x32xbf16>
    %cst_8 = arith.constant dense<0.000000e+00> : vector<16x32xf32>
    %11 = tpu.matmul %9, %10, %cst_8 {dimension_numbers = #tpu.dot_dimension_numbers<[1], [0], [0], [1], [0, 0, 1, 1], [], []>} : vector<16x64xbf16>, vector<64x32xbf16>, vector<16x32xf32> -> vector<16x32xf32>
    %c0_9 = arith.constant 0 : index
    %c0_10 = arith.constant 0 : index
    %12 = vector.load %arg5[%c0_9, %c0_10] : memref<1x32xf32, #tpu.memory_space<vmem>>, vector<1x32xf32>
    %13 = vector.broadcast %12 : vector<1x32xf32> to vector<16x32xf32>
    %14 = arith.addf %11, %13 : vector<16x32xf32>
    %15 = arith.addf %14, %0 : vector<16x32xf32>
    %cst_11 = arith.constant dense<0.000000e+00> : vector<16xf32>
    %16 = vector.multi_reduction <add>, %15, %cst_11 [1] : vector<16x32xf32> to vector<16xf32>
    %17 = vector.shape_cast %16 : vector<16xf32> to vector<16x1xf32>
    %cst_12 = arith.constant 3.200000e+01 : f32
    %18 = vector.broadcast %cst_12 : f32 to vector<16x1xf32>
    %19 = arith.divf %17, %18 : vector<16x1xf32>
    %20 = vector.broadcast %19 : vector<16x1xf32> to vector<16x32xf32>
    %21 = arith.subf %15, %20 : vector<16x32xf32>
    %22 = arith.mulf %21, %21 : vector<16x32xf32>
    %cst_13 = arith.constant dense<0.000000e+00> : vector<16xf32>
    %23 = vector.multi_reduction <add>, %22, %cst_13 [1] : vector<16x32xf32> to vector<16xf32>
    %24 = vector.shape_cast %23 : vector<16xf32> to vector<16x1xf32>
    %cst_14 = arith.constant 3.200000e+01 : f32
    %25 = vector.broadcast %cst_14 : f32 to vector<16x1xf32>
    %26 = arith.divf %24, %25 : vector<16x1xf32>
    %27 = vector.broadcast %19 : vector<16x1xf32> to vector<16x32xf32>
    %28 = arith.subf %15, %27 : vector<16x32xf32>
    %cst_15 = arith.constant 9.99999974E-6 : f32
    %29 = vector.broadcast %cst_15 : f32 to vector<16x1xf32>
    %30 = arith.addf %26, %29 : vector<16x1xf32>
    %31 = math.rsqrt %30 : vector<16x1xf32>
    %32 = vector.broadcast %31 : vector<16x1xf32> to vector<16x32xf32>
    %33 = arith.mulf %28, %32 : vector<16x32xf32>
    %c0_16 = arith.constant 0 : index
    %c0_17 = arith.constant 0 : index
    %34 = vector.load %arg6[%c0_16, %c0_17] : memref<1x32xf32, #tpu.memory_space<vmem>>, vector<1x32xf32>
    %35 = vector.broadcast %34 : vector<1x32xf32> to vector<16x32xf32>
    %36 = arith.mulf %33, %35 : vector<16x32xf32>
    %c0_18 = arith.constant 0 : index
    %c0_19 = arith.constant 0 : index
    %37 = vector.load %arg7[%c0_18, %c0_19] : memref<1x32xf32, #tpu.memory_space<vmem>>, vector<1x32xf32>
    %38 = vector.broadcast %37 : vector<1x32xf32> to vector<16x32xf32>
    %39 = arith.addf %36, %38 : vector<16x32xf32>
    %c0_20 = arith.constant 0 : index
    %c0_21 = arith.constant 0 : index
    %40 = vector.load %arg8[%c0_20, %c0_21] : memref<16x32xf32, #tpu.memory_space<vmem>>, vector<16x32xf32>
    tpu.vector_store %arg8[%c0_20, %c0_21], %39 {strides = array<i32>} : memref<16x32xf32, #tpu.memory_space<vmem>>, vector<16x32xf32>,
    return
  }
  func.func @transform_0(%arg0: i32) -> (i32, i32) {
    %c0_i32 = arith.constant 0 : i32
    %c0_i32_0 = arith.constant 0 : i32
    return %arg0, %c0_i32 : i32, i32
  }
  func.func @transform_1(%arg0: i32) -> (i32, i32) {
    %c0_i32 = arith.constant 0 : i32
    %c0_i32_0 = arith.constant 0 : i32
    %c0_i32_1 = arith.constant 0 : i32
    return %c0_i32, %c0_i32_0 : i32, i32
  }
  func.func @transform_2(%arg0: i32) -> (i32, i32) {
    %c0_i32 = arith.constant 0 : i32
    %c0_i32_0 = arith.constant 0 : i32
    %c0_i32_1 = arith.constant 0 : i32
    return %c0_i32, %c0_i32_0 : i32, i32
  }
  func.func @transform_3(%arg0: i32) -> (i32, i32) {
    %c0_i32 = arith.constant 0 : i32
    %c0_i32_0 = arith.constant 0 : i32
    %c0_i32_1 = arith.constant 0 : i32
    return %c0_i32, %c0_i32_0 : i32, i32
  }
  func.func @transform_4(%arg0: i32) -> (i32, i32) {
    %c0_i32 = arith.constant 0 : i32
    %c0_i32_0 = arith.constant 0 : i32
    %c0_i32_1 = arith.constant 0 : i32
    return %c0_i32, %c0_i32_0 : i32, i32
  }
  func.func @transform_5(%arg0: i32) -> (i32, i32) {
    %c0_i32 = arith.constant 0 : i32
    %c0_i32_0 = arith.constant 0 : i32
    %c0_i32_1 = arith.constant 0 : i32
    return %c0_i32, %c0_i32_0 : i32, i32
  }
  func.func @transform_6(%arg0: i32) -> (i32, i32) {
    %c0_i32 = arith.constant 0 : i32
    %c0_i32_0 = arith.constant 0 : i32
    %c0_i32_1 = arith.constant 0 : i32
    return %c0_i32, %c0_i32_0 : i32, i32
  }
  func.func @transform_7(%arg0: i32) -> (i32, i32) {
    %c0_i32 = arith.constant 0 : i32
    %c0_i32_0 = arith.constant 0 : i32
    return %arg0, %c0_i32 : i32, i32
  }
}

module attributes {stable_mosaic.version = 11 : i64} {
  func.func @_attention_kernel(%arg0: i32, %arg1: memref<1x8x32xf32, #tpu.memory_space<vmem>>, %arg2: memref<1x8x64xf32, #tpu.memory_space<vmem>>, %arg3: memref<1x1x8xf32, #tpu.memory_space<vmem>>, %arg4: memref<1x8x32xf32, #tpu.memory_space<vmem>>) attributes {dimension_semantics = [#tpu.dimension_semantics<parallel>], iteration_bounds = array<i64: 2>, scalar_prefetch = 0 : i64, scratch_operands = 0 : i64, tpu.core_type = #tpu.core_type<tc>, window_params = [{transform_indices = @transform_0, window_bounds = array<i64: 1, 8, 32>}, {transform_indices = @transform_1, window_bounds = array<i64: 1, 8, 64>}, {transform_indices = @transform_2, window_bounds = array<i64: 1, 1, 8>}, {transform_indices = @transform_3, window_bounds = array<i64: 1, 8, 32>}]} {
    %c0 = arith.constant 0 : index
    %c0_0 = arith.constant 0 : index
    %c0_1 = arith.constant 0 : index
    %0 = vector.load %arg1[%c0, %c0_0, %c0_1] : memref<1x8x32xf32, #tpu.memory_space<vmem>>, vector<1x8x32xf32>
    %1 = vector.shape_cast %0 : vector<1x8x32xf32> to vector<8x32xf32>
    %2 = arith.truncf %1 : vector<8x32xf32> to vector<8x32xbf16>
    %c0_2 = arith.constant 0 : index
    %c0_3 = arith.constant 0 : index
    %c0_4 = arith.constant 0 : index
    %3 = vector.load %arg2[%c0_2, %c0_3, %c0_4] : memref<1x8x64xf32, #tpu.memory_space<vmem>>, vector<1x8x64xf32>
    %4 = vector.shape_cast %3 : vector<1x8x64xf32> to vector<8x64xf32>
    %5 = arith.truncf %4 : vector<8x64xf32> to vector<8x64xbf16>
    %c0_5 = arith.constant 0 : index
    %c0_6 = arith.constant 0 : index
    %c0_7 = arith.constant 0 : index
    %6 = vector.load %arg3[%c0_5, %c0_6, %c0_7] : memref<1x1x8xf32, #tpu.memory_space<vmem>>, vector<1x1x8xf32>
    %7 = vector.shape_cast %6 : vector<1x1x8xf32> to vector<1x8xf32>
    %cst = arith.constant 5.000000e-01 : f32
    %8 = vector.broadcast %cst : f32 to vector<1x8xf32>
    %9 = arith.cmpf ogt, %7, %8 : vector<1x8xf32>
    %10 = vector.shape_cast %9 : vector<1x8xi1> to vector<1x8xi1>
    %11 = vector.broadcast %10 : vector<1x8xi1> to vector<8x8xi1>
    %12 = tpu.iota {dimensions = array<i32: 0>} : vector<8x8xi32>
    %13 = tpu.iota {dimensions = array<i32: 1>} : vector<8x8xi32>
    %14 = arith.cmpi sge, %12, %13 : vector<8x8xi32>
    %15 = arith.andi %11, %14 : vector<8x8xi1>
    %16 = vector.extract_strided_slice %2 {offsets = [0, 0], sizes = [8, 8], strides = [1, 1]} : vector<8x32xbf16> to vector<8x8xbf16>
    %17 = vector.extract_strided_slice %5 {offsets = [0, 0], sizes = [8, 8], strides = [1, 1]} : vector<8x64xbf16> to vector<8x8xbf16>
    %18 = vector.extract_strided_slice %5 {offsets = [0, 32], sizes = [8, 8], strides = [1, 1]} : vector<8x64xbf16> to vector<8x8xbf16>
    %cst_8 = arith.constant dense<0.000000e+00> : vector<8x8xf32>
    %19 = tpu.matmul %16, %17, %cst_8 {dimension_numbers = #tpu.dot_dimension_numbers<[1], [1], [0], [0], [0, 0, 1, 0], [], []>} : vector<8x8xbf16>, vector<8x8xbf16>, vector<8x8xf32> -> vector<8x8xf32>
    %cst_9 = arith.constant 0.353553385 : f32
    %20 = vector.broadcast %cst_9 : f32 to vector<8x8xf32>
    %21 = arith.mulf %19, %20 : vector<8x8xf32>
    %cst_10 = arith.constant -1.000000e+09 : f32
    %22 = vector.broadcast %cst_10 : f32 to vector<8x8xf32>
    %23 = arith.select %15, %21, %22 : vector<8x8xi1>, vector<8x8xf32>
    %cst_11 = arith.constant dense<0xFF800000> : vector<8xf32>
    %24 = vector.multi_reduction <maximumf>, %23, %cst_11 [1] : vector<8x8xf32> to vector<8xf32>
    %25 = vector.shape_cast %24 : vector<8xf32> to vector<8x1xf32>
    %26 = vector.broadcast %25 : vector<8x1xf32> to vector<8x8xf32>
    %27 = arith.subf %23, %26 : vector<8x8xf32>
    %28 = math.exp %27 : vector<8x8xf32>
    %cst_12 = arith.constant dense<0.000000e+00> : vector<8xf32>
    %29 = vector.multi_reduction <add>, %28, %cst_12 [1] : vector<8x8xf32> to vector<8xf32>
    %30 = vector.shape_cast %29 : vector<8xf32> to vector<8x1xf32>
    %31 = tpu.reciprocal %30 {approx = true} : vector<8x1xf32> -> vector<8x1xf32>
    %32 = vector.broadcast %31 : vector<8x1xf32> to vector<8x8xf32>
    %33 = arith.mulf %28, %32 : vector<8x8xf32>
    %34 = arith.truncf %33 : vector<8x8xf32> to vector<8x8xbf16>
    %cst_13 = arith.constant dense<0.000000e+00> : vector<8x8xf32>
    %35 = tpu.matmul %34, %18, %cst_13 {dimension_numbers = #tpu.dot_dimension_numbers<[1], [0], [0], [1], [0, 0, 1, 1], [], []>} : vector<8x8xbf16>, vector<8x8xbf16>, vector<8x8xf32> -> vector<8x8xf32>
    %36 = vector.extract_strided_slice %2 {offsets = [0, 8], sizes = [8, 8], strides = [1, 1]} : vector<8x32xbf16> to vector<8x8xbf16>
    %37 = vector.extract_strided_slice %5 {offsets = [0, 8], sizes = [8, 8], strides = [1, 1]} : vector<8x64xbf16> to vector<8x8xbf16>
    %38 = vector.extract_strided_slice %5 {offsets = [0, 40], sizes = [8, 8], strides = [1, 1]} : vector<8x64xbf16> to vector<8x8xbf16>
    %cst_14 = arith.constant dense<0.000000e+00> : vector<8x8xf32>
    %39 = tpu.matmul %36, %37, %cst_14 {dimension_numbers = #tpu.dot_dimension_numbers<[1], [1], [0], [0], [0, 0, 1, 0], [], []>} : vector<8x8xbf16>, vector<8x8xbf16>, vector<8x8xf32> -> vector<8x8xf32>
    %cst_15 = arith.constant 0.353553385 : f32
    %40 = vector.broadcast %cst_15 : f32 to vector<8x8xf32>
    %41 = arith.mulf %39, %40 : vector<8x8xf32>
    %cst_16 = arith.constant -1.000000e+09 : f32
    %42 = vector.broadcast %cst_16 : f32 to vector<8x8xf32>
    %43 = arith.select %15, %41, %42 : vector<8x8xi1>, vector<8x8xf32>
    %cst_17 = arith.constant dense<0xFF800000> : vector<8xf32>
    %44 = vector.multi_reduction <maximumf>, %43, %cst_17 [1] : vector<8x8xf32> to vector<8xf32>
    %45 = vector.shape_cast %44 : vector<8xf32> to vector<8x1xf32>
    %46 = vector.broadcast %45 : vector<8x1xf32> to vector<8x8xf32>
    %47 = arith.subf %43, %46 : vector<8x8xf32>
    %48 = math.exp %47 : vector<8x8xf32>
    %cst_18 = arith.constant dense<0.000000e+00> : vector<8xf32>
    %49 = vector.multi_reduction <add>, %48, %cst_18 [1] : vector<8x8xf32> to vector<8xf32>
    %50 = vector.shape_cast %49 : vector<8xf32> to vector<8x1xf32>
    %51 = tpu.reciprocal %50 {approx = true} : vector<8x1xf32> -> vector<8x1xf32>
    %52 = vector.broadcast %51 : vector<8x1xf32> to vector<8x8xf32>
    %53 = arith.mulf %48, %52 : vector<8x8xf32>
    %54 = arith.truncf %53 : vector<8x8xf32> to vector<8x8xbf16>
    %cst_19 = arith.constant dense<0.000000e+00> : vector<8x8xf32>
    %55 = tpu.matmul %54, %38, %cst_19 {dimension_numbers = #tpu.dot_dimension_numbers<[1], [0], [0], [1], [0, 0, 1, 1], [], []>} : vector<8x8xbf16>, vector<8x8xbf16>, vector<8x8xf32> -> vector<8x8xf32>
    %56 = vector.extract_strided_slice %2 {offsets = [0, 16], sizes = [8, 8], strides = [1, 1]} : vector<8x32xbf16> to vector<8x8xbf16>
    %57 = vector.extract_strided_slice %5 {offsets = [0, 16], sizes = [8, 8], strides = [1, 1]} : vector<8x64xbf16> to vector<8x8xbf16>
    %58 = vector.extract_strided_slice %5 {offsets = [0, 48], sizes = [8, 8], strides = [1, 1]} : vector<8x64xbf16> to vector<8x8xbf16>
    %cst_20 = arith.constant dense<0.000000e+00> : vector<8x8xf32>
    %59 = tpu.matmul %56, %57, %cst_20 {dimension_numbers = #tpu.dot_dimension_numbers<[1], [1], [0], [0], [0, 0, 1, 0], [], []>} : vector<8x8xbf16>, vector<8x8xbf16>, vector<8x8xf32> -> vector<8x8xf32>
    %cst_21 = arith.constant 0.353553385 : f32
    %60 = vector.broadcast %cst_21 : f32 to vector<8x8xf32>
    %61 = arith.mulf %59, %60 : vector<8x8xf32>
    %cst_22 = arith.constant -1.000000e+09 : f32
    %62 = vector.broadcast %cst_22 : f32 to vector<8x8xf32>
    %63 = arith.select %15, %61, %62 : vector<8x8xi1>, vector<8x8xf32>
    %cst_23 = arith.constant dense<0xFF800000> : vector<8xf32>
    %64 = vector.multi_reduction <maximumf>, %63, %cst_23 [1] : vector<8x8xf32> to vector<8xf32>
    %65 = vector.shape_cast %64 : vector<8xf32> to vector<8x1xf32>
    %66 = vector.broadcast %65 : vector<8x1xf32> to vector<8x8xf32>
    %67 = arith.subf %63, %66 : vector<8x8xf32>
    %68 = math.exp %67 : vector<8x8xf32>
    %cst_24 = arith.constant dense<0.000000e+00> : vector<8xf32>
    %69 = vector.multi_reduction <add>, %68, %cst_24 [1] : vector<8x8xf32> to vector<8xf32>
    %70 = vector.shape_cast %69 : vector<8xf32> to vector<8x1xf32>
    %71 = tpu.reciprocal %70 {approx = true} : vector<8x1xf32> -> vector<8x1xf32>
    %72 = vector.broadcast %71 : vector<8x1xf32> to vector<8x8xf32>
    %73 = arith.mulf %68, %72 : vector<8x8xf32>
    %74 = arith.truncf %73 : vector<8x8xf32> to vector<8x8xbf16>
    %cst_25 = arith.constant dense<0.000000e+00> : vector<8x8xf32>
    %75 = tpu.matmul %74, %58, %cst_25 {dimension_numbers = #tpu.dot_dimension_numbers<[1], [0], [0], [1], [0, 0, 1, 1], [], []>} : vector<8x8xbf16>, vector<8x8xbf16>, vector<8x8xf32> -> vector<8x8xf32>
    %76 = vector.extract_strided_slice %2 {offsets = [0, 24], sizes = [8, 8], strides = [1, 1]} : vector<8x32xbf16> to vector<8x8xbf16>
    %77 = vector.extract_strided_slice %5 {offsets = [0, 24], sizes = [8, 8], strides = [1, 1]} : vector<8x64xbf16> to vector<8x8xbf16>
    %78 = vector.extract_strided_slice %5 {offsets = [0, 56], sizes = [8, 8], strides = [1, 1]} : vector<8x64xbf16> to vector<8x8xbf16>
    %cst_26 = arith.constant dense<0.000000e+00> : vector<8x8xf32>
    %79 = tpu.matmul %76, %77, %cst_26 {dimension_numbers = #tpu.dot_dimension_numbers<[1], [1], [0], [0], [0, 0, 1, 0], [], []>} : vector<8x8xbf16>, vector<8x8xbf16>, vector<8x8xf32> -> vector<8x8xf32>
    %cst_27 = arith.constant 0.353553385 : f32
    %80 = vector.broadcast %cst_27 : f32 to vector<8x8xf32>
    %81 = arith.mulf %79, %80 : vector<8x8xf32>
    %cst_28 = arith.constant -1.000000e+09 : f32
    %82 = vector.broadcast %cst_28 : f32 to vector<8x8xf32>
    %83 = arith.select %15, %81, %82 : vector<8x8xi1>, vector<8x8xf32>
    %cst_29 = arith.constant dense<0xFF800000> : vector<8xf32>
    %84 = vector.multi_reduction <maximumf>, %83, %cst_29 [1] : vector<8x8xf32> to vector<8xf32>
    %85 = vector.shape_cast %84 : vector<8xf32> to vector<8x1xf32>
    %86 = vector.broadcast %85 : vector<8x1xf32> to vector<8x8xf32>
    %87 = arith.subf %83, %86 : vector<8x8xf32>
    %88 = math.exp %87 : vector<8x8xf32>
    %cst_30 = arith.constant dense<0.000000e+00> : vector<8xf32>
    %89 = vector.multi_reduction <add>, %88, %cst_30 [1] : vector<8x8xf32> to vector<8xf32>
    %90 = vector.shape_cast %89 : vector<8xf32> to vector<8x1xf32>
    %91 = tpu.reciprocal %90 {approx = true} : vector<8x1xf32> -> vector<8x1xf32>
    %92 = vector.broadcast %91 : vector<8x1xf32> to vector<8x8xf32>
    %93 = arith.mulf %88, %92 : vector<8x8xf32>
    %94 = arith.truncf %93 : vector<8x8xf32> to vector<8x8xbf16>
    %cst_31 = arith.constant dense<0.000000e+00> : vector<8x8xf32>
    %95 = tpu.matmul %94, %78, %cst_31 {dimension_numbers = #tpu.dot_dimension_numbers<[1], [0], [0], [1], [0, 0, 1, 1], [], []>} : vector<8x8xbf16>, vector<8x8xbf16>, vector<8x8xf32> -> vector<8x8xf32>
    %96 = tpu.concatenate %35, %55, %75, %95 in 1 : vector<8x8xf32>, vector<8x8xf32>, vector<8x8xf32>, vector<8x8xf32> -> vector<8x32xf32>
    %c0_32 = arith.constant 0 : index
    %c0_33 = arith.constant 0 : index
    %c0_34 = arith.constant 0 : index
    %97 = vector.load %arg4[%c0_32, %c0_33, %c0_34] : memref<1x8x32xf32, #tpu.memory_space<vmem>>, vector<1x8x32xf32>
    %98 = vector.shape_cast %97 : vector<1x8x32xf32> to vector<8x32xf32>
    %99 = vector.shape_cast %96 : vector<8x32xf32> to vector<1x8x32xf32>
    tpu.vector_store %arg4[%c0_32, %c0_33, %c0_34], %99 {strides = array<i32>} : memref<1x8x32xf32, #tpu.memory_space<vmem>>, vector<1x8x32xf32>,
    return
  }
  func.func @transform_0(%arg0: i32) -> (i32, i32, i32) {
    %c0_i32 = arith.constant 0 : i32
    %c0_i32_0 = arith.constant 0 : i32
    %c0_i32_1 = arith.constant 0 : i32
    return %arg0, %c0_i32, %c0_i32_0 : i32, i32, i32
  }
  func.func @transform_1(%arg0: i32) -> (i32, i32, i32) {
    %c0_i32 = arith.constant 0 : i32
    %c0_i32_0 = arith.constant 0 : i32
    %c0_i32_1 = arith.constant 0 : i32
    return %arg0, %c0_i32, %c0_i32_0 : i32, i32, i32
  }
  func.func @transform_2(%arg0: i32) -> (i32, i32, i32) {
    %c0_i32 = arith.constant 0 : i32
    %c0_i32_0 = arith.constant 0 : i32
    %c0_i32_1 = arith.constant 0 : i32
    return %arg0, %c0_i32, %c0_i32_0 : i32, i32, i32
  }
  func.func @transform_3(%arg0: i32) -> (i32, i32, i32) {
    %c0_i32 = arith.constant 0 : i32
    %c0_i32_0 = arith.constant 0 : i32
    %c0_i32_1 = arith.constant 0 : i32
    return %arg0, %c0_i32, %c0_i32_0 : i32, i32, i32
  }
}

module attributes {stable_mosaic.version = 11 : i64} {
  func.func @_linear_res_ln_kernel(%arg0: i32, %arg1: memref<16x32xf32, #tpu.memory_space<vmem>>, %arg2: memref<32x32xbf16, #tpu.memory_space<vmem>>, %arg3: memref<1x32xf32, #tpu.memory_space<vmem>>, %arg4: memref<16x32xf32, #tpu.memory_space<vmem>>, %arg5: memref<1x32xf32, #tpu.memory_space<vmem>>, %arg6: memref<1x32xf32, #tpu.memory_space<vmem>>, %arg7: memref<16x32xf32, #tpu.memory_space<vmem>>) attributes {dimension_semantics = [#tpu.dimension_semantics<parallel>], iteration_bounds = array<i64: 1>, scalar_prefetch = 0 : i64, scratch_operands = 0 : i64, tpu.core_type = #tpu.core_type<tc>, window_params = [{transform_indices = @transform_0, window_bounds = array<i64: 16, 32>}, {pipeline_mode = #tpu.pipeline_mode<synchronous>, transform_indices = @transform_1, window_bounds = array<i64: 32, 32>}, {pipeline_mode = #tpu.pipeline_mode<synchronous>, transform_indices = @transform_2, window_bounds = array<i64: 1, 32>}, {transform_indices = @transform_3, window_bounds = array<i64: 16, 32>}, {pipeline_mode = #tpu.pipeline_mode<synchronous>, transform_indices = @transform_4, window_bounds = array<i64: 1, 32>}, {pipeline_mode = #tpu.pipeline_mode<synchronous>, transform_indices = @transform_5, window_bounds = array<i64: 1, 32>}, {transform_indices = @transform_6, window_bounds = array<i64: 16, 32>}]} {
    %c0 = arith.constant 0 : index
    %c0_0 = arith.constant 0 : index
    %0 = vector.load %arg1[%c0, %c0_0] : memref<16x32xf32, #tpu.memory_space<vmem>>, vector<16x32xf32>
    %1 = arith.truncf %0 : vector<16x32xf32> to vector<16x32xbf16>
    %c0_1 = arith.constant 0 : index
    %c0_2 = arith.constant 0 : index
    %2 = vector.load %arg2[%c0_1, %c0_2] : memref<32x32xbf16, #tpu.memory_space<vmem>>, vector<32x32xbf16>
    %cst = arith.constant dense<0.000000e+00> : vector<16x32xf32>
    %3 = tpu.matmul %1, %2, %cst {dimension_numbers = #tpu.dot_dimension_numbers<[1], [0], [0], [1], [0, 0, 1, 1], [], []>} : vector<16x32xbf16>, vector<32x32xbf16>, vector<16x32xf32> -> vector<16x32xf32>
    %c0_3 = arith.constant 0 : index
    %c0_4 = arith.constant 0 : index
    %4 = vector.load %arg3[%c0_3, %c0_4] : memref<1x32xf32, #tpu.memory_space<vmem>>, vector<1x32xf32>
    %5 = vector.broadcast %4 : vector<1x32xf32> to vector<16x32xf32>
    %6 = arith.addf %3, %5 : vector<16x32xf32>
    %c0_5 = arith.constant 0 : index
    %c0_6 = arith.constant 0 : index
    %7 = vector.load %arg4[%c0_5, %c0_6] : memref<16x32xf32, #tpu.memory_space<vmem>>, vector<16x32xf32>
    %8 = arith.addf %6, %7 : vector<16x32xf32>
    %cst_7 = arith.constant dense<0.000000e+00> : vector<16xf32>
    %9 = vector.multi_reduction <add>, %8, %cst_7 [1] : vector<16x32xf32> to vector<16xf32>
    %10 = vector.shape_cast %9 : vector<16xf32> to vector<16x1xf32>
    %cst_8 = arith.constant 3.200000e+01 : f32
    %11 = vector.broadcast %cst_8 : f32 to vector<16x1xf32>
    %12 = arith.divf %10, %11 : vector<16x1xf32>
    %13 = vector.broadcast %12 : vector<16x1xf32> to vector<16x32xf32>
    %14 = arith.subf %8, %13 : vector<16x32xf32>
    %15 = arith.mulf %14, %14 : vector<16x32xf32>
    %cst_9 = arith.constant dense<0.000000e+00> : vector<16xf32>
    %16 = vector.multi_reduction <add>, %15, %cst_9 [1] : vector<16x32xf32> to vector<16xf32>
    %17 = vector.shape_cast %16 : vector<16xf32> to vector<16x1xf32>
    %cst_10 = arith.constant 3.200000e+01 : f32
    %18 = vector.broadcast %cst_10 : f32 to vector<16x1xf32>
    %19 = arith.divf %17, %18 : vector<16x1xf32>
    %20 = vector.broadcast %12 : vector<16x1xf32> to vector<16x32xf32>
    %21 = arith.subf %8, %20 : vector<16x32xf32>
    %cst_11 = arith.constant 9.99999974E-6 : f32
    %22 = vector.broadcast %cst_11 : f32 to vector<16x1xf32>
    %23 = arith.addf %19, %22 : vector<16x1xf32>
    %24 = math.rsqrt %23 : vector<16x1xf32>
    %25 = vector.broadcast %24 : vector<16x1xf32> to vector<16x32xf32>
    %26 = arith.mulf %21, %25 : vector<16x32xf32>
    %c0_12 = arith.constant 0 : index
    %c0_13 = arith.constant 0 : index
    %27 = vector.load %arg5[%c0_12, %c0_13] : memref<1x32xf32, #tpu.memory_space<vmem>>, vector<1x32xf32>
    %28 = vector.broadcast %27 : vector<1x32xf32> to vector<16x32xf32>
    %29 = arith.mulf %26, %28 : vector<16x32xf32>
    %c0_14 = arith.constant 0 : index
    %c0_15 = arith.constant 0 : index
    %30 = vector.load %arg6[%c0_14, %c0_15] : memref<1x32xf32, #tpu.memory_space<vmem>>, vector<1x32xf32>
    %31 = vector.broadcast %30 : vector<1x32xf32> to vector<16x32xf32>
    %32 = arith.addf %29, %31 : vector<16x32xf32>
    %c0_16 = arith.constant 0 : index
    %c0_17 = arith.constant 0 : index
    %33 = vector.load %arg7[%c0_16, %c0_17] : memref<16x32xf32, #tpu.memory_space<vmem>>, vector<16x32xf32>
    tpu.vector_store %arg7[%c0_16, %c0_17], %32 {strides = array<i32>} : memref<16x32xf32, #tpu.memory_space<vmem>>, vector<16x32xf32>,
    return
  }
  func.func @transform_0(%arg0: i32) -> (i32, i32) {
    %c0_i32 = arith.constant 0 : i32
    %c0_i32_0 = arith.constant 0 : i32
    return %arg0, %c0_i32 : i32, i32
  }
  func.func @transform_1(%arg0: i32) -> (i32, i32) {
    %c0_i32 = arith.constant 0 : i32
    %c0_i32_0 = arith.constant 0 : i32
    %c0_i32_1 = arith.constant 0 : i32
    return %c0_i32, %c0_i32_0 : i32, i32
  }
  func.func @transform_2(%arg0: i32) -> (i32, i32) {
    %c0_i32 = arith.constant 0 : i32
    %c0_i32_0 = arith.constant 0 : i32
    %c0_i32_1 = arith.constant 0 : i32
    return %c0_i32, %c0_i32_0 : i32, i32
  }
  func.func @transform_3(%arg0: i32) -> (i32, i32) {
    %c0_i32 = arith.constant 0 : i32
    %c0_i32_0 = arith.constant 0 : i32
    return %arg0, %c0_i32 : i32, i32
  }
  func.func @transform_4(%arg0: i32) -> (i32, i32) {
    %c0_i32 = arith.constant 0 : i32
    %c0_i32_0 = arith.constant 0 : i32
    %c0_i32_1 = arith.constant 0 : i32
    return %c0_i32, %c0_i32_0 : i32, i32
  }
  func.func @transform_5(%arg0: i32) -> (i32, i32) {
    %c0_i32 = arith.constant 0 : i32
    %c0_i32_0 = arith.constant 0 : i32
    %c0_i32_1 = arith.constant 0 : i32
    return %c0_i32, %c0_i32_0 : i32, i32
  }
  func.func @transform_6(%arg0: i32) -> (i32, i32) {
    %c0_i32 = arith.constant 0 : i32
    %c0_i32_0 = arith.constant 0 : i32
    return %arg0, %c0_i32 : i32, i32
  }
}

module attributes {stable_mosaic.version = 11 : i64} {
  func.func @_linear_split_kernel(%arg0: i32, %arg1: memref<16x32xf32, #tpu.memory_space<vmem>>, %arg2: memref<32x64xbf16, #tpu.memory_space<vmem>>, %arg3: memref<1x64xf32, #tpu.memory_space<vmem>>, %arg4: memref<16x64xf32, #tpu.memory_space<vmem>>) attributes {dimension_semantics = [#tpu.dimension_semantics<parallel>], iteration_bounds = array<i64: 1>, scalar_prefetch = 0 : i64, scratch_operands = 0 : i64, tpu.core_type = #tpu.core_type<tc>, window_params = [{transform_indices = @transform_0, window_bounds = array<i64: 16, 32>}, {pipeline_mode = #tpu.pipeline_mode<synchronous>, transform_indices = @transform_1, window_bounds = array<i64: 32, 64>}, {pipeline_mode = #tpu.pipeline_mode<synchronous>, transform_indices = @transform_2, window_bounds = array<i64: 1, 64>}, {transform_indices = @transform_3, window_bounds = array<i64: 16, 64>}]} {
    %c0 = arith.constant 0 : index
    %c0_0 = arith.constant 0 : index
    %0 = vector.load %arg1[%c0, %c0_0] : memref<16x32xf32, #tpu.memory_space<vmem>>, vector<16x32xf32>
    %1 = arith.truncf %0 : vector<16x32xf32> to vector<16x32xbf16>
    %c0_1 = arith.constant 0 : index
    %c0_2 = arith.constant 0 : index
    %2 = vector.load %arg2[%c0_1, %c0_2] : memref<32x64xbf16, #tpu.memory_space<vmem>>, vector<32x64xbf16>
    %cst = arith.constant dense<0.000000e+00> : vector<16x64xf32>
    %3 = tpu.matmul %1, %2, %cst {dimension_numbers = #tpu.dot_dimension_numbers<[1], [0], [0], [1], [0, 0, 1, 1], [], []>} : vector<16x32xbf16>, vector<32x64xbf16>, vector<16x64xf32> -> vector<16x64xf32>
    %c0_3 = arith.constant 0 : index
    %c0_4 = arith.constant 0 : index
    %4 = vector.load %arg3[%c0_3, %c0_4] : memref<1x64xf32, #tpu.memory_space<vmem>>, vector<1x64xf32>
    %5 = vector.broadcast %4 : vector<1x64xf32> to vector<16x64xf32>
    %6 = arith.addf %3, %5 : vector<16x64xf32>
    %c0_5 = arith.constant 0 : index
    %c0_6 = arith.constant 0 : index
    %7 = vector.load %arg4[%c0_5, %c0_6] : memref<16x64xf32, #tpu.memory_space<vmem>>, vector<16x64xf32>
    tpu.vector_store %arg4[%c0_5, %c0_6], %6 {strides = array<i32>} : memref<16x64xf32, #tpu.memory_space<vmem>>, vector<16x64xf32>,
    return
  }
  func.func @transform_0(%arg0: i32) -> (i32, i32) {
    %c0_i32 = arith.constant 0 : i32
    %c0_i32_0 = arith.constant 0 : i32
    return %arg0, %c0_i32 : i32, i32
  }
  func.func @transform_1(%arg0: i32) -> (i32, i32) {
    %c0_i32 = arith.constant 0 : i32
    %c0_i32_0 = arith.constant 0 : i32
    %c0_i32_1 = arith.constant 0 : i32
    return %c0_i32, %c0_i32_0 : i32, i32
  }
  func.func @transform_2(%arg0: i32) -> (i32, i32) {
    %c0_i32 = arith.constant 0 : i32
    %c0_i32_0 = arith.constant 0 : i32
    %c0_i32_1 = arith.constant 0 : i32
    return %c0_i32, %c0_i32_0 : i32, i32
  }
  func.func @transform_3(%arg0: i32) -> (i32, i32) {
    %c0_i32 = arith.constant 0 : i32
    %c0_i32_0 = arith.constant 0 : i32
    return %arg0, %c0_i32 : i32, i32
  }
}

module attributes {stable_mosaic.version = 11 : i64} {
  func.func @_linear_split_kernel(%arg0: i32, %arg1: memref<16x32xf32, #tpu.memory_space<vmem>>, %arg2: memref<32x32xbf16, #tpu.memory_space<vmem>>, %arg3: memref<1x32xf32, #tpu.memory_space<vmem>>, %arg4: memref<16x32xf32, #tpu.memory_space<vmem>>) attributes {dimension_semantics = [#tpu.dimension_semantics<parallel>], iteration_bounds = array<i64: 1>, scalar_prefetch = 0 : i64, scratch_operands = 0 : i64, tpu.core_type = #tpu.core_type<tc>, window_params = [{transform_indices = @transform_0, window_bounds = array<i64: 16, 32>}, {pipeline_mode = #tpu.pipeline_mode<synchronous>, transform_indices = @transform_1, window_bounds = array<i64: 32, 32>}, {pipeline_mode = #tpu.pipeline_mode<synchronous>, transform_indices = @transform_2, window_bounds = array<i64: 1, 32>}, {transform_indices = @transform_3, window_bounds = array<i64: 16, 32>}]} {
    %c0 = arith.constant 0 : index
    %c0_0 = arith.constant 0 : index
    %0 = vector.load %arg1[%c0, %c0_0] : memref<16x32xf32, #tpu.memory_space<vmem>>, vector<16x32xf32>
    %1 = arith.truncf %0 : vector<16x32xf32> to vector<16x32xbf16>
    %c0_1 = arith.constant 0 : index
    %c0_2 = arith.constant 0 : index
    %2 = vector.load %arg2[%c0_1, %c0_2] : memref<32x32xbf16, #tpu.memory_space<vmem>>, vector<32x32xbf16>
    %cst = arith.constant dense<0.000000e+00> : vector<16x32xf32>
    %3 = tpu.matmul %1, %2, %cst {dimension_numbers = #tpu.dot_dimension_numbers<[1], [0], [0], [1], [0, 0, 1, 1], [], []>} : vector<16x32xbf16>, vector<32x32xbf16>, vector<16x32xf32> -> vector<16x32xf32>
    %c0_3 = arith.constant 0 : index
    %c0_4 = arith.constant 0 : index
    %4 = vector.load %arg3[%c0_3, %c0_4] : memref<1x32xf32, #tpu.memory_space<vmem>>, vector<1x32xf32>
    %5 = vector.broadcast %4 : vector<1x32xf32> to vector<16x32xf32>
    %6 = arith.addf %3, %5 : vector<16x32xf32>
    %c0_5 = arith.constant 0 : index
    %c0_6 = arith.constant 0 : index
    %7 = vector.load %arg4[%c0_5, %c0_6] : memref<16x32xf32, #tpu.memory_space<vmem>>, vector<16x32xf32>
    tpu.vector_store %arg4[%c0_5, %c0_6], %6 {strides = array<i32>} : memref<16x32xf32, #tpu.memory_space<vmem>>, vector<16x32xf32>,
    return
  }
  func.func @transform_0(%arg0: i32) -> (i32, i32) {
    %c0_i32 = arith.constant 0 : i32
    %c0_i32_0 = arith.constant 0 : i32
    return %arg0, %c0_i32 : i32, i32
  }
  func.func @transform_1(%arg0: i32) -> (i32, i32) {
    %c0_i32 = arith.constant 0 : i32
    %c0_i32_0 = arith.constant 0 : i32
    %c0_i32_1 = arith.constant 0 : i32
    return %c0_i32, %c0_i32_0 : i32, i32
  }
  func.func @transform_2(%arg0: i32) -> (i32, i32) {
    %c0_i32 = arith.constant 0 : i32
    %c0_i32_0 = arith.constant 0 : i32
    %c0_i32_1 = arith.constant 0 : i32
    return %c0_i32, %c0_i32_0 : i32, i32
  }
  func.func @transform_3(%arg0: i32) -> (i32, i32) {
    %c0_i32 = arith.constant 0 : i32
    %c0_i32_0 = arith.constant 0 : i32
    return %arg0, %c0_i32 : i32, i32
  }
}

module attributes {stable_mosaic.version = 11 : i64} {
  func.func @_linear_res_ln_kernel(%arg0: i32, %arg1: memref<16x32xf32, #tpu.memory_space<vmem>>, %arg2: memref<32x32xbf16, #tpu.memory_space<vmem>>, %arg3: memref<1x32xf32, #tpu.memory_space<vmem>>, %arg4: memref<16x32xf32, #tpu.memory_space<vmem>>, %arg5: memref<1x32xf32, #tpu.memory_space<vmem>>, %arg6: memref<1x32xf32, #tpu.memory_space<vmem>>, %arg7: memref<16x32xf32, #tpu.memory_space<vmem>>) attributes {dimension_semantics = [#tpu.dimension_semantics<parallel>], iteration_bounds = array<i64: 1>, scalar_prefetch = 0 : i64, scratch_operands = 0 : i64, tpu.core_type = #tpu.core_type<tc>, window_params = [{transform_indices = @transform_0, window_bounds = array<i64: 16, 32>}, {pipeline_mode = #tpu.pipeline_mode<synchronous>, transform_indices = @transform_1, window_bounds = array<i64: 32, 32>}, {pipeline_mode = #tpu.pipeline_mode<synchronous>, transform_indices = @transform_2, window_bounds = array<i64: 1, 32>}, {transform_indices = @transform_3, window_bounds = array<i64: 16, 32>}, {pipeline_mode = #tpu.pipeline_mode<synchronous>, transform_indices = @transform_4, window_bounds = array<i64: 1, 32>}, {pipeline_mode = #tpu.pipeline_mode<synchronous>, transform_indices = @transform_5, window_bounds = array<i64: 1, 32>}, {transform_indices = @transform_6, window_bounds = array<i64: 16, 32>}]} {
    %c0 = arith.constant 0 : index
    %c0_0 = arith.constant 0 : index
    %0 = vector.load %arg1[%c0, %c0_0] : memref<16x32xf32, #tpu.memory_space<vmem>>, vector<16x32xf32>
    %1 = arith.truncf %0 : vector<16x32xf32> to vector<16x32xbf16>
    %c0_1 = arith.constant 0 : index
    %c0_2 = arith.constant 0 : index
    %2 = vector.load %arg2[%c0_1, %c0_2] : memref<32x32xbf16, #tpu.memory_space<vmem>>, vector<32x32xbf16>
    %cst = arith.constant dense<0.000000e+00> : vector<16x32xf32>
    %3 = tpu.matmul %1, %2, %cst {dimension_numbers = #tpu.dot_dimension_numbers<[1], [0], [0], [1], [0, 0, 1, 1], [], []>} : vector<16x32xbf16>, vector<32x32xbf16>, vector<16x32xf32> -> vector<16x32xf32>
    %c0_3 = arith.constant 0 : index
    %c0_4 = arith.constant 0 : index
    %4 = vector.load %arg3[%c0_3, %c0_4] : memref<1x32xf32, #tpu.memory_space<vmem>>, vector<1x32xf32>
    %5 = vector.broadcast %4 : vector<1x32xf32> to vector<16x32xf32>
    %6 = arith.addf %3, %5 : vector<16x32xf32>
    %c0_5 = arith.constant 0 : index
    %c0_6 = arith.constant 0 : index
    %7 = vector.load %arg4[%c0_5, %c0_6] : memref<16x32xf32, #tpu.memory_space<vmem>>, vector<16x32xf32>
    %8 = arith.addf %6, %7 : vector<16x32xf32>
    %cst_7 = arith.constant dense<0.000000e+00> : vector<16xf32>
    %9 = vector.multi_reduction <add>, %8, %cst_7 [1] : vector<16x32xf32> to vector<16xf32>
    %10 = vector.shape_cast %9 : vector<16xf32> to vector<16x1xf32>
    %cst_8 = arith.constant 3.200000e+01 : f32
    %11 = vector.broadcast %cst_8 : f32 to vector<16x1xf32>
    %12 = arith.divf %10, %11 : vector<16x1xf32>
    %13 = vector.broadcast %12 : vector<16x1xf32> to vector<16x32xf32>
    %14 = arith.subf %8, %13 : vector<16x32xf32>
    %15 = arith.mulf %14, %14 : vector<16x32xf32>
    %cst_9 = arith.constant dense<0.000000e+00> : vector<16xf32>
    %16 = vector.multi_reduction <add>, %15, %cst_9 [1] : vector<16x32xf32> to vector<16xf32>
    %17 = vector.shape_cast %16 : vector<16xf32> to vector<16x1xf32>
    %cst_10 = arith.constant 3.200000e+01 : f32
    %18 = vector.broadcast %cst_10 : f32 to vector<16x1xf32>
    %19 = arith.divf %17, %18 : vector<16x1xf32>
    %20 = vector.broadcast %12 : vector<16x1xf32> to vector<16x32xf32>
    %21 = arith.subf %8, %20 : vector<16x32xf32>
    %cst_11 = arith.constant 9.99999974E-6 : f32
    %22 = vector.broadcast %cst_11 : f32 to vector<16x1xf32>
    %23 = arith.addf %19, %22 : vector<16x1xf32>
    %24 = math.rsqrt %23 : vector<16x1xf32>
    %25 = vector.broadcast %24 : vector<16x1xf32> to vector<16x32xf32>
    %26 = arith.mulf %21, %25 : vector<16x32xf32>
    %c0_12 = arith.constant 0 : index
    %c0_13 = arith.constant 0 : index
    %27 = vector.load %arg5[%c0_12, %c0_13] : memref<1x32xf32, #tpu.memory_space<vmem>>, vector<1x32xf32>
    %28 = vector.broadcast %27 : vector<1x32xf32> to vector<16x32xf32>
    %29 = arith.mulf %26, %28 : vector<16x32xf32>
    %c0_14 = arith.constant 0 : index
    %c0_15 = arith.constant 0 : index
    %30 = vector.load %arg6[%c0_14, %c0_15] : memref<1x32xf32, #tpu.memory_space<vmem>>, vector<1x32xf32>
    %31 = vector.broadcast %30 : vector<1x32xf32> to vector<16x32xf32>
    %32 = arith.addf %29, %31 : vector<16x32xf32>
    %c0_16 = arith.constant 0 : index
    %c0_17 = arith.constant 0 : index
    %33 = vector.load %arg7[%c0_16, %c0_17] : memref<16x32xf32, #tpu.memory_space<vmem>>, vector<16x32xf32>
    tpu.vector_store %arg7[%c0_16, %c0_17], %32 {strides = array<i32>} : memref<16x32xf32, #tpu.memory_space<vmem>>, vector<16x32xf32>,
    return
  }
  func.func @transform_0(%arg0: i32) -> (i32, i32) {
    %c0_i32 = arith.constant 0 : i32
    %c0_i32_0 = arith.constant 0 : i32
    return %arg0, %c0_i32 : i32, i32
  }
  func.func @transform_1(%arg0: i32) -> (i32, i32) {
    %c0_i32 = arith.constant 0 : i32
    %c0_i32_0 = arith.constant 0 : i32
    %c0_i32_1 = arith.constant 0 : i32
    return %c0_i32, %c0_i32_0 : i32, i32
  }
  func.func @transform_2(%arg0: i32) -> (i32, i32) {
    %c0_i32 = arith.constant 0 : i32
    %c0_i32_0 = arith.constant 0 : i32
    %c0_i32_1 = arith.constant 0 : i32
    return %c0_i32, %c0_i32_0 : i32, i32
  }
  func.func @transform_3(%arg0: i32) -> (i32, i32) {
    %c0_i32 = arith.constant 0 : i32
    %c0_i32_0 = arith.constant 0 : i32
    return %arg0, %c0_i32 : i32, i32
  }
  func.func @transform_4(%arg0: i32) -> (i32, i32) {
    %c0_i32 = arith.constant 0 : i32
    %c0_i32_0 = arith.constant 0 : i32
    %c0_i32_1 = arith.constant 0 : i32
    return %c0_i32, %c0_i32_0 : i32, i32
  }
  func.func @transform_5(%arg0: i32) -> (i32, i32) {
    %c0_i32 = arith.constant 0 : i32
    %c0_i32_0 = arith.constant 0 : i32
    %c0_i32_1 = arith.constant 0 : i32
    return %c0_i32, %c0_i32_0 : i32, i32
  }
  func.func @transform_6(%arg0: i32) -> (i32, i32) {
    %c0_i32 = arith.constant 0 : i32
    %c0_i32_0 = arith.constant 0 : i32
    return %arg0, %c0_i32 : i32, i32
  }
}

module attributes {stable_mosaic.version = 11 : i64} {
  func.func @_ffn_res_ln_kernel(%arg0: i32, %arg1: memref<16x32xf32, #tpu.memory_space<vmem>>, %arg2: memref<32x64xbf16, #tpu.memory_space<vmem>>, %arg3: memref<1x64xf32, #tpu.memory_space<vmem>>, %arg4: memref<64x32xbf16, #tpu.memory_space<vmem>>, %arg5: memref<1x32xf32, #tpu.memory_space<vmem>>, %arg6: memref<1x32xf32, #tpu.memory_space<vmem>>, %arg7: memref<1x32xf32, #tpu.memory_space<vmem>>, %arg8: memref<16x32xf32, #tpu.memory_space<vmem>>) attributes {dimension_semantics = [#tpu.dimension_semantics<parallel>], iteration_bounds = array<i64: 1>, scalar_prefetch = 0 : i64, scratch_operands = 0 : i64, tpu.core_type = #tpu.core_type<tc>, window_params = [{transform_indices = @transform_0, window_bounds = array<i64: 16, 32>}, {pipeline_mode = #tpu.pipeline_mode<synchronous>, transform_indices = @transform_1, window_bounds = array<i64: 32, 64>}, {pipeline_mode = #tpu.pipeline_mode<synchronous>, transform_indices = @transform_2, window_bounds = array<i64: 1, 64>}, {pipeline_mode = #tpu.pipeline_mode<synchronous>, transform_indices = @transform_3, window_bounds = array<i64: 64, 32>}, {pipeline_mode = #tpu.pipeline_mode<synchronous>, transform_indices = @transform_4, window_bounds = array<i64: 1, 32>}, {pipeline_mode = #tpu.pipeline_mode<synchronous>, transform_indices = @transform_5, window_bounds = array<i64: 1, 32>}, {pipeline_mode = #tpu.pipeline_mode<synchronous>, transform_indices = @transform_6, window_bounds = array<i64: 1, 32>}, {transform_indices = @transform_7, window_bounds = array<i64: 16, 32>}]} {
    %c0 = arith.constant 0 : index
    %c0_0 = arith.constant 0 : index
    %0 = vector.load %arg1[%c0, %c0_0] : memref<16x32xf32, #tpu.memory_space<vmem>>, vector<16x32xf32>
    %1 = arith.truncf %0 : vector<16x32xf32> to vector<16x32xbf16>
    %c0_1 = arith.constant 0 : index
    %c0_2 = arith.constant 0 : index
    %2 = vector.load %arg2[%c0_1, %c0_2] : memref<32x64xbf16, #tpu.memory_space<vmem>>, vector<32x64xbf16>
    %cst = arith.constant dense<0.000000e+00> : vector<16x64xf32>
    %3 = tpu.matmul %1, %2, %cst {dimension_numbers = #tpu.dot_dimension_numbers<[1], [0], [0], [1], [0, 0, 1, 1], [], []>} : vector<16x32xbf16>, vector<32x64xbf16>, vector<16x64xf32> -> vector<16x64xf32>
    %c0_3 = arith.constant 0 : index
    %c0_4 = arith.constant 0 : index
    %4 = vector.load %arg3[%c0_3, %c0_4] : memref<1x64xf32, #tpu.memory_space<vmem>>, vector<1x64xf32>
    %5 = vector.broadcast %4 : vector<1x64xf32> to vector<16x64xf32>
    %6 = arith.addf %3, %5 : vector<16x64xf32>
    %cst_5 = arith.constant 0.000000e+00 : f32
    %7 = vector.broadcast %cst_5 : f32 to vector<16x64xf32>
    %8 = arith.maximumf %6, %7 : vector<16x64xf32>
    %9 = arith.truncf %8 : vector<16x64xf32> to vector<16x64xbf16>
    %c0_6 = arith.constant 0 : index
    %c0_7 = arith.constant 0 : index
    %10 = vector.load %arg4[%c0_6, %c0_7] : memref<64x32xbf16, #tpu.memory_space<vmem>>, vector<64x32xbf16>
    %cst_8 = arith.constant dense<0.000000e+00> : vector<16x32xf32>
    %11 = tpu.matmul %9, %10, %cst_8 {dimension_numbers = #tpu.dot_dimension_numbers<[1], [0], [0], [1], [0, 0, 1, 1], [], []>} : vector<16x64xbf16>, vector<64x32xbf16>, vector<16x32xf32> -> vector<16x32xf32>
    %c0_9 = arith.constant 0 : index
    %c0_10 = arith.constant 0 : index
    %12 = vector.load %arg5[%c0_9, %c0_10] : memref<1x32xf32, #tpu.memory_space<vmem>>, vector<1x32xf32>
    %13 = vector.broadcast %12 : vector<1x32xf32> to vector<16x32xf32>
    %14 = arith.addf %11, %13 : vector<16x32xf32>
    %15 = arith.addf %14, %0 : vector<16x32xf32>
    %cst_11 = arith.constant dense<0.000000e+00> : vector<16xf32>
    %16 = vector.multi_reduction <add>, %15, %cst_11 [1] : vector<16x32xf32> to vector<16xf32>
    %17 = vector.shape_cast %16 : vector<16xf32> to vector<16x1xf32>
    %cst_12 = arith.constant 3.200000e+01 : f32
    %18 = vector.broadcast %cst_12 : f32 to vector<16x1xf32>
    %19 = arith.divf %17, %18 : vector<16x1xf32>
    %20 = vector.broadcast %19 : vector<16x1xf32> to vector<16x32xf32>
    %21 = arith.subf %15, %20 : vector<16x32xf32>
    %22 = arith.mulf %21, %21 : vector<16x32xf32>
    %cst_13 = arith.constant dense<0.000000e+00> : vector<16xf32>
    %23 = vector.multi_reduction <add>, %22, %cst_13 [1] : vector<16x32xf32> to vector<16xf32>
    %24 = vector.shape_cast %23 : vector<16xf32> to vector<16x1xf32>
    %cst_14 = arith.constant 3.200000e+01 : f32
    %25 = vector.broadcast %cst_14 : f32 to vector<16x1xf32>
    %26 = arith.divf %24, %25 : vector<16x1xf32>
    %27 = vector.broadcast %19 : vector<16x1xf32> to vector<16x32xf32>
    %28 = arith.subf %15, %27 : vector<16x32xf32>
    %cst_15 = arith.constant 9.99999974E-6 : f32
    %29 = vector.broadcast %cst_15 : f32 to vector<16x1xf32>
    %30 = arith.addf %26, %29 : vector<16x1xf32>
    %31 = math.rsqrt %30 : vector<16x1xf32>
    %32 = vector.broadcast %31 : vector<16x1xf32> to vector<16x32xf32>
    %33 = arith.mulf %28, %32 : vector<16x32xf32>
    %c0_16 = arith.constant 0 : index
    %c0_17 = arith.constant 0 : index
    %34 = vector.load %arg6[%c0_16, %c0_17] : memref<1x32xf32, #tpu.memory_space<vmem>>, vector<1x32xf32>
    %35 = vector.broadcast %34 : vector<1x32xf32> to vector<16x32xf32>
    %36 = arith.mulf %33, %35 : vector<16x32xf32>
    %c0_18 = arith.constant 0 : index
    %c0_19 = arith.constant 0 : index
    %37 = vector.load %arg7[%c0_18, %c0_19] : memref<1x32xf32, #tpu.memory_space<vmem>>, vector<1x32xf32>
    %38 = vector.broadcast %37 : vector<1x32xf32> to vector<16x32xf32>
    %39 = arith.addf %36, %38 : vector<16x32xf32>
    %c0_20 = arith.constant 0 : index
    %c0_21 = arith.constant 0 : index
    %40 = vector.load %arg8[%c0_20, %c0_21] : memref<16x32xf32, #tpu.memory_space<vmem>>, vector<16x32xf32>
    tpu.vector_store %arg8[%c0_20, %c0_21], %39 {strides = array<i32>} : memref<16x32xf32, #tpu.memory_space<vmem>>, vector<16x32xf32>,
    return
  }
  func.func @transform_0(%arg0: i32) -> (i32, i32) {
    %c0_i32 = arith.constant 0 : i32
    %c0_i32_0 = arith.constant 0 : i32
    return %arg0, %c0_i32 : i32, i32
  }
  func.func @transform_1(%arg0: i32) -> (i32, i32) {
    %c0_i32 = arith.constant 0 : i32
    %c0_i32_0 = arith.constant 0 : i32
    %c0_i32_1 = arith.constant 0 : i32
    return %c0_i32, %c0_i32_0 : i32, i32
  }
  func.func @transform_2(%arg0: i32) -> (i32, i32) {
    %c0_i32 = arith.constant 0 : i32
    %c0_i32_0 = arith.constant 0 : i32
    %c0_i32_1 = arith.constant 0 : i32
    return %c0_i32, %c0_i32_0 : i32, i32
  }
  func.func @transform_3(%arg0: i32) -> (i32, i32) {
    %c0_i32 = arith.constant 0 : i32
    %c0_i32_0 = arith.constant 0 : i32
    %c0_i32_1 = arith.constant 0 : i32
    return %c0_i32, %c0_i32_0 : i32, i32
  }
  func.func @transform_4(%arg0: i32) -> (i32, i32) {
    %c0_i32 = arith.constant 0 : i32
    %c0_i32_0 = arith.constant 0 : i32
    %c0_i32_1 = arith.constant 0 : i32
    return %c0_i32, %c0_i32_0 : i32, i32
  }
  func.func @transform_5(%arg0: i32) -> (i32, i32) {
    %c0_i32 = arith.constant 0 : i32
    %c0_i32_0 = arith.constant 0 : i32
    %c0_i32_1 = arith.constant 0 : i32
    return %c0_i32, %c0_i32_0 : i32, i32
  }
  func.func @transform_6(%arg0: i32) -> (i32, i32) {
    %c0_i32 = arith.constant 0 : i32
    %c0_i32_0 = arith.constant 0 : i32
    %c0_i32_1 = arith.constant 0 : i32
    return %c0_i32, %c0_i32_0 : i32, i32
  }
  func.func @transform_7(%arg0: i32) -> (i32, i32) {
    %c0_i32 = arith.constant 0 : i32
    %c0_i32_0 = arith.constant 0 : i32
    return %arg0, %c0_i32 : i32, i32
  }
}

module attributes {stable_mosaic.version = 11 : i64} {
  func.func @_linear_split_kernel(%arg0: i32, %arg1: memref<16x32xf32, #tpu.memory_space<vmem>>, %arg2: memref<32x96xbf16, #tpu.memory_space<vmem>>, %arg3: memref<1x96xf32, #tpu.memory_space<vmem>>, %arg4: memref<16x32xf32, #tpu.memory_space<vmem>>, %arg5: memref<16x64xf32, #tpu.memory_space<vmem>>) attributes {dimension_semantics = [#tpu.dimension_semantics<parallel>], iteration_bounds = array<i64: 1>, scalar_prefetch = 0 : i64, scratch_operands = 0 : i64, tpu.core_type = #tpu.core_type<tc>, window_params = [{transform_indices = @transform_0, window_bounds = array<i64: 16, 32>}, {pipeline_mode = #tpu.pipeline_mode<synchronous>, transform_indices = @transform_1, window_bounds = array<i64: 32, 96>}, {pipeline_mode = #tpu.pipeline_mode<synchronous>, transform_indices = @transform_2, window_bounds = array<i64: 1, 96>}, {transform_indices = @transform_3, window_bounds = array<i64: 16, 32>}, {transform_indices = @transform_4, window_bounds = array<i64: 16, 64>}]} {
    %c0 = arith.constant 0 : index
    %c0_0 = arith.constant 0 : index
    %0 = vector.load %arg1[%c0, %c0_0] : memref<16x32xf32, #tpu.memory_space<vmem>>, vector<16x32xf32>
    %1 = arith.truncf %0 : vector<16x32xf32> to vector<16x32xbf16>
    %c0_1 = arith.constant 0 : index
    %c0_2 = arith.constant 0 : index
    %2 = vector.load %arg2[%c0_1, %c0_2] : memref<32x96xbf16, #tpu.memory_space<vmem>>, vector<32x96xbf16>
    %cst = arith.constant dense<0.000000e+00> : vector<16x96xf32>
    %3 = tpu.matmul %1, %2, %cst {dimension_numbers = #tpu.dot_dimension_numbers<[1], [0], [0], [1], [0, 0, 1, 1], [], []>} : vector<16x32xbf16>, vector<32x96xbf16>, vector<16x96xf32> -> vector<16x96xf32>
    %c0_3 = arith.constant 0 : index
    %c0_4 = arith.constant 0 : index
    %4 = vector.load %arg3[%c0_3, %c0_4] : memref<1x96xf32, #tpu.memory_space<vmem>>, vector<1x96xf32>
    %5 = vector.broadcast %4 : vector<1x96xf32> to vector<16x96xf32>
    %6 = arith.addf %3, %5 : vector<16x96xf32>
    %7 = vector.extract_strided_slice %6 {offsets = [0, 0], sizes = [16, 32], strides = [1, 1]} : vector<16x96xf32> to vector<16x32xf32>
    %c0_5 = arith.constant 0 : index
    %c0_6 = arith.constant 0 : index
    %8 = vector.load %arg4[%c0_5, %c0_6] : memref<16x32xf32, #tpu.memory_space<vmem>>, vector<16x32xf32>
    tpu.vector_store %arg4[%c0_5, %c0_6], %7 {strides = array<i32>} : memref<16x32xf32, #tpu.memory_space<vmem>>, vector<16x32xf32>,
    %9 = vector.extract_strided_slice %6 {offsets = [0, 32], sizes = [16, 64], strides = [1, 1]} : vector<16x96xf32> to vector<16x64xf32>
    %c0_7 = arith.constant 0 : index
    %c0_8 = arith.constant 0 : index
    %10 = vector.load %arg5[%c0_7, %c0_8] : memref<16x64xf32, #tpu.memory_space<vmem>>, vector<16x64xf32>
    tpu.vector_store %arg5[%c0_7, %c0_8], %9 {strides = array<i32>} : memref<16x64xf32, #tpu.memory_space<vmem>>, vector<16x64xf32>,
    return
  }
  func.func @transform_0(%arg0: i32) -> (i32, i32) {
    %c0_i32 = arith.constant 0 : i32
    %c0_i32_0 = arith.constant 0 : i32
    return %arg0, %c0_i32 : i32, i32
  }
  func.func @transform_1(%arg0: i32) -> (i32, i32) {
    %c0_i32 = arith.constant 0 : i32
    %c0_i32_0 = arith.constant 0 : i32
    %c0_i32_1 = arith.constant 0 : i32
    return %c0_i32, %c0_i32_0 : i32, i32
  }
  func.func @transform_2(%arg0: i32) -> (i32, i32) {
    %c0_i32 = arith.constant 0 : i32
    %c0_i32_0 = arith.constant 0 : i32
    %c0_i32_1 = arith.constant 0 : i32
    return %c0_i32, %c0_i32_0 : i32, i32
  }
  func.func @transform_3(%arg0: i32) -> (i32, i32) {
    %c0_i32 = arith.constant 0 : i32
    %c0_i32_0 = arith.constant 0 : i32
    return %arg0, %c0_i32 : i32, i32
  }
  func.func @transform_4(%arg0: i32) -> (i32, i32) {
    %c0_i32 = arith.constant 0 : i32
    %c0_i32_0 = arith.constant 0 : i32
    return %arg0, %c0_i32 : i32, i32
  }
}

module attributes {stable_mosaic.version = 11 : i64} {
  func.func @_linear_split_kernel(%arg0: i32, %arg1: memref<16x32xf32, #tpu.memory_space<vmem>>, %arg2: memref<32x32xbf16, #tpu.memory_space<vmem>>, %arg3: memref<1x32xf32, #tpu.memory_space<vmem>>, %arg4: memref<16x32xf32, #tpu.memory_space<vmem>>) attributes {dimension_semantics = [#tpu.dimension_semantics<parallel>], iteration_bounds = array<i64: 1>, scalar_prefetch = 0 : i64, scratch_operands = 0 : i64, tpu.core_type = #tpu.core_type<tc>, window_params = [{transform_indices = @transform_0, window_bounds = array<i64: 16, 32>}, {pipeline_mode = #tpu.pipeline_mode<synchronous>, transform_indices = @transform_1, window_bounds = array<i64: 32, 32>}, {pipeline_mode = #tpu.pipeline_mode<synchronous>, transform_indices = @transform_2, window_bounds = array<i64: 1, 32>}, {transform_indices = @transform_3, window_bounds = array<i64: 16, 32>}]} {
    %c0 = arith.constant 0 : index
    %c0_0 = arith.constant 0 : index
    %0 = vector.load %arg1[%c0, %c0_0] : memref<16x32xf32, #tpu.memory_space<vmem>>, vector<16x32xf32>
    %1 = arith.truncf %0 : vector<16x32xf32> to vector<16x32xbf16>
    %c0_1 = arith.constant 0 : index
    %c0_2 = arith.constant 0 : index
    %2 = vector.load %arg2[%c0_1, %c0_2] : memref<32x32xbf16, #tpu.memory_space<vmem>>, vector<32x32xbf16>
    %cst = arith.constant dense<0.000000e+00> : vector<16x32xf32>
    %3 = tpu.matmul %1, %2, %cst {dimension_numbers = #tpu.dot_dimension_numbers<[1], [0], [0], [1], [0, 0, 1, 1], [], []>} : vector<16x32xbf16>, vector<32x32xbf16>, vector<16x32xf32> -> vector<16x32xf32>
    %c0_3 = arith.constant 0 : index
    %c0_4 = arith.constant 0 : index
    %4 = vector.load %arg3[%c0_3, %c0_4] : memref<1x32xf32, #tpu.memory_space<vmem>>, vector<1x32xf32>
    %5 = vector.broadcast %4 : vector<1x32xf32> to vector<16x32xf32>
    %6 = arith.addf %3, %5 : vector<16x32xf32>
    %c0_5 = arith.constant 0 : index
    %c0_6 = arith.constant 0 : index
    %7 = vector.load %arg4[%c0_5, %c0_6] : memref<16x32xf32, #tpu.memory_space<vmem>>, vector<16x32xf32>
    tpu.vector_store %arg4[%c0_5, %c0_6], %6 {strides = array<i32>} : memref<16x32xf32, #tpu.memory_space<vmem>>, vector<16x32xf32>,
    return
  }
  func.func @transform_0(%arg0: i32) -> (i32, i32) {
    %c0_i32 = arith.constant 0 : i32
    %c0_i32_0 = arith.constant 0 : i32
    return %arg0, %c0_i32 : i32, i32
  }
  func.func @transform_1(%arg0: i32) -> (i32, i32) {
    %c0_i32 = arith.constant 0 : i32
    %c0_i32_0 = arith.constant 0 : i32
    %c0_i32_1 = arith.constant 0 : i32
    return %c0_i32, %c0_i32_0 : i32, i32
  }
  func.func @transform_2(%arg0: i32) -> (i32, i32) {
    %c0_i32 = arith.constant 0 : i32
    %c0_i32_0 = arith.constant 0 : i32
    %c0_i32_1 = arith.constant 0 : i32
    return %c0_i32, %c0_i32_0 : i32, i32
  }
  func.func @transform_3(%arg0: i32) -> (i32, i32) {
    %c0_i32 = arith.constant 0 : i32
    %c0_i32_0 = arith.constant 0 : i32
    return %arg0, %c0_i32 : i32, i32
  }
}

module attributes {stable_mosaic.version = 11 : i64} {
  func.func @_tiled_matmul_kernel(%arg0: i32, %arg1: i32, %arg2: i32, %arg3: memref<16x32xf32, #tpu.memory_space<vmem>>, %arg4: memref<32x64xbf16, #tpu.memory_space<vmem>>, %arg5: memref<1x64xf32, #tpu.memory_space<vmem>>, %arg6: memref<16x64xf32, #tpu.memory_space<vmem>>, %arg7: memref<16x64xf32, #tpu.memory_space<vmem>>) attributes {dimension_semantics = [#tpu.dimension_semantics<parallel>, #tpu.dimension_semantics<parallel>, #tpu.dimension_semantics<arbitrary>], iteration_bounds = array<i64: 1, 1, 1>, scalar_prefetch = 0 : i64, scratch_operands = 1 : i64, tpu.core_type = #tpu.core_type<tc>, window_params = [{transform_indices = @transform_0, window_bounds = array<i64: 16, 32>}, {transform_indices = @transform_1, window_bounds = array<i64: 32, 64>}, {transform_indices = @transform_2, window_bounds = array<i64: 1, 64>}, {transform_indices = @transform_3, window_bounds = array<i64: 16, 64>}]} {
    %c0_i32 = arith.constant 0 : i32
    %0 = arith.cmpi eq, %arg2, %c0_i32 : i32
    %1 = arith.extui %0 : i1 to i32
    %c0_i32_0 = arith.constant 0 : i32
    %2 = arith.cmpi ne, %1, %c0_i32_0 : i32
    scf.if %2 {
      %cst_10 = arith.constant 0.000000e+00 : f32
      %13 = vector.broadcast %cst_10 : f32 to vector<16x64xf32>
      %c0_11 = arith.constant 0 : index
      %c0_12 = arith.constant 0 : index
      %14 = vector.load %arg7[%c0_11, %c0_12] : memref<16x64xf32, #tpu.memory_space<vmem>>, vector<16x64xf32>
      tpu.vector_store %arg7[%c0_11, %c0_12], %13 {strides = array<i32>} : memref<16x64xf32, #tpu.memory_space<vmem>>, vector<16x64xf32>,
    } else {
    }
    %c0 = arith.constant 0 : index
    %c0_1 = arith.constant 0 : index
    %3 = vector.load %arg7[%c0, %c0_1] : memref<16x64xf32, #tpu.memory_space<vmem>>, vector<16x64xf32>
    %c0_2 = arith.constant 0 : index
    %c0_3 = arith.constant 0 : index
    %4 = vector.load %arg3[%c0_2, %c0_3] : memref<16x32xf32, #tpu.memory_space<vmem>>, vector<16x32xf32>
    %5 = arith.truncf %4 : vector<16x32xf32> to vector<16x32xbf16>
    %c0_4 = arith.constant 0 : index
    %c0_5 = arith.constant 0 : index
    %6 = vector.load %arg4[%c0_4, %c0_5] : memref<32x64xbf16, #tpu.memory_space<vmem>>, vector<32x64xbf16>
    %cst = arith.constant dense<0.000000e+00> : vector<16x64xf32>
    %7 = tpu.matmul %5, %6, %cst {dimension_numbers = #tpu.dot_dimension_numbers<[1], [0], [0], [1], [0, 0, 1, 1], [], []>} : vector<16x32xbf16>, vector<32x64xbf16>, vector<16x64xf32> -> vector<16x64xf32>
    %8 = arith.addf %3, %7 : vector<16x64xf32>
    %c0_6 = arith.constant 0 : index
    %c0_7 = arith.constant 0 : index
    %9 = vector.load %arg7[%c0_6, %c0_7] : memref<16x64xf32, #tpu.memory_space<vmem>>, vector<16x64xf32>
    tpu.vector_store %arg7[%c0_6, %c0_7], %8 {strides = array<i32>} : memref<16x64xf32, #tpu.memory_space<vmem>>, vector<16x64xf32>,
    %c0_i32_8 = arith.constant 0 : i32
    %10 = arith.cmpi eq, %arg2, %c0_i32_8 : i32
    %11 = arith.extui %10 : i1 to i32
    %c0_i32_9 = arith.constant 0 : i32
    %12 = arith.cmpi ne, %11, %c0_i32_9 : i32
    scf.if %12 {
      %c0_10 = arith.constant 0 : index
      %c0_11 = arith.constant 0 : index
      %13 = vector.load %arg7[%c0_10, %c0_11] : memref<16x64xf32, #tpu.memory_space<vmem>>, vector<16x64xf32>
      %c0_12 = arith.constant 0 : index
      %c0_13 = arith.constant 0 : index
      %14 = vector.load %arg5[%c0_12, %c0_13] : memref<1x64xf32, #tpu.memory_space<vmem>>, vector<1x64xf32>
      %15 = vector.broadcast %14 : vector<1x64xf32> to vector<16x64xf32>
      %16 = arith.addf %13, %15 : vector<16x64xf32>
      %c0_14 = arith.constant 0 : index
      %c0_15 = arith.constant 0 : index
      %17 = vector.load %arg6[%c0_14, %c0_15] : memref<16x64xf32, #tpu.memory_space<vmem>>, vector<16x64xf32>
      tpu.vector_store %arg6[%c0_14, %c0_15], %16 {strides = array<i32>} : memref<16x64xf32, #tpu.memory_space<vmem>>, vector<16x64xf32>,
    } else {
    }
    return
  }
  func.func @transform_0(%arg0: i32, %arg1: i32, %arg2: i32) -> (i32, i32) {
    %c0_i32 = arith.constant 0 : i32
    return %arg0, %arg2 : i32, i32
  }
  func.func @transform_1(%arg0: i32, %arg1: i32, %arg2: i32) -> (i32, i32) {
    %c0_i32 = arith.constant 0 : i32
    return %arg2, %arg1 : i32, i32
  }
  func.func @transform_2(%arg0: i32, %arg1: i32, %arg2: i32) -> (i32, i32) {
    %c0_i32 = arith.constant 0 : i32
    %c0_i32_0 = arith.constant 0 : i32
    return %c0_i32, %arg1 : i32, i32
  }
  func.func @transform_3(%arg0: i32, %arg1: i32, %arg2: i32) -> (i32, i32) {
    %c0_i32 = arith.constant 0 : i32
    return %arg0, %arg1 : i32, i32
  }
}

</mosaic_0001>

<llo_original>
// kernel: transformer_forward.27
$region0: #{transformer_forward.27}
  #allocation0 [shape = 'u32[]', space=smem, size = 0x4, offset = 0x4, fixed_abs, tag = 'smem constant byte address 0x4 - core index']
  #allocation1 [shape = 'u32[72,128]{1,0:T(1,128)}', space=vmem, size = 0x9000, scoped, tag = 'internal scratch']
  %s0 = inlined_call_operand.vmem [shape: f32[16,32], index: 0, kind: input, shape index: {}]
  %s1 = inlined_call_operand.vmem [shape: bf16[32,32], index: 1, kind: input, shape index: {}]
  %s2 = inlined_call_operand.vmem [shape: f32[1,32], index: 2, kind: input, shape index: {}]
  %s3 = inlined_call_operand.vmem [shape: f32[16,32], index: 3, kind: input, shape index: {}]
  %s4 = inlined_call_operand.vmem [shape: f32[1,32], index: 4, kind: input, shape index: {}]
  %s5 = inlined_call_operand.vmem [shape: f32[1,32], index: 5, kind: input, shape index: {}]
  %s6 = inlined_call_operand.vmem [shape: f32[16,32], index: 6, kind: output, shape index: {}]
  %s7 = sld [smem:[#allocation0]]
  $region34: #{transformer_forward.27} parent=0
    _
  %s9 = ssub.s32 1, %s7
  %s10 = scalar_select 0, %s9, %s7
  // Predicated region
  $region2: #{transformer_forward.27} parent=0 // pred_check
    _
  $region3: #{transformer_forward.27} parent=0 // pred_check_branch
    %12 = sbr.rel (0) target = $region5
  $region4: #{transformer_forward.27} parent=0 // pred_region
    _
  $region5: #{transformer_forward.27} parent=0 // pred_fallthru
    _
  // Predicated region
  $region6: #{transformer_forward.27} parent=0 // pred_check
    _
  $region7: #{transformer_forward.27} parent=0 // pred_check_branch
    %14 = sbr.rel (0) target = $region9
  $region8: #{transformer_forward.27} parent=0 // pred_region
    _
  $region9: #{transformer_forward.27} parent=0 // pred_fallthru
    _
  // Predicated region
  $region10: #{transformer_forward.27} parent=0 // pred_check
    _
  $region11: #{transformer_forward.27} parent=0 // pred_check_branch
    %16 = sbr.rel (0) target = $region13
  $region12: #{transformer_forward.27} parent=0 // pred_region
    _
  $region13: #{transformer_forward.27} parent=0 // pred_fallthru
    _
  // Predicated region
  $region14: #{transformer_forward.27} parent=0 // pred_check
    _
  $region15: #{transformer_forward.27} parent=0 // pred_check_branch
    %18 = sbr.rel (0) target = $region17
  $region16: #{transformer_forward.27} parent=0 // pred_region
    _
  $region17: #{transformer_forward.27} parent=0 // pred_fallthru
    _
  // Predicated region
  $region18: #{transformer_forward.27} parent=0 // pred_check
    _
  $region19: #{transformer_forward.27} parent=0 // pred_check_branch
    %20 = sbr.rel (0) target = $region21
  $region20: #{transformer_forward.27} parent=0 // pred_region
    _
  $region21: #{transformer_forward.27} parent=0 // pred_fallthru
    _
  // Predicated region
  $region22: #{transformer_forward.27} parent=0 // pred_check
    _
  $region23: #{transformer_forward.27} parent=0 // pred_check_branch
    %22 = sbr.rel (0) target = $region25
  $region24: #{transformer_forward.27} parent=0 // pred_region
    _
  $region25: #{transformer_forward.27} parent=0 // pred_fallthru
    _
  %v24 = vld [vmem:[%s0] sm:$0xff]
  %v25 = vld [vmem:[%s0 + $0x8] sm:$0xff]
  %v26 = vpack.c.bf16 %v25, %v24
  %v27 = vld [vmem:[%s1] sm:$0xf]
  %v28 = vld [vmem:[%s1 + $0x4] sm:$0xf]
  %v29 = vld [vmem:[%s1 + $0x8] sm:$0xf]
  %v30 = vld [vmem:[%s1 + $0xc] sm:$0xf]
  %v31 = vld [vmem:[%s2] sm:$0x1]
  %v33 = vperm.slane %v31, 0
  %v39 = vunpack.c.l.b16 %v27
  %v40 = vunpack.c.l.b16 %v28
  %v41 = vunpack.c.l.b16 %v29
  %v42 = vunpack.c.l.b16 %v30
  %v43 = vpack.c.b16 %v40, %v39
  %v44 = vpack.c.b16 %v42, %v41
  %vm47 = vcmask 261120
  %v49 = vsel %vm47, %v26, 0
  %51 = vmatpush.bf16.msra.mxu0 0
  %52 = vmatpush.bf16.msra.mxu0 0
  %53 = vmatpush.bf16.msra.mxu0 0
  %54 = vmatpush.bf16.msra.mxu0 0
  %55 = vmatpush.bf16.msra.mxu0 0
  %56 = vmatpush.bf16.msra.mxu0 0
  %57 = vmatpush.bf16.msra.mxu0 %v44
  %58 = vmatpush.bf16.msra.mxu0 %v43
  %59 = vmatmul.bf16.gmra.mxu0 %v49
  %v60 = vpop.f32.mrf.mxu0
  %v61 = vadd.f32 %v33, %v60
  %v62 = vpop.f32.mrf.mxu0
  %v63 = vadd.f32 %v33, %v62
  %64 = vdwg.mxu0
  %v65 = vld [vmem:[%s3] sm:$0xff]
  %v66 = vld [vmem:[%s3 + $0x8] sm:$0xff]
  %v67 = vadd.f32 %v61, %v65
  %v68 = vadd.f32 %v63, %v66
  %v69 = vsel %vm47, %v67, 0.0
  %70 = vadd.xlane.f32.xlu0 %v69
  %v71 = vpop.xlane.xlu0 %70
  %v72 = vsel %vm47, %v68, 0.0
  %73 = vadd.xlane.f32.xlu0 %v72
  %v74 = vpop.xlane.xlu0 %73
  %v75 = vrcp.pop 32.0
  %v76 = vmul.f32 32.0, %v75
  %v77 = vsub.f32 1.0, %v76
  %v78 = vmul.f32 %v75, %v77
  %v79 = vadd.f32 %v75, %v78
  %vm80 = vweird.f32 %v75
  %v81 = vsel %vm80, %v75, %v79
  %v82 = vmul.f32 %v71, %v81
  %v83 = vmul.f32 %v74, %v81
  %v84 = vsub.f32 %v67, %v82
  %v85 = vsub.f32 %v68, %v83
  %v86 = vmul.f32 %v84, %v84
  %v87 = vmul.f32 %v85, %v85
  %v88 = vsel %vm47, %v86, 0.0
  %89 = vadd.xlane.f32.xlu0 %v88
  %v90 = vpop.xlane.xlu0 %89
  %v91 = vsel %vm47, %v87, 0.0
  %92 = vadd.xlane.f32.xlu0 %v91
  %v93 = vpop.xlane.xlu0 %92
  %v94 = vmul.f32 %v90, %v81
  %v95 = vmul.f32 %v93, %v81
  %v96 = vadd.f32 %v94, 1e-05
  %v97 = vadd.f32 %v95, 1e-05
  %v98 = vrsqrt.pop %v96
  %v99 = vmul.f32 %v98, %v96
  %v100 = vmul.f32 %v99, %v98
  %v101 = vmul.f32 0.5, %v100
  %v102 = vsub.f32 1.5, %v101
  %v103 = vmul.f32 %v98, %v102
  %vm104 = vweird.f32 %v96
  %vm105 = vweird.f32 %v98
  %vm106 = vmor %vm104, %vm105
  %v107 = vsel %vm106, %v98, %v103
  %v108 = vrsqrt.pop %v97
  %v109 = vmul.f32 %v108, %v97
  %v110 = vmul.f32 %v109, %v108
  %v111 = vmul.f32 0.5, %v110
  %v112 = vsub.f32 1.5, %v111
  %v113 = vmul.f32 %v108, %v112
  %vm114 = vweird.f32 %v97
  %vm115 = vweird.f32 %v108
  %vm116 = vmor %vm114, %vm115
  %v117 = vsel %vm116, %v108, %v113
  %v118 = vmul.f32 %v84, %v107
  %v119 = vmul.f32 %v85, %v117
  %v120 = vld [vmem:[%s4] sm:$0x1]
  %v122 = vperm.slane %v120, 0
  %v124 = vmul.f32 %v118, %v122
  %v125 = vmul.f32 %v119, %v122
  %v126 = vld [vmem:[%s5] sm:$0x1]
  %v128 = vperm.slane %v126, 0
  %v130 = vadd.f32 %v124, %v128
  %v131 = vadd.f32 %v125, %v128
  %132 = vst.msk [vmem:[%s6] sm:$0xff] %vm47, %v130
  %133 = vst.msk [vmem:[%s6 + $0x8] sm:$0xff] %vm47, %v131
  // Predicated region
  $region26: #{transformer_forward.27} parent=0 // pred_check
    _
  $region27: #{transformer_forward.27} parent=0 // pred_check_branch
    %135 = sbr.rel (0) target = $region29
  $region28: #{transformer_forward.27} parent=0 // pred_region
    _
  $region29: #{transformer_forward.27} parent=0 // pred_fallthru
    _
  // Predicated region
  $region30: #{transformer_forward.27} parent=0 // pred_check
    _
  $region31: #{transformer_forward.27} parent=0 // pred_check_branch
    %137 = sbr.rel (0) target = $region33
  $region32: #{transformer_forward.27} parent=0 // pred_region
    _
  $region33: #{transformer_forward.27} parent=0 // pred_fallthru
    _

// kernel: transformer_forward.25
$region0: #{transformer_forward.25}
  #allocation0 [shape = 'u32[]', space=smem, size = 0x4, offset = 0x4, fixed_abs, tag = 'smem constant byte address 0x4 - core index']
  #allocation1 [shape = 'u32[72,128]{1,0:T(1,128)}', space=vmem, size = 0x9000, scoped, tag = 'internal scratch']
  %s0 = inlined_call_operand.vmem [shape: f32[16,32], index: 0, kind: input, shape index: {}]
  %s1 = inlined_call_operand.vmem [shape: bf16[32,96], index: 1, kind: input, shape index: {}]
  %s2 = inlined_call_operand.vmem [shape: f32[1,96], index: 2, kind: input, shape index: {}]
  %s3 = inlined_call_operand.vmem [shape: f32[16,32], index: 3, kind: output, shape index: {0}]
  %s4 = inlined_call_operand.vmem [shape: f32[16,64], index: 4, kind: output, shape index: {1}]
  %5 = xla_tuple %s3, %s4
  %s6 = sld [smem:[#allocation0]]
  $region30: #{transformer_forward.25} parent=0
    _
  %s8 = ssub.s32 1, %s6
  %s9 = scalar_select 0, %s8, %s6
  // Predicated region
  $region2: #{transformer_forward.25} parent=0 // pred_check
    _
  $region3: #{transformer_forward.25} parent=0 // pred_check_branch
    %11 = sbr.rel (0) target = $region5
  $region4: #{transformer_forward.25} parent=0 // pred_region
    _
  $region5: #{transformer_forward.25} parent=0 // pred_fallthru
    _
  // Predicated region
  $region6: #{transformer_forward.25} parent=0 // pred_check
    _
  $region7: #{transformer_forward.25} parent=0 // pred_check_branch
    %13 = sbr.rel (0) target = $region9
  $region8: #{transformer_forward.25} parent=0 // pred_region
    _
  $region9: #{transformer_forward.25} parent=0 // pred_fallthru
    _
  // Predicated region
  $region10: #{transformer_forward.25} parent=0 // pred_check
    _
  $region11: #{transformer_forward.25} parent=0 // pred_check_branch
    %15 = sbr.rel (0) target = $region13
  $region12: #{transformer_forward.25} parent=0 // pred_region
    _
  $region13: #{transformer_forward.25} parent=0 // pred_fallthru
    _
  %v17 = vld [vmem:[%s0] sm:$0xff]
  %v18 = vld [vmem:[%s0 + $0x8] sm:$0xff]
  %v19 = vpack.c.bf16 %v18, %v17
  %v20 = vld [vmem:[%s1] sm:$0xf]
  %v21 = vld [vmem:[%s1 + $0x4] sm:$0xf]
  %v22 = vld [vmem:[%s1 + $0x8] sm:$0xf]
  %v23 = vld [vmem:[%s1 + $0xc] sm:$0xf]
  %v24 = vld [vmem:[%s2] sm:$0x1]
  %v26 = vperm.slane %v24, 0
  %v32 = vunpack.c.l.b16 %v20
  %v33 = vunpack.c.l.b16 %v21
  %v34 = vunpack.c.l.b16 %v22
  %v35 = vunpack.c.l.b16 %v23
  %v36 = vpack.c.b16 %v33, %v32
  %v37 = vpack.c.b16 %v35, %v34
  %vm40 = vcmask 261120
  %v42 = vsel %vm40, %v19, 0
  %44 = vmatpush.bf16.msra.mxu0 0
  %45 = vmatpush.bf16.msra.mxu0 0
  %46 = vmatpush.bf16.msra.mxu0 0
  %47 = vmatpush.bf16.msra.mxu0 0
  %48 = vmatpush.bf16.msra.mxu0 0
  %49 = vmatpush.bf16.msra.mxu0 0
  %50 = vmatpush.bf16.msra.mxu0 %v37
  %51 = vmatpush.bf16.msra.mxu0 %v36
  %52 = vmatmul.bf16.gmra.mxu0 %v42
  %v53 = vpop.f32.mrf.mxu0
  %v54 = vadd.f32 %v26, %v53
  %v55 = vpop.f32.mrf.mxu0
  %v56 = vadd.f32 %v26, %v55
  %57 = vdwg.mxu0
  %58 = vst.msk [vmem:[%s3] sm:$0xff] %vm40, %v54
  %59 = vst.msk [vmem:[%s3 + $0x8] sm:$0xff] %vm40, %v56
  %62 = vrot.lane.b32.xlu0 %v54, 96
  %v63 = vpop.permute.xlu0 %62
  %64 = vrot.lane.b32.xlu0 %v56, 96
  %v65 = vpop.permute.xlu0 %64
  %vm68 = vcmask 523264
  %69 = vst.msk [vmem:[%s4] sm:$0xff] %vm68, %v63
  %70 = vst.msk [vmem:[%s4 + $0x8] sm:$0xff] %vm68, %v65
  // Predicated region
  $region14: #{transformer_forward.25} parent=0 // pred_check
    _
  $region15: #{transformer_forward.25} parent=0 // pred_check_branch
    %72 = sbr.rel (0) target = $region17
  $region16: #{transformer_forward.25} parent=0 // pred_region
    _
  $region17: #{transformer_forward.25} parent=0 // pred_fallthru
    _
  // Predicated region
  $region18: #{transformer_forward.25} parent=0 // pred_check
    _
  $region19: #{transformer_forward.25} parent=0 // pred_check_branch
    %74 = sbr.rel (0) target = $region21
  $region20: #{transformer_forward.25} parent=0 // pred_region
    _
  $region21: #{transformer_forward.25} parent=0 // pred_fallthru
    _
  // Predicated region
  $region22: #{transformer_forward.25} parent=0 // pred_check
    _
  $region23: #{transformer_forward.25} parent=0 // pred_check_branch
    %76 = sbr.rel (0) target = $region25
  $region24: #{transformer_forward.25} parent=0 // pred_region
    _
  $region25: #{transformer_forward.25} parent=0 // pred_fallthru
    _
  // Predicated region
  $region26: #{transformer_forward.25} parent=0 // pred_check
    _
  $region27: #{transformer_forward.25} parent=0 // pred_check_branch
    %78 = sbr.rel (0) target = $region29
  $region28: #{transformer_forward.25} parent=0 // pred_region
    _
  $region29: #{transformer_forward.25} parent=0 // pred_fallthru
    _

// kernel: transformer_forward.28
$region0: #{transformer_forward.28}
  #allocation0 [shape = 'u32[]', space=smem, size = 0x4, offset = 0x4, fixed_abs, tag = 'smem constant byte address 0x4 - core index']
  #allocation1 [shape = 'u32[72,128]{1,0:T(1,128)}', space=vmem, size = 0x9000, scoped, tag = 'internal scratch']
  %s0 = inlined_call_operand.vmem [shape: f32[16,32], index: 0, kind: input, shape index: {}]
  %s1 = inlined_call_operand.vmem [shape: bf16[32,64], index: 1, kind: input, shape index: {}]
  %s2 = inlined_call_operand.vmem [shape: f32[1,64], index: 2, kind: input, shape index: {}]
  %s3 = inlined_call_operand.vmem [shape: bf16[64,32], index: 3, kind: input, shape index: {}]
  %s4 = inlined_call_operand.vmem [shape: f32[1,32], index: 4, kind: input, shape index: {}]
  %s5 = inlined_call_operand.vmem [shape: f32[1,32], index: 5, kind: input, shape index: {}]
  %s6 = inlined_call_operand.vmem [shape: f32[1,32], index: 6, kind: input, shape index: {}]
  %s7 = inlined_call_operand.vmem [shape: f32[16,32], index: 7, kind: output, shape index: {}]
  %s8 = sld [smem:[#allocation0]]
  $region38: #{transformer_forward.28} parent=0
    _
  %s10 = ssub.s32 1, %s8
  %s11 = scalar_select 0, %s10, %s8
  // Predicated region
  $region2: #{transformer_forward.28} parent=0 // pred_check
    _
  $region3: #{transformer_forward.28} parent=0 // pred_check_branch
    %13 = sbr.rel (0) target = $region5
  $region4: #{transformer_forward.28} parent=0 // pred_region
    _
  $region5: #{transformer_forward.28} parent=0 // pred_fallthru
    _
  // Predicated region
  $region6: #{transformer_forward.28} parent=0 // pred_check
    _
  $region7: #{transformer_forward.28} parent=0 // pred_check_branch
    %15 = sbr.rel (0) target = $region9
  $region8: #{transformer_forward.28} parent=0 // pred_region
    _
  $region9: #{transformer_forward.28} parent=0 // pred_fallthru
    _
  // Predicated region
  $region10: #{transformer_forward.28} parent=0 // pred_check
    _
  $region11: #{transformer_forward.28} parent=0 // pred_check_branch
    %17 = sbr.rel (0) target = $region13
  $region12: #{transformer_forward.28} parent=0 // pred_region
    _
  $region13: #{transformer_forward.28} parent=0 // pred_fallthru
    _
  // Predicated region
  $region14: #{transformer_forward.28} parent=0 // pred_check
    _
  $region15: #{transformer_forward.28} parent=0 // pred_check_branch
    %19 = sbr.rel (0) target = $region17
  $region16: #{transformer_forward.28} parent=0 // pred_region
    _
  $region17: #{transformer_forward.28} parent=0 // pred_fallthru
    _
  // Predicated region
  $region18: #{transformer_forward.28} parent=0 // pred_check
    _
  $region19: #{transformer_forward.28} parent=0 // pred_check_branch
    %21 = sbr.rel (0) target = $region21
  $region20: #{transformer_forward.28} parent=0 // pred_region
    _
  $region21: #{transformer_forward.28} parent=0 // pred_fallthru
    _
  // Predicated region
  $region22: #{transformer_forward.28} parent=0 // pred_check
    _
  $region23: #{transformer_forward.28} parent=0 // pred_check_branch
    %23 = sbr.rel (0) target = $region25
  $region24: #{transformer_forward.28} parent=0 // pred_region
    _
  $region25: #{transformer_forward.28} parent=0 // pred_fallthru
    _
  // Predicated region
  $region26: #{transformer_forward.28} parent=0 // pred_check
    _
  $region27: #{transformer_forward.28} parent=0 // pred_check_branch
    %25 = sbr.rel (0) target = $region29
  $region28: #{transformer_forward.28} parent=0 // pred_region
    _
  $region29: #{transformer_forward.28} parent=0 // pred_fallthru
    _
  %v27 = vld [vmem:[%s0] sm:$0xff]
  %v28 = vld [vmem:[%s0 + $0x8] sm:$0xff]
  %v29 = vpack.c.bf16 %v28, %v27
  %v30 = vld [vmem:[%s1] sm:$0xf]
  %v31 = vld [vmem:[%s1 + $0x4] sm:$0xf]
  %v32 = vld [vmem:[%s1 + $0x8] sm:$0xf]
  %v33 = vld [vmem:[%s1 + $0xc] sm:$0xf]
  %v34 = vld [vmem:[%s2] sm:$0x1]
  %v36 = vperm.slane %v34, 0
  %v42 = vunpack.c.l.b16 %v30
  %v43 = vunpack.c.l.b16 %v31
  %v44 = vunpack.c.l.b16 %v32
  %v45 = vunpack.c.l.b16 %v33
  %v46 = vpack.c.b16 %v43, %v42
  %v47 = vpack.c.b16 %v45, %v44
  %vm50 = vcmask 261120
  %v52 = vsel %vm50, %v29, 0
  %54 = vmatpush.bf16.msra.mxu0 0
  %55 = vmatpush.bf16.msra.mxu0 0
  %56 = vmatpush.bf16.msra.mxu0 0
  %57 = vmatpush.bf16.msra.mxu0 0
  %58 = vmatpush.bf16.msra.mxu0 0
  %59 = vmatpush.bf16.msra.mxu0 0
  %60 = vmatpush.bf16.msra.mxu0 %v47
  %61 = vmatpush.bf16.msra.mxu0 %v46
  %62 = vmatmul.bf16.gmra.mxu0 %v52
  %v63 = vpop.f32.mrf.mxu0
  %v64 = vadd.f32 %v36, %v63
  %v65 = vpop.f32.mrf.mxu0
  %v66 = vadd.f32 %v36, %v65
  %67 = vdwg.mxu0
  %v68 = vmax.f32 %v64, 0.0
  %v69 = vmax.f32 %v66, 0.0
  %v70 = vpack.c.bf16 %v69, %v68
  %v71 = vld [vmem:[%s3] sm:$0xf]
  %v72 = vld [vmem:[%s3 + $0x4] sm:$0xf]
  %v73 = vld [vmem:[%s3 + $0x8] sm:$0xf]
  %v74 = vld [vmem:[%s3 + $0xc] sm:$0xf]
  %v75 = vld [vmem:[%s3 + $0x10] sm:$0xf]
  %v76 = vld [vmem:[%s3 + $0x14] sm:$0xf]
  %v77 = vld [vmem:[%s3 + $0x18] sm:$0xf]
  %v78 = vld [vmem:[%s3 + $0x1c] sm:$0xf]
  %v79 = vld [vmem:[%s4] sm:$0x1]
  %v81 = vperm.slane %v79, 0
  %v91 = vunpack.c.l.b16 %v71
  %v92 = vunpack.c.l.b16 %v72
  %v93 = vunpack.c.l.b16 %v73
  %v94 = vunpack.c.l.b16 %v74
  %v95 = vunpack.c.l.b16 %v75
  %v96 = vunpack.c.l.b16 %v76
  %v97 = vunpack.c.l.b16 %v77
  %v98 = vunpack.c.l.b16 %v78
  %v99 = vpack.c.b16 %v92, %v91
  %v100 = vpack.c.b16 %v94, %v93
  %v101 = vpack.c.b16 %v96, %v95
  %v102 = vpack.c.b16 %v98, %v97
  %vm107 = vcmask 523264
  %v109 = vsel %vm107, %v70, 0
  %111 = vmatpush.bf16.msra.mxu0 0
  %112 = vmatpush.bf16.msra.mxu0 0
  %113 = vmatpush.bf16.msra.mxu0 0
  %114 = vmatpush.bf16.msra.mxu0 0
  %115 = vmatpush.bf16.msra.mxu0 %v102
  %116 = vmatpush.bf16.msra.mxu0 %v101
  %117 = vmatpush.bf16.msra.mxu0 %v100
  %118 = vmatpush.bf16.msra.mxu0 %v99
  %119 = vmatmul.bf16.gmra.mxu0 %v109
  %v120 = vpop.f32.mrf.mxu0
  %v121 = vadd.f32 %v81, %v120
  %v122 = vpop.f32.mrf.mxu0
  %v123 = vadd.f32 %v81, %v122
  %124 = vdwg.mxu0
  %v125 = vadd.f32 %v121, %v27
  %v126 = vadd.f32 %v123, %v28
  %v127 = vsel %vm50, %v125, 0.0
  %128 = vadd.xlane.f32.xlu0 %v127
  %v129 = vpop.xlane.xlu0 %128
  %v130 = vsel %vm50, %v126, 0.0
  %131 = vadd.xlane.f32.xlu0 %v130
  %v132 = vpop.xlane.xlu0 %131
  %v133 = vrcp.pop 32.0
  %v134 = vmul.f32 32.0, %v133
  %v135 = vsub.f32 1.0, %v134
  %v136 = vmul.f32 %v133, %v135
  %v137 = vadd.f32 %v133, %v136
  %vm138 = vweird.f32 %v133
  %v139 = vsel %vm138, %v133, %v137
  %v140 = vmul.f32 %v129, %v139
  %v141 = vmul.f32 %v132, %v139
  %v142 = vsub.f32 %v125, %v140
  %v143 = vsub.f32 %v126, %v141
  %v144 = vmul.f32 %v142, %v142
  %v145 = vmul.f32 %v143, %v143
  %v146 = vsel %vm50, %v144, 0.0
  %147 = vadd.xlane.f32.xlu0 %v146
  %v148 = vpop.xlane.xlu0 %147
  %v149 = vsel %vm50, %v145, 0.0
  %150 = vadd.xlane.f32.xlu0 %v149
  %v151 = vpop.xlane.xlu0 %150
  %v152 = vmul.f32 %v148, %v139
  %v153 = vmul.f32 %v151, %v139
  %v154 = vadd.f32 %v152, 1e-05
  %v155 = vadd.f32 %v153, 1e-05
  %v156 = vrsqrt.pop %v154
  %v157 = vmul.f32 %v156, %v154
  %v158 = vmul.f32 %v157, %v156
  %v159 = vmul.f32 0.5, %v158
  %v160 = vsub.f32 1.5, %v159
  %v161 = vmul.f32 %v156, %v160
  %vm162 = vweird.f32 %v154
  %vm163 = vweird.f32 %v156
  %vm164 = vmor %vm162, %vm163
  %v165 = vsel %vm164, %v156, %v161
  %v166 = vrsqrt.pop %v155
  %v167 = vmul.f32 %v166, %v155
  %v168 = vmul.f32 %v167, %v166
  %v169 = vmul.f32 0.5, %v168
  %v170 = vsub.f32 1.5, %v169
  %v171 = vmul.f32 %v166, %v170
  %vm172 = vweird.f32 %v155
  %vm173 = vweird.f32 %v166
  %vm174 = vmor %vm172, %vm173
  %v175 = vsel %vm174, %v166, %v171
  %v176 = vmul.f32 %v142, %v165
  %v177 = vmul.f32 %v143, %v175
  %v178 = vld [vmem:[%s5] sm:$0x1]
  %v180 = vperm.slane %v178, 0
  %v182 = vmul.f32 %v176, %v180
  %v183 = vmul.f32 %v177, %v180
  %v184 = vld [vmem:[%s6] sm:$0x1]
  %v186 = vperm.slane %v184, 0
  %v188 = vadd.f32 %v182, %v186
  %v189 = vadd.f32 %v183, %v186
  %190 = vst.msk [vmem:[%s7] sm:$0xff] %vm50, %v188
  %191 = vst.msk [vmem:[%s7 + $0x8] sm:$0xff] %vm50, %v189
  // Predicated region
  $region30: #{transformer_forward.28} parent=0 // pred_check
    _
  $region31: #{transformer_forward.28} parent=0 // pred_check_branch
    %193 = sbr.rel (0) target = $region33
  $region32: #{transformer_forward.28} parent=0 // pred_region
    _
  $region33: #{transformer_forward.28} parent=0 // pred_fallthru
    _
  // Predicated region
  $region34: #{transformer_forward.28} parent=0 // pred_check
    _
  $region35: #{transformer_forward.28} parent=0 // pred_check_branch
    %195 = sbr.rel (0) target = $region37
  $region36: #{transformer_forward.28} parent=0 // pred_region
    _
  $region37: #{transformer_forward.28} parent=0 // pred_fallthru
    _

// kernel: transformer_forward.26
$region0: #{transformer_forward.26}
  #allocation0 [shape = 'u32[]', space=smem, size = 0x4, offset = 0x4, fixed_abs, tag = 'smem constant byte address 0x4 - core index']
  #allocation1 [shape = 'u32[72,128]{1,0:T(1,128)}', space=vmem, size = 0x9000, scoped, tag = 'internal scratch']
  %s0 = inlined_call_operand.vmem [shape: f32[2,8,32], index: 0, kind: input, shape index: {}]
  %s1 = inlined_call_operand.vmem [shape: f32[2,8,64], index: 1, kind: input, shape index: {}]
  %s2 = inlined_call_operand.vmem [shape: f32[2,1,8], index: 2, kind: input, shape index: {}]
  %s3 = inlined_call_operand.vmem [shape: f32[2,8,32], index: 3, kind: output, shape index: {}]
  %s4 = sld [smem:[#allocation0]]
  $region45: #{transformer_forward.26} parent=0
    _
  %s6 = ssub.s32 1, %s4
  %s7 = scalar_select 0, %s6, %s4
  loop: start=0, step=1, limit=4
  $region2: #{transformer_forward.26} parent=0 // loop_pre_header
    _
  $region3: #{transformer_forward.26} parent=0 // loop_header
    %s9 = sphi 0, %s13
    %p10 = scmp.ge.s32.totalorder %s9, 4
    %s19 = sphi 0, %s21
    %s22 = sphi 0, %s19
    %s23 = sphi 0, %s22
    %s39 = sphi 0, %s23
    %s45 = sphi 0, %s47
    %s48 = sphi 0, %s45
    %s49 = sphi 0, %s48
    %s65 = sphi 0, %s49
    %s71 = sphi 0, %s73
    %s74 = sphi 0, %s71
    %s75 = sphi 0, %s74
    %s91 = sphi 0, %s75
    %s97 = sphi 0, %s99
    %s100 = sphi 0, %s97
    %s101 = sphi 0, %s100
    %s117 = sphi 0, %s101
  $region4: #{transformer_forward.26} parent=0 // loop_header_branch
    %12 = sbr.rel (%p10) target = $region8
  $region5: #{transformer_forward.26} parent=0 // loop_body
    %s14 = ssub.s32 %s9, 1
    %s15 = ssub.s32 %s9, 2
    %s16 = sadd.s32 %s9, 1
    %s17 = ssub.s32 %s9, %s16
    %p18 = scmp.eq.s32.totalorder %s17, 0
    %s20 = sadd.s32 %s19, 1
    %s21 = scalar_select %p18, %s19, %s20
    %p24 = pneg %p18
    %p25 = scmp.eq.s32.totalorder %s9, 1
    %p26 = por %p24, %p25
    %p27 = scmp.ne.s32.totalorder %s19, %s22
    %p28 = scmp.eq.s32.totalorder %s9, 0
    %p29 = por %p27, %p28
    %p30 = scmp.ne.s32.totalorder %s19, %s22
    %p31 = scmp.eq.s32.totalorder %s14, 1
    %p32 = por %p30, %p31
    %p33 = scmp.ne.s32.totalorder %s22, %s23
    %p34 = scmp.eq.s32.totalorder %s14, 0
    %p35 = por %p33, %p34
    %p36 = scmp.ne.s32.totalorder %s22, %s23
    %p37 = scmp.eq.s32.totalorder %s15, 1
    %p38 = por %p36, %p37
    %p40 = scmp.ne.s32.totalorder %s23, %s39
    %p41 = scmp.eq.s32.totalorder %s15, 0
    %p42 = por %p40, %p41
    %s43 = ssub.s32 %s9, %s16
    %p44 = scmp.eq.s32.totalorder %s43, 0
    %s46 = sadd.s32 %s45, 1
    %s47 = scalar_select %p44, %s45, %s46
    %p50 = pneg %p44
    %p51 = scmp.eq.s32.totalorder %s9, 1
    %p52 = por %p50, %p51
    %p53 = scmp.ne.s32.totalorder %s45, %s48
    %p54 = scmp.eq.s32.totalorder %s9, 0
    %p55 = por %p53, %p54
    %p56 = scmp.ne.s32.totalorder %s45, %s48
    %p57 = scmp.eq.s32.totalorder %s14, 1
    %p58 = por %p56, %p57
    %p59 = scmp.ne.s32.totalorder %s48, %s49
    %p60 = scmp.eq.s32.totalorder %s14, 0
    %p61 = por %p59, %p60
    %p62 = scmp.ne.s32.totalorder %s48, %s49
    %p63 = scmp.eq.s32.totalorder %s15, 1
    %p64 = por %p62, %p63
    %p66 = scmp.ne.s32.totalorder %s49, %s65
    %p67 = scmp.eq.s32.totalorder %s15, 0
    %p68 = por %p66, %p67
    %s69 = ssub.s32 %s9, %s16
    %p70 = scmp.eq.s32.totalorder %s69, 0
    %s72 = sadd.s32 %s71, 1
    %s73 = scalar_select %p70, %s71, %s72
    %p76 = pneg %p70
    %p77 = scmp.eq.s32.totalorder %s9, 1
    %p78 = por %p76, %p77
    %p79 = scmp.ne.s32.totalorder %s71, %s74
    %p80 = scmp.eq.s32.totalorder %s9, 0
    %p81 = por %p79, %p80
    %p82 = scmp.ne.s32.totalorder %s71, %s74
    %p83 = scmp.eq.s32.totalorder %s14, 1
    %p84 = por %p82, %p83
    %p85 = scmp.ne.s32.totalorder %s74, %s75
    %p86 = scmp.eq.s32.totalorder %s14, 0
    %p87 = por %p85, %p86
    %p88 = scmp.ne.s32.totalorder %s74, %s75
    %p89 = scmp.eq.s32.totalorder %s15, 1
    %p90 = por %p88, %p89
    %p92 = scmp.ne.s32.totalorder %s75, %s91
    %p93 = scmp.eq.s32.totalorder %s15, 0
    %p94 = por %p92, %p93
    %s95 = ssub.s32 %s9, %s16
    %p96 = scmp.eq.s32.totalorder %s95, 0
    %s98 = sadd.s32 %s97, 1
    %s99 = scalar_select %p96, %s97, %s98
    %p102 = pneg %p96
    %p103 = scmp.eq.s32.totalorder %s9, 1
    %p104 = por %p102, %p103
    %p105 = scmp.ne.s32.totalorder %s97, %s100
    %p106 = scmp.eq.s32.totalorder %s9, 0
    %p107 = por %p105, %p106
    %p108 = scmp.ne.s32.totalorder %s97, %s100
    %p109 = scmp.eq.s32.totalorder %s14, 1
    %p110 = por %p108, %p109
    %p111 = scmp.ne.s32.totalorder %s100, %s101
    %p112 = scmp.eq.s32.totalorder %s14, 0
    %p113 = por %p111, %p112
    %p114 = scmp.ne.s32.totalorder %s100, %s101
    %p115 = scmp.eq.s32.totalorder %s15, 1
    %p116 = por %p114, %p115
    %p118 = scmp.ne.s32.totalorder %s101, %s117
    %p119 = scmp.eq.s32.totalorder %s15, 0
    %p120 = por %p118, %p119
    %p121 = scmp.le.s32.totalorder 1, %s9
    %p122 = scmp.lt.s32.totalorder %s9, 3
    %p123 = pnand %p121, %p122
    %p124 = pneg %p123
    // Predicated region
    $region9: #{transformer_forward.26} parent=5 // pred_check
      _
    $region10: #{transformer_forward.26} parent=5 // pred_check_branch
      %126 = sbr.rel (%p123) target = $region12
    $region11: #{transformer_forward.26} parent=5 // pred_region
      %s127 = ssub.s32 %s9, 1
    $region12: #{transformer_forward.26} parent=5 // pred_fallthru
      _
    %p128 = scmp.lt.s32.totalorder %s9, 2
    // Predicated region
    $region13: #{transformer_forward.26} parent=5 // pred_check
      %p129 = pneg %p128
    $region14: #{transformer_forward.26} parent=5 // pred_check_branch
      %131 = sbr.rel (%p129) target = $region16
    $region15: #{transformer_forward.26} parent=5 // pred_region
      // Predicated region
      $region17: #{transformer_forward.26} parent=15 // pred_check
        %p132 = pneg %p29
      $region18: #{transformer_forward.26} parent=15 // pred_check_branch
        %134 = sbr.rel (%p132) target = $region20
      $region19: #{transformer_forward.26} parent=15 // pred_region
        %p135 = scmp.lt.s32.totalorder %s9, 1
        %s136 = scalar_select %p135, %s9, 1
        %s137 = smul.addr %s136, 8
        %s138 = scalar_lea.vmem %s0, %s137
      $region20: #{transformer_forward.26} parent=15 // pred_fallthru
        _
      // Predicated region
      $region21: #{transformer_forward.26} parent=15 // pred_check
        %p139 = pneg %p55
      $region22: #{transformer_forward.26} parent=15 // pred_check_branch
        %141 = sbr.rel (%p139) target = $region24
      $region23: #{transformer_forward.26} parent=15 // pred_region
        %p142 = scmp.lt.s32.totalorder %s9, 1
        %s143 = scalar_select %p142, %s9, 1
        %s144 = smul.addr %s143, 8
        %s145 = scalar_lea.vmem %s1, %s144
      $region24: #{transformer_forward.26} parent=15 // pred_fallthru
        _
      // Predicated region
      $region25: #{transformer_forward.26} parent=15 // pred_check
        %p146 = pneg %p81
      $region26: #{transformer_forward.26} parent=15 // pred_check_branch
        %148 = sbr.rel (%p146) target = $region28
      $region27: #{transformer_forward.26} parent=15 // pred_region
        %p149 = scmp.lt.s32.totalorder %s9, 1
        %s150 = scalar_select %p149, %s9, 1
        %s151 = scalar_lea.vmem %s2, %s150
      $region28: #{transformer_forward.26} parent=15 // pred_fallthru
        _
    $region16: #{transformer_forward.26} parent=5 // pred_fallthru
      _
    %p152 = scmp.le.s32.totalorder 1, %s9
    %p153 = scmp.lt.s32.totalorder %s9, 3
    %p154 = pnand %p152, %p153
    %p155 = pneg %p154
    // Predicated region
    $region29: #{transformer_forward.26} parent=5 // pred_check
      _
    $region30: #{transformer_forward.26} parent=5 // pred_check_branch
      %157 = sbr.rel (%p154) target = $region32
    $region31: #{transformer_forward.26} parent=5 // pred_region
      %s158 = ssub.s32 %s9, 1
      %p159 = scmp.lt.s32.totalorder %s14, 1
      %s160 = scalar_select %p159, %s14, 1
      %s161 = smul.addr %s160, 8
      %s162 = scalar_lea.vmem %s0, %s161
      %p163 = pneg %p35
      %p164 = pneg %p32
      %p165 = scmp.lt.s32.totalorder %s14, 1
      %s166 = scalar_select %p165, %s14, 1
      %s167 = smul.addr %s166, 8
      %s168 = scalar_lea.vmem %s1, %s167
      %p169 = pneg %p61
      %p170 = pneg %p58
      %p171 = scmp.lt.s32.totalorder %s14, 1
      %s172 = scalar_select %p171, %s14, 1
      %s173 = scalar_lea.vmem %s2, %s172
      %p174 = pneg %p87
      %p175 = pneg %p84
      %p176 = pneg %p113
      %p177 = pneg %p110
      %p178 = scmp.lt.s32.totalorder %s14, 1
      %s179 = scalar_select %p178, %s14, 1
      %s180 = smul.addr %s179, 8
      %s181 = scalar_lea.vmem %s3, %s180
      %p182 = scmp.lt.s32.totalorder %s14, 1
      %s183 = scalar_select %p182, %s14, 1
      %s184 = smul.addr %s183, 8
      %s185 = scalar_lea.vmem %s0, %s184
      %p186 = scmp.lt.s32.totalorder %s14, 1
      %s187 = scalar_select %p186, %s14, 1
      %s188 = smul.addr %s187, 8
      %s189 = scalar_lea.vmem %s1, %s188
      %p190 = scmp.lt.s32.totalorder %s14, 1
      %s191 = scalar_select %p190, %s14, 1
      %s192 = scalar_lea.vmem %s2, %s191
      %p193 = scmp.lt.s32.totalorder %s14, 1
      %s194 = scalar_select %p193, %s14, 1
      %s195 = smul.addr %s194, 8
      %s196 = scalar_lea.vmem %s3, %s195
      %v198 = vld [vmem:[%s185] sm:$0xff]
      %v199 = vpack.c.bf16 %v198, %v198
      %v200 = vld [vmem:[%s189] sm:$0xff]
      %v201 = vpack.c.bf16 %v200, %v200
      %v202 = vld [vmem:[%s192] sm:$0x1]
      %vm203 = vcmp.gt.f32.partialorder %v202, 0.5
      %v204 = vsel %vm203, 1, 0
      %v205 = vperm.slane %v204, 0
      %vm206 = vcmp.eq.s32.totalorder %v205, 1
      %vm207 = vcmask 64512
      %v209 = vsel %vm207, %v199, 0
      %v212 = vsel %vm207, %v201, 0
      %214 = vmatpush.bf16.xpose.msra.mxu0 0
      %215 = vmatpush.bf16.xpose.msra.mxu0 0
      %216 = vmatpush.bf16.xpose.msra.mxu0 0
      %217 = vmatpush.bf16.xpose.msra.mxu0 0
      %218 = vmatpush.bf16.xpose.msra.mxu0 0
      %219 = vmatpush.bf16.xpose.msra.mxu0 0
      %220 = vmatpush.bf16.xpose.msra.mxu0 0
      %221 = vmatpush.bf16.xpose.msra.mxu0 %v212
      %222 = vmatmul.bf16.gmra.mxu0 %v209
      %v223 = vpop.f32.mrf.mxu0
      %v224 = vadd.f32 0.0, %v223
      %v225 = vpop.f32.mrf.mxu0
      %226 = vdwg.mxu0
      %v227 = vmul.f32 %v224, 0.35355338
      %v228 = vsel %vm206, %v227, -1e+09
      %v229 = vsel %vm207, %v228, -inf
      %230 = vmax.xlane.f32.xlu0 %v229
      %v231 = vpop.xlane.xlu0 %230
      %v232 = vsub.f32 %v228, %v231
      %v233 = vmul.f32 %v232, 1.442695
      %v234 = vpow.pop %v233
      %v235 = vsel %vm207, %v234, 0.0
      %236 = vadd.xlane.f32.xlu0 %v235
      %v237 = vpop.xlane.xlu0 %236
      %v238 = vrcp.pop %v237
      %v239 = vmul.f32 %v234, %v238
      %v240 = vpack.c.bf16 %v239, %v239
      %v242 = vunpack.c.l.b16 %v201
      %v243 = vpack.c.b16 %v242, %v242
      %244 = vrot.lane.b32.xlu0 %v243, 96
      %v245 = vpop.permute.xlu0 %244
      %v247 = vsel %vm207, %v240, 0
      %vm249 = vcmask 1043456
      %v251 = vsel %vm249, %v245, 0
      %253 = vmatpush.bf16.msra.mxu0 0
      %254 = vmatpush.bf16.msra.mxu0 0
      %255 = vmatpush.bf16.msra.mxu0 0
      %256 = vmatpush.bf16.msra.mxu0 0
      %257 = vmatpush.bf16.msra.mxu0 0
      %258 = vmatpush.bf16.msra.mxu0 0
      %259 = vmatpush.bf16.msra.mxu0 0
      %260 = vmatpush.bf16.msra.mxu0 %v251
      %261 = vmatmul.bf16.gmra.mxu0 %v247
      %v262 = vpop.f32.mrf.mxu0
      %v263 = vadd.f32 0.0, %v262
      %v264 = vpop.f32.mrf.mxu0
      %265 = vdwg.mxu0
      %v267 = vunpack.c.l.b16 %v199
      %v268 = vpack.c.b16 %v267, %v267
      %269 = vrot.lane.b32.xlu0 %v268, 120
      %v270 = vpop.permute.xlu0 %269
      %271 = vrot.lane.b32.xlu0 %v243, 120
      %v272 = vpop.permute.xlu0 %271
      %v274 = vsel %vm207, %v270, 0
      %v277 = vsel %vm207, %v272, 0
      %279 = vmatpush.bf16.xpose.msra.mxu0 0
      %280 = vmatpush.bf16.xpose.msra.mxu0 0
      %281 = vmatpush.bf16.xpose.msra.mxu0 0
      %282 = vmatpush.bf16.xpose.msra.mxu0 0
      %283 = vmatpush.bf16.xpose.msra.mxu0 0
      %284 = vmatpush.bf16.xpose.msra.mxu0 0
      %285 = vmatpush.bf16.xpose.msra.mxu0 0
      %286 = vmatpush.bf16.xpose.msra.mxu0 %v277
      %287 = vmatmul.bf16.gmra.mxu0 %v274
      %v288 = vpop.f32.mrf.mxu0
      %v289 = vadd.f32 0.0, %v288
      %v290 = vpop.f32.mrf.mxu0
      %291 = vdwg.mxu0
      %v292 = vmul.f32 %v289, 0.35355338
      %v293 = vsel %vm206, %v292, -1e+09
      %v294 = vsel %vm207, %v293, -inf
      %295 = vmax.xlane.f32.xlu0 %v294
      %v296 = vpop.xlane.xlu0 %295
      %v297 = vsub.f32 %v293, %v296
      %v298 = vmul.f32 %v297, 1.442695
      %v299 = vpow.pop %v298
      %v300 = vsel %vm207, %v299, 0.0
      %301 = vadd.xlane.f32.xlu0 %v300
      %v302 = vpop.xlane.xlu0 %301
      %v303 = vrcp.pop %v302
      %v304 = vmul.f32 %v299, %v303
      %v305 = vpack.c.bf16 %v304, %v304
      %306 = vrot.lane.b32.xlu0 %v243, 88
      %v307 = vpop.permute.xlu0 %306
      %v309 = vsel %vm207, %v305, 0
      %v312 = vsel %vm249, %v307, 0
      %314 = vmatpush.bf16.msra.mxu0 0
      %315 = vmatpush.bf16.msra.mxu0 0
      %316 = vmatpush.bf16.msra.mxu0 0
      %317 = vmatpush.bf16.msra.mxu0 0
      %318 = vmatpush.bf16.msra.mxu0 0
      %319 = vmatpush.bf16.msra.mxu0 0
      %320 = vmatpush.bf16.msra.mxu0 0
      %321 = vmatpush.bf16.msra.mxu0 %v312
      %322 = vmatmul.bf16.gmra.mxu0 %v309
      %v323 = vpop.f32.mrf.mxu0
      %v324 = vadd.f32 0.0, %v323
      %v325 = vpop.f32.mrf.mxu0
      %326 = vdwg.mxu0
      %327 = vrot.lane.b32.xlu0 %v268, 112
      %v328 = vpop.permute.xlu0 %327
      %329 = vrot.lane.b32.xlu0 %v243, 112
      %v330 = vpop.permute.xlu0 %329
      %v332 = vsel %vm207, %v328, 0
      %v335 = vsel %vm207, %v330, 0
      %337 = vmatpush.bf16.xpose.msra.mxu0 0
      %338 = vmatpush.bf16.xpose.msra.mxu0 0
      %339 = vmatpush.bf16.xpose.msra.mxu0 0
      %340 = vmatpush.bf16.xpose.msra.mxu0 0
      %341 = vmatpush.bf16.xpose.msra.mxu0 0
      %342 = vmatpush.bf16.xpose.msra.mxu0 0
      %343 = vmatpush.bf16.xpose.msra.mxu0 0
      %344 = vmatpush.bf16.xpose.msra.mxu0 %v335
      %345 = vmatmul.bf16.gmra.mxu0 %v332
      %v346 = vpop.f32.mrf.mxu0
      %v347 = vadd.f32 0.0, %v346
      %v348 = vpop.f32.mrf.mxu0
      %349 = vdwg.mxu0
      %v350 = vmul.f32 %v347, 0.35355338
      %v351 = vsel %vm206, %v350, -1e+09
      %v352 = vsel %vm207, %v351, -inf
      %353 = vmax.xlane.f32.xlu0 %v352
      %v354 = vpop.xlane.xlu0 %353
      %v355 = vsub.f32 %v351, %v354
      %v356 = vmul.f32 %v355, 1.442695
      %v357 = vpow.pop %v356
      %v358 = vsel %vm207, %v357, 0.0
      %359 = vadd.xlane.f32.xlu0 %v358
      %v360 = vpop.xlane.xlu0 %359
      %v361 = vrcp.pop %v360
      %v362 = vmul.f32 %v357, %v361
      %v363 = vpack.c.bf16 %v362, %v362
      %364 = vrot.lane.b32.xlu0 %v243, 80
      %v365 = vpop.permute.xlu0 %364
      %v367 = vsel %vm207, %v363, 0
      %v370 = vsel %vm249, %v365, 0
      %372 = vmatpush.bf16.msra.mxu0 0
      %373 = vmatpush.bf16.msra.mxu0 0
      %374 = vmatpush.bf16.msra.mxu0 0
      %375 = vmatpush.bf16.msra.mxu0 0
      %376 = vmatpush.bf16.msra.mxu0 0
      %377 = vmatpush.bf16.msra.mxu0 0
      %378 = vmatpush.bf16.msra.mxu0 0
      %379 = vmatpush.bf16.msra.mxu0 %v370
      %380 = vmatmul.bf16.gmra.mxu0 %v367
      %v381 = vpop.f32.mrf.mxu0
      %v382 = vadd.f32 0.0, %v381
      %v383 = vpop.f32.mrf.mxu0
      %384 = vdwg.mxu0
      %385 = vrot.lane.b32.xlu0 %v268, 104
      %v386 = vpop.permute.xlu0 %385
      %387 = vrot.lane.b32.xlu0 %v243, 104
      %v388 = vpop.permute.xlu0 %387
      %v390 = vsel %vm207, %v386, 0
      %v393 = vsel %vm207, %v388, 0
      %395 = vmatpush.bf16.xpose.msra.mxu0 0
      %396 = vmatpush.bf16.xpose.msra.mxu0 0
      %397 = vmatpush.bf16.xpose.msra.mxu0 0
      %398 = vmatpush.bf16.xpose.msra.mxu0 0
      %399 = vmatpush.bf16.xpose.msra.mxu0 0
      %400 = vmatpush.bf16.xpose.msra.mxu0 0
      %401 = vmatpush.bf16.xpose.msra.mxu0 0
      %402 = vmatpush.bf16.xpose.msra.mxu0 %v393
      %403 = vmatmul.bf16.gmra.mxu0 %v390
      %v404 = vpop.f32.mrf.mxu0
      %v405 = vadd.f32 0.0, %v404
      %v406 = vpop.f32.mrf.mxu0
      %407 = vdwg.mxu0
      %v408 = vmul.f32 %v405, 0.35355338
      %v409 = vsel %vm206, %v408, -1e+09
      %v410 = vsel %vm207, %v409, -inf
      %411 = vmax.xlane.f32.xlu0 %v410
      %v412 = vpop.xlane.xlu0 %411
      %v413 = vsub.f32 %v409, %v412
      %v414 = vmul.f32 %v413, 1.442695
      %v415 = vpow.pop %v414
      %v416 = vsel %vm207, %v415, 0.0
      %417 = vadd.xlane.f32.xlu0 %v416
      %v418 = vpop.xlane.xlu0 %417
      %v419 = vrcp.pop %v418
      %v420 = vmul.f32 %v415, %v419
      %v421 = vpack.c.bf16 %v420, %v420
      %422 = vrot.lane.b32.xlu0 %v243, 72
      %v423 = vpop.permute.xlu0 %422
      %v425 = vsel %vm207, %v421, 0
      %v428 = vsel %vm249, %v423, 0
      %430 = vmatpush.bf16.msra.mxu0 0
      %431 = vmatpush.bf16.msra.mxu0 0
      %432 = vmatpush.bf16.msra.mxu0 0
      %433 = vmatpush.bf16.msra.mxu0 0
      %434 = vmatpush.bf16.msra.mxu0 0
      %435 = vmatpush.bf16.msra.mxu0 0
      %436 = vmatpush.bf16.msra.mxu0 0
      %437 = vmatpush.bf16.msra.mxu0 %v428
      %438 = vmatmul.bf16.gmra.mxu0 %v425
      %v439 = vpop.f32.mrf.mxu0
      %v440 = vadd.f32 0.0, %v439
      %v441 = vpop.f32.mrf.mxu0
      %442 = vdwg.mxu0
      %444 = vrot.lane.b32.xlu0 %v324, 8
      %v445 = vpop.permute.xlu0 %444
      %448 = vrot.lane.b32.xlu0 %v382, 16
      %v449 = vpop.permute.xlu0 %448
      %452 = vrot.lane.b32.xlu0 %v440, 24
      %v453 = vpop.permute.xlu0 %452
      %v455 = vsel %vm207, %v263, %v445
      %vm456 = vcmask 130048
      %v457 = vsel %vm456, %v455, %v449
      %vm458 = vcmask 195584
      %v459 = vsel %vm458, %v457, %v453
      %vm460 = vcmask 261120
      %461 = vst.msk [vmem:[%s196] sm:$0xff] %vm460, %v459
      %p462 = scmp.lt.s32.totalorder %s14, 1
      %s463 = scalar_select %p462, %s14, 1
      %s464 = smul.addr %s463, 8
      %s465 = scalar_lea.vmem %s3, %s464
      // Predicated region
      $region33: #{transformer_forward.26} parent=31 // pred_check
        %p466 = pneg %p110
      $region34: #{transformer_forward.26} parent=31 // pred_check_branch
        %468 = sbr.rel (%p466) target = $region36
      $region35: #{transformer_forward.26} parent=31 // pred_region
        _
      $region36: #{transformer_forward.26} parent=31 // pred_fallthru
        _
    $region32: #{transformer_forward.26} parent=5 // pred_fallthru
      _
    %p469 = scmp.le.s32.totalorder 2, %s9
    // Predicated region
    $region37: #{transformer_forward.26} parent=5 // pred_check
      %p470 = pneg %p469
    $region38: #{transformer_forward.26} parent=5 // pred_check_branch
      %472 = sbr.rel (%p470) target = $region40
    $region39: #{transformer_forward.26} parent=5 // pred_region
      %s473 = ssub.s32 %s9, 2
      // Predicated region
      $region41: #{transformer_forward.26} parent=39 // pred_check
        %p474 = pneg %p116
      $region42: #{transformer_forward.26} parent=39 // pred_check_branch
        %476 = sbr.rel (%p474) target = $region44
      $region43: #{transformer_forward.26} parent=39 // pred_region
        %p477 = scmp.lt.s32.totalorder %s15, 1
        %s478 = scalar_select %p477, %s15, 1
        %s479 = smul.addr %s478, 8
        %s480 = scalar_lea.vmem %s3, %s479
      $region44: #{transformer_forward.26} parent=39 // pred_fallthru
        _
    $region40: #{transformer_forward.26} parent=5 // pred_fallthru
      _
  $region6: #{transformer_forward.26} parent=0 // loop_footer
    %s13 = sadd.s32 1, %s9
  $region7: #{transformer_forward.26} parent=0 // loop_footer_branch
    %8 = sbr.rel target = $region3
  $region8: #{transformer_forward.26} parent=0 // loop_exit
    _

// kernel: transformer_forward.34
$region0: #{transformer_forward.34}
  #allocation0 [shape = 'u32[]', space=smem, size = 0x4, offset = 0x4, fixed_abs, tag = 'smem constant byte address 0x4 - core index']
  #allocation1 [shape = 'u32[72,128]{1,0:T(1,128)}', space=vmem, size = 0x9000, scoped, tag = 'internal scratch']
  %s0 = inlined_call_operand.vmem [shape: f32[2,8,32], index: 0, kind: input, shape index: {}]
  %s1 = inlined_call_operand.vmem [shape: f32[2,8,64], index: 1, kind: input, shape index: {}]
  %s2 = inlined_call_operand.vmem [shape: f32[2,1,8], index: 2, kind: input, shape index: {}]
  %s3 = inlined_call_operand.vmem [shape: f32[2,8,32], index: 3, kind: output, shape index: {}]
  %s4 = sld [smem:[#allocation0]]
  $region45: #{transformer_forward.34} parent=0
    _
  %s6 = ssub.s32 1, %s4
  %s7 = scalar_select 0, %s6, %s4
  loop: start=0, step=1, limit=4
  $region2: #{transformer_forward.34} parent=0 // loop_pre_header
    _
  $region3: #{transformer_forward.34} parent=0 // loop_header
    %s9 = sphi 0, %s13
    %p10 = scmp.ge.s32.totalorder %s9, 4
    %s19 = sphi 0, %s21
    %s22 = sphi 0, %s19
    %s23 = sphi 0, %s22
    %s39 = sphi 0, %s23
    %s45 = sphi 0, %s47
    %s48 = sphi 0, %s45
    %s49 = sphi 0, %s48
    %s65 = sphi 0, %s49
    %s71 = sphi 0, %s73
    %s74 = sphi 0, %s71
    %s75 = sphi 0, %s74
    %s91 = sphi 0, %s75
    %s97 = sphi 0, %s99
    %s100 = sphi 0, %s97
    %s101 = sphi 0, %s100
    %s117 = sphi 0, %s101
  $region4: #{transformer_forward.34} parent=0 // loop_header_branch
    %12 = sbr.rel (%p10) target = $region8
  $region5: #{transformer_forward.34} parent=0 // loop_body
    %s14 = ssub.s32 %s9, 1
    %s15 = ssub.s32 %s9, 2
    %s16 = sadd.s32 %s9, 1
    %s17 = ssub.s32 %s9, %s16
    %p18 = scmp.eq.s32.totalorder %s17, 0
    %s20 = sadd.s32 %s19, 1
    %s21 = scalar_select %p18, %s19, %s20
    %p24 = pneg %p18
    %p25 = scmp.eq.s32.totalorder %s9, 1
    %p26 = por %p24, %p25
    %p27 = scmp.ne.s32.totalorder %s19, %s22
    %p28 = scmp.eq.s32.totalorder %s9, 0
    %p29 = por %p27, %p28
    %p30 = scmp.ne.s32.totalorder %s19, %s22
    %p31 = scmp.eq.s32.totalorder %s14, 1
    %p32 = por %p30, %p31
    %p33 = scmp.ne.s32.totalorder %s22, %s23
    %p34 = scmp.eq.s32.totalorder %s14, 0
    %p35 = por %p33, %p34
    %p36 = scmp.ne.s32.totalorder %s22, %s23
    %p37 = scmp.eq.s32.totalorder %s15, 1
    %p38 = por %p36, %p37
    %p40 = scmp.ne.s32.totalorder %s23, %s39
    %p41 = scmp.eq.s32.totalorder %s15, 0
    %p42 = por %p40, %p41
    %s43 = ssub.s32 %s9, %s16
    %p44 = scmp.eq.s32.totalorder %s43, 0
    %s46 = sadd.s32 %s45, 1
    %s47 = scalar_select %p44, %s45, %s46
    %p50 = pneg %p44
    %p51 = scmp.eq.s32.totalorder %s9, 1
    %p52 = por %p50, %p51
    %p53 = scmp.ne.s32.totalorder %s45, %s48
    %p54 = scmp.eq.s32.totalorder %s9, 0
    %p55 = por %p53, %p54
    %p56 = scmp.ne.s32.totalorder %s45, %s48
    %p57 = scmp.eq.s32.totalorder %s14, 1
    %p58 = por %p56, %p57
    %p59 = scmp.ne.s32.totalorder %s48, %s49
    %p60 = scmp.eq.s32.totalorder %s14, 0
    %p61 = por %p59, %p60
    %p62 = scmp.ne.s32.totalorder %s48, %s49
    %p63 = scmp.eq.s32.totalorder %s15, 1
    %p64 = por %p62, %p63
    %p66 = scmp.ne.s32.totalorder %s49, %s65
    %p67 = scmp.eq.s32.totalorder %s15, 0
    %p68 = por %p66, %p67
    %s69 = ssub.s32 %s9, %s16
    %p70 = scmp.eq.s32.totalorder %s69, 0
    %s72 = sadd.s32 %s71, 1
    %s73 = scalar_select %p70, %s71, %s72
    %p76 = pneg %p70
    %p77 = scmp.eq.s32.totalorder %s9, 1
    %p78 = por %p76, %p77
    %p79 = scmp.ne.s32.totalorder %s71, %s74
    %p80 = scmp.eq.s32.totalorder %s9, 0
    %p81 = por %p79, %p80
    %p82 = scmp.ne.s32.totalorder %s71, %s74
    %p83 = scmp.eq.s32.totalorder %s14, 1
    %p84 = por %p82, %p83
    %p85 = scmp.ne.s32.totalorder %s74, %s75
    %p86 = scmp.eq.s32.totalorder %s14, 0
    %p87 = por %p85, %p86
    %p88 = scmp.ne.s32.totalorder %s74, %s75
    %p89 = scmp.eq.s32.totalorder %s15, 1
    %p90 = por %p88, %p89
    %p92 = scmp.ne.s32.totalorder %s75, %s91
    %p93 = scmp.eq.s32.totalorder %s15, 0
    %p94 = por %p92, %p93
    %s95 = ssub.s32 %s9, %s16
    %p96 = scmp.eq.s32.totalorder %s95, 0
    %s98 = sadd.s32 %s97, 1
    %s99 = scalar_select %p96, %s97, %s98
    %p102 = pneg %p96
    %p103 = scmp.eq.s32.totalorder %s9, 1
    %p104 = por %p102, %p103
    %p105 = scmp.ne.s32.totalorder %s97, %s100
    %p106 = scmp.eq.s32.totalorder %s9, 0
    %p107 = por %p105, %p106
    %p108 = scmp.ne.s32.totalorder %s97, %s100
    %p109 = scmp.eq.s32.totalorder %s14, 1
    %p110 = por %p108, %p109
    %p111 = scmp.ne.s32.totalorder %s100, %s101
    %p112 = scmp.eq.s32.totalorder %s14, 0
    %p113 = por %p111, %p112
    %p114 = scmp.ne.s32.totalorder %s100, %s101
    %p115 = scmp.eq.s32.totalorder %s15, 1
    %p116 = por %p114, %p115
    %p118 = scmp.ne.s32.totalorder %s101, %s117
    %p119 = scmp.eq.s32.totalorder %s15, 0
    %p120 = por %p118, %p119
    %p121 = scmp.le.s32.totalorder 1, %s9
    %p122 = scmp.lt.s32.totalorder %s9, 3
    %p123 = pnand %p121, %p122
    %p124 = pneg %p123
    // Predicated region
    $region9: #{transformer_forward.34} parent=5 // pred_check
      _
    $region10: #{transformer_forward.34} parent=5 // pred_check_branch
      %126 = sbr.rel (%p123) target = $region12
    $region11: #{transformer_forward.34} parent=5 // pred_region
      %s127 = ssub.s32 %s9, 1
    $region12: #{transformer_forward.34} parent=5 // pred_fallthru
      _
    %p128 = scmp.lt.s32.totalorder %s9, 2
    // Predicated region
    $region13: #{transformer_forward.34} parent=5 // pred_check
      %p129 = pneg %p128
    $region14: #{transformer_forward.34} parent=5 // pred_check_branch
      %131 = sbr.rel (%p129) target = $region16
    $region15: #{transformer_forward.34} parent=5 // pred_region
      // Predicated region
      $region17: #{transformer_forward.34} parent=15 // pred_check
        %p132 = pneg %p29
      $region18: #{transformer_forward.34} parent=15 // pred_check_branch
        %134 = sbr.rel (%p132) target = $region20
      $region19: #{transformer_forward.34} parent=15 // pred_region
        %p135 = scmp.lt.s32.totalorder %s9, 1
        %s136 = scalar_select %p135, %s9, 1
        %s137 = smul.addr %s136, 8
        %s138 = scalar_lea.vmem %s0, %s137
      $region20: #{transformer_forward.34} parent=15 // pred_fallthru
        _
      // Predicated region
      $region21: #{transformer_forward.34} parent=15 // pred_check
        %p139 = pneg %p55
      $region22: #{transformer_forward.34} parent=15 // pred_check_branch
        %141 = sbr.rel (%p139) target = $region24
      $region23: #{transformer_forward.34} parent=15 // pred_region
        %p142 = scmp.lt.s32.totalorder %s9, 1
        %s143 = scalar_select %p142, %s9, 1
        %s144 = smul.addr %s143, 8
        %s145 = scalar_lea.vmem %s1, %s144
      $region24: #{transformer_forward.34} parent=15 // pred_fallthru
        _
      // Predicated region
      $region25: #{transformer_forward.34} parent=15 // pred_check
        %p146 = pneg %p81
      $region26: #{transformer_forward.34} parent=15 // pred_check_branch
        %148 = sbr.rel (%p146) target = $region28
      $region27: #{transformer_forward.34} parent=15 // pred_region
        %p149 = scmp.lt.s32.totalorder %s9, 1
        %s150 = scalar_select %p149, %s9, 1
        %s151 = scalar_lea.vmem %s2, %s150
      $region28: #{transformer_forward.34} parent=15 // pred_fallthru
        _
    $region16: #{transformer_forward.34} parent=5 // pred_fallthru
      _
    %p152 = scmp.le.s32.totalorder 1, %s9
    %p153 = scmp.lt.s32.totalorder %s9, 3
    %p154 = pnand %p152, %p153
    %p155 = pneg %p154
    // Predicated region
    $region29: #{transformer_forward.34} parent=5 // pred_check
      _
    $region30: #{transformer_forward.34} parent=5 // pred_check_branch
      %157 = sbr.rel (%p154) target = $region32
    $region31: #{transformer_forward.34} parent=5 // pred_region
      %s158 = ssub.s32 %s9, 1
      %p159 = scmp.lt.s32.totalorder %s14, 1
      %s160 = scalar_select %p159, %s14, 1
      %s161 = smul.addr %s160, 8
      %s162 = scalar_lea.vmem %s0, %s161
      %p163 = pneg %p35
      %p164 = pneg %p32
      %p165 = scmp.lt.s32.totalorder %s14, 1
      %s166 = scalar_select %p165, %s14, 1
      %s167 = smul.addr %s166, 8
      %s168 = scalar_lea.vmem %s1, %s167
      %p169 = pneg %p61
      %p170 = pneg %p58
      %p171 = scmp.lt.s32.totalorder %s14, 1
      %s172 = scalar_select %p171, %s14, 1
      %s173 = scalar_lea.vmem %s2, %s172
      %p174 = pneg %p87
      %p175 = pneg %p84
      %p176 = pneg %p113
      %p177 = pneg %p110
      %p178 = scmp.lt.s32.totalorder %s14, 1
      %s179 = scalar_select %p178, %s14, 1
      %s180 = smul.addr %s179, 8
      %s181 = scalar_lea.vmem %s3, %s180
      %p182 = scmp.lt.s32.totalorder %s14, 1
      %s183 = scalar_select %p182, %s14, 1
      %s184 = smul.addr %s183, 8
      %s185 = scalar_lea.vmem %s0, %s184
      %p186 = scmp.lt.s32.totalorder %s14, 1
      %s187 = scalar_select %p186, %s14, 1
      %s188 = smul.addr %s187, 8
      %s189 = scalar_lea.vmem %s1, %s188
      %p190 = scmp.lt.s32.totalorder %s14, 1
      %s191 = scalar_select %p190, %s14, 1
      %s192 = scalar_lea.vmem %s2, %s191
      %p193 = scmp.lt.s32.totalorder %s14, 1
      %s194 = scalar_select %p193, %s14, 1
      %s195 = smul.addr %s194, 8
      %s196 = scalar_lea.vmem %s3, %s195
      %v198 = vld [vmem:[%s185] sm:$0xff]
      %v199 = vpack.c.bf16 %v198, %v198
      %v200 = vld [vmem:[%s189] sm:$0xff]
      %v201 = vpack.c.bf16 %v200, %v200
      %v202 = vld [vmem:[%s192] sm:$0x1]
      %vm203 = vcmp.gt.f32.partialorder %v202, 0.5
      %v204 = vsel %vm203, 1, 0
      %v205 = vperm.slane %v204, 0
      %vm206 = vcmp.eq.s32.totalorder %v205, 1
      %v207 = vlaneseq
      %v208 = vshrl.u32 %v207, 7
      %v209 = vlaneseq
      %v210 = vand.u32 %v209, 127
      %vm211 = vcmp.ge.s32.totalorder %v208, %v210
      %vm212 = vmand %vm206, %vm211
      %vm213 = vcmask 64512
      %v215 = vsel %vm213, %v199, 0
      %v218 = vsel %vm213, %v201, 0
      %220 = vmatpush.bf16.xpose.msra.mxu0 0
      %221 = vmatpush.bf16.xpose.msra.mxu0 0
      %222 = vmatpush.bf16.xpose.msra.mxu0 0
      %223 = vmatpush.bf16.xpose.msra.mxu0 0
      %224 = vmatpush.bf16.xpose.msra.mxu0 0
      %225 = vmatpush.bf16.xpose.msra.mxu0 0
      %226 = vmatpush.bf16.xpose.msra.mxu0 0
      %227 = vmatpush.bf16.xpose.msra.mxu0 %v218
      %228 = vmatmul.bf16.gmra.mxu0 %v215
      %v229 = vpop.f32.mrf.mxu0
      %v230 = vadd.f32 0.0, %v229
      %v231 = vpop.f32.mrf.mxu0
      %232 = vdwg.mxu0
      %v233 = vmul.f32 %v230, 0.35355338
      %v234 = vsel %vm212, %v233, -1e+09
      %v235 = vsel %vm213, %v234, -inf
      %236 = vmax.xlane.f32.xlu0 %v235
      %v237 = vpop.xlane.xlu0 %236
      %v238 = vsub.f32 %v234, %v237
      %v239 = vmul.f32 %v238, 1.442695
      %v240 = vpow.pop %v239
      %v241 = vsel %vm213, %v240, 0.0
      %242 = vadd.xlane.f32.xlu0 %v241
      %v243 = vpop.xlane.xlu0 %242
      %v244 = vrcp.pop %v243
      %v245 = vmul.f32 %v240, %v244
      %v246 = vpack.c.bf16 %v245, %v245
      %v248 = vunpack.c.l.b16 %v201
      %v249 = vpack.c.b16 %v248, %v248
      %250 = vrot.lane.b32.xlu0 %v249, 96
      %v251 = vpop.permute.xlu0 %250
      %v253 = vsel %vm213, %v246, 0
      %vm255 = vcmask 1043456
      %v257 = vsel %vm255, %v251, 0
      %259 = vmatpush.bf16.msra.mxu0 0
      %260 = vmatpush.bf16.msra.mxu0 0
      %261 = vmatpush.bf16.msra.mxu0 0
      %262 = vmatpush.bf16.msra.mxu0 0
      %263 = vmatpush.bf16.msra.mxu0 0
      %264 = vmatpush.bf16.msra.mxu0 0
      %265 = vmatpush.bf16.msra.mxu0 0
      %266 = vmatpush.bf16.msra.mxu0 %v257
      %267 = vmatmul.bf16.gmra.mxu0 %v253
      %v268 = vpop.f32.mrf.mxu0
      %v269 = vadd.f32 0.0, %v268
      %v270 = vpop.f32.mrf.mxu0
      %271 = vdwg.mxu0
      %v273 = vunpack.c.l.b16 %v199
      %v274 = vpack.c.b16 %v273, %v273
      %275 = vrot.lane.b32.xlu0 %v274, 120
      %v276 = vpop.permute.xlu0 %275
      %277 = vrot.lane.b32.xlu0 %v249, 120
      %v278 = vpop.permute.xlu0 %277
      %v280 = vsel %vm213, %v276, 0
      %v283 = vsel %vm213, %v278, 0
      %285 = vmatpush.bf16.xpose.msra.mxu0 0
      %286 = vmatpush.bf16.xpose.msra.mxu0 0
      %287 = vmatpush.bf16.xpose.msra.mxu0 0
      %288 = vmatpush.bf16.xpose.msra.mxu0 0
      %289 = vmatpush.bf16.xpose.msra.mxu0 0
      %290 = vmatpush.bf16.xpose.msra.mxu0 0
      %291 = vmatpush.bf16.xpose.msra.mxu0 0
      %292 = vmatpush.bf16.xpose.msra.mxu0 %v283
      %293 = vmatmul.bf16.gmra.mxu0 %v280
      %v294 = vpop.f32.mrf.mxu0
      %v295 = vadd.f32 0.0, %v294
      %v296 = vpop.f32.mrf.mxu0
      %297 = vdwg.mxu0
      %v298 = vmul.f32 %v295, 0.35355338
      %v299 = vsel %vm212, %v298, -1e+09
      %v300 = vsel %vm213, %v299, -inf
      %301 = vmax.xlane.f32.xlu0 %v300
      %v302 = vpop.xlane.xlu0 %301
      %v303 = vsub.f32 %v299, %v302
      %v304 = vmul.f32 %v303, 1.442695
      %v305 = vpow.pop %v304
      %v306 = vsel %vm213, %v305, 0.0
      %307 = vadd.xlane.f32.xlu0 %v306
      %v308 = vpop.xlane.xlu0 %307
      %v309 = vrcp.pop %v308
      %v310 = vmul.f32 %v305, %v309
      %v311 = vpack.c.bf16 %v310, %v310
      %312 = vrot.lane.b32.xlu0 %v249, 88
      %v313 = vpop.permute.xlu0 %312
      %v315 = vsel %vm213, %v311, 0
      %v318 = vsel %vm255, %v313, 0
      %320 = vmatpush.bf16.msra.mxu0 0
      %321 = vmatpush.bf16.msra.mxu0 0
      %322 = vmatpush.bf16.msra.mxu0 0
      %323 = vmatpush.bf16.msra.mxu0 0
      %324 = vmatpush.bf16.msra.mxu0 0
      %325 = vmatpush.bf16.msra.mxu0 0
      %326 = vmatpush.bf16.msra.mxu0 0
      %327 = vmatpush.bf16.msra.mxu0 %v318
      %328 = vmatmul.bf16.gmra.mxu0 %v315
      %v329 = vpop.f32.mrf.mxu0
      %v330 = vadd.f32 0.0, %v329
      %v331 = vpop.f32.mrf.mxu0
      %332 = vdwg.mxu0
      %333 = vrot.lane.b32.xlu0 %v274, 112
      %v334 = vpop.permute.xlu0 %333
      %335 = vrot.lane.b32.xlu0 %v249, 112
      %v336 = vpop.permute.xlu0 %335
      %v338 = vsel %vm213, %v334, 0
      %v341 = vsel %vm213, %v336, 0
      %343 = vmatpush.bf16.xpose.msra.mxu0 0
      %344 = vmatpush.bf16.xpose.msra.mxu0 0
      %345 = vmatpush.bf16.xpose.msra.mxu0 0
      %346 = vmatpush.bf16.xpose.msra.mxu0 0
      %347 = vmatpush.bf16.xpose.msra.mxu0 0
      %348 = vmatpush.bf16.xpose.msra.mxu0 0
      %349 = vmatpush.bf16.xpose.msra.mxu0 0
      %350 = vmatpush.bf16.xpose.msra.mxu0 %v341
      %351 = vmatmul.bf16.gmra.mxu0 %v338
      %v352 = vpop.f32.mrf.mxu0
      %v353 = vadd.f32 0.0, %v352
      %v354 = vpop.f32.mrf.mxu0
      %355 = vdwg.mxu0
      %v356 = vmul.f32 %v353, 0.35355338
      %v357 = vsel %vm212, %v356, -1e+09
      %v358 = vsel %vm213, %v357, -inf
      %359 = vmax.xlane.f32.xlu0 %v358
      %v360 = vpop.xlane.xlu0 %359
      %v361 = vsub.f32 %v357, %v360
      %v362 = vmul.f32 %v361, 1.442695
      %v363 = vpow.pop %v362
      %v364 = vsel %vm213, %v363, 0.0
      %365 = vadd.xlane.f32.xlu0 %v364
      %v366 = vpop.xlane.xlu0 %365
      %v367 = vrcp.pop %v366
      %v368 = vmul.f32 %v363, %v367
      %v369 = vpack.c.bf16 %v368, %v368
      %370 = vrot.lane.b32.xlu0 %v249, 80
      %v371 = vpop.permute.xlu0 %370
      %v373 = vsel %vm213, %v369, 0
      %v376 = vsel %vm255, %v371, 0
      %378 = vmatpush.bf16.msra.mxu0 0
      %379 = vmatpush.bf16.msra.mxu0 0
      %380 = vmatpush.bf16.msra.mxu0 0
      %381 = vmatpush.bf16.msra.mxu0 0
      %382 = vmatpush.bf16.msra.mxu0 0
      %383 = vmatpush.bf16.msra.mxu0 0
      %384 = vmatpush.bf16.msra.mxu0 0
      %385 = vmatpush.bf16.msra.mxu0 %v376
      %386 = vmatmul.bf16.gmra.mxu0 %v373
      %v387 = vpop.f32.mrf.mxu0
      %v388 = vadd.f32 0.0, %v387
      %v389 = vpop.f32.mrf.mxu0
      %390 = vdwg.mxu0
      %391 = vrot.lane.b32.xlu0 %v274, 104
      %v392 = vpop.permute.xlu0 %391
      %393 = vrot.lane.b32.xlu0 %v249, 104
      %v394 = vpop.permute.xlu0 %393
      %v396 = vsel %vm213, %v392, 0
      %v399 = vsel %vm213, %v394, 0
      %401 = vmatpush.bf16.xpose.msra.mxu0 0
      %402 = vmatpush.bf16.xpose.msra.mxu0 0
      %403 = vmatpush.bf16.xpose.msra.mxu0 0
      %404 = vmatpush.bf16.xpose.msra.mxu0 0
      %405 = vmatpush.bf16.xpose.msra.mxu0 0
      %406 = vmatpush.bf16.xpose.msra.mxu0 0
      %407 = vmatpush.bf16.xpose.msra.mxu0 0
      %408 = vmatpush.bf16.xpose.msra.mxu0 %v399
      %409 = vmatmul.bf16.gmra.mxu0 %v396
      %v410 = vpop.f32.mrf.mxu0
      %v411 = vadd.f32 0.0, %v410
      %v412 = vpop.f32.mrf.mxu0
      %413 = vdwg.mxu0
      %v414 = vmul.f32 %v411, 0.35355338
      %v415 = vsel %vm212, %v414, -1e+09
      %v416 = vsel %vm213, %v415, -inf
      %417 = vmax.xlane.f32.xlu0 %v416
      %v418 = vpop.xlane.xlu0 %417
      %v419 = vsub.f32 %v415, %v418
      %v420 = vmul.f32 %v419, 1.442695
      %v421 = vpow.pop %v420
      %v422 = vsel %vm213, %v421, 0.0
      %423 = vadd.xlane.f32.xlu0 %v422
      %v424 = vpop.xlane.xlu0 %423
      %v425 = vrcp.pop %v424
      %v426 = vmul.f32 %v421, %v425
      %v427 = vpack.c.bf16 %v426, %v426
      %428 = vrot.lane.b32.xlu0 %v249, 72
      %v429 = vpop.permute.xlu0 %428
      %v431 = vsel %vm213, %v427, 0
      %v434 = vsel %vm255, %v429, 0
      %436 = vmatpush.bf16.msra.mxu0 0
      %437 = vmatpush.bf16.msra.mxu0 0
      %438 = vmatpush.bf16.msra.mxu0 0
      %439 = vmatpush.bf16.msra.mxu0 0
      %440 = vmatpush.bf16.msra.mxu0 0
      %441 = vmatpush.bf16.msra.mxu0 0
      %442 = vmatpush.bf16.msra.mxu0 0
      %443 = vmatpush.bf16.msra.mxu0 %v434
      %444 = vmatmul.bf16.gmra.mxu0 %v431
      %v445 = vpop.f32.mrf.mxu0
      %v446 = vadd.f32 0.0, %v445
      %v447 = vpop.f32.mrf.mxu0
      %448 = vdwg.mxu0
      %450 = vrot.lane.b32.xlu0 %v330, 8
      %v451 = vpop.permute.xlu0 %450
      %454 = vrot.lane.b32.xlu0 %v388, 16
      %v455 = vpop.permute.xlu0 %454
      %458 = vrot.lane.b32.xlu0 %v446, 24
      %v459 = vpop.permute.xlu0 %458
      %v461 = vsel %vm213, %v269, %v451
      %vm462 = vcmask 130048
      %v463 = vsel %vm462, %v461, %v455
      %vm464 = vcmask 195584
      %v465 = vsel %vm464, %v463, %v459
      %vm466 = vcmask 261120
      %467 = vst.msk [vmem:[%s196] sm:$0xff] %vm466, %v465
      %p468 = scmp.lt.s32.totalorder %s14, 1
      %s469 = scalar_select %p468, %s14, 1
      %s470 = smul.addr %s469, 8
      %s471 = scalar_lea.vmem %s3, %s470
      // Predicated region
      $region33: #{transformer_forward.34} parent=31 // pred_check
        %p472 = pneg %p110
      $region34: #{transformer_forward.34} parent=31 // pred_check_branch
        %474 = sbr.rel (%p472) target = $region36
      $region35: #{transformer_forward.34} parent=31 // pred_region
        _
      $region36: #{transformer_forward.34} parent=31 // pred_fallthru
        _
    $region32: #{transformer_forward.34} parent=5 // pred_fallthru
      _
    %p475 = scmp.le.s32.totalorder 2, %s9
    // Predicated region
    $region37: #{transformer_forward.34} parent=5 // pred_check
      %p476 = pneg %p475
    $region38: #{transformer_forward.34} parent=5 // pred_check_branch
      %478 = sbr.rel (%p476) target = $region40
    $region39: #{transformer_forward.34} parent=5 // pred_region
      %s479 = ssub.s32 %s9, 2
      // Predicated region
      $region41: #{transformer_forward.34} parent=39 // pred_check
        %p480 = pneg %p116
      $region42: #{transformer_forward.34} parent=39 // pred_check_branch
        %482 = sbr.rel (%p480) target = $region44
      $region43: #{transformer_forward.34} parent=39 // pred_region
        %p483 = scmp.lt.s32.totalorder %s15, 1
        %s484 = scalar_select %p483, %s15, 1
        %s485 = smul.addr %s484, 8
        %s486 = scalar_lea.vmem %s3, %s485
      $region44: #{transformer_forward.34} parent=39 // pred_fallthru
        _
    $region40: #{transformer_forward.34} parent=5 // pred_fallthru
      _
  $region6: #{transformer_forward.34} parent=0 // loop_footer
    %s13 = sadd.s32 1, %s9
  $region7: #{transformer_forward.34} parent=0 // loop_footer_branch
    %8 = sbr.rel target = $region3
  $region8: #{transformer_forward.34} parent=0 // loop_exit
    _

// kernel: transformer_forward.37
$region0: #{transformer_forward.37}
  #allocation0 [shape = 'u32[]', space=smem, size = 0x4, offset = 0x4, fixed_abs, tag = 'smem constant byte address 0x4 - core index']
  #allocation1 [shape = 'u32[72,128]{1,0:T(1,128)}', space=vmem, size = 0x9000, scoped, tag = 'internal scratch']
  %s0 = inlined_call_operand.vmem [shape: f32[16,32], index: 0, kind: input, shape index: {}]
  %s1 = inlined_call_operand.vmem [shape: bf16[32,64], index: 1, kind: input, shape index: {}]
  %s2 = inlined_call_operand.vmem [shape: f32[1,64], index: 2, kind: input, shape index: {}]
  %s3 = inlined_call_operand.vmem [shape: f32[16,64], index: 3, kind: output, shape index: {}]
  %s4 = sld [smem:[#allocation0]]
  $region22: #{transformer_forward.37} parent=0
    _
  %s6 = ssub.s32 1, %s4
  %s7 = scalar_select 0, %s6, %s4
  // Predicated region
  $region2: #{transformer_forward.37} parent=0 // pred_check
    _
  $region3: #{transformer_forward.37} parent=0 // pred_check_branch
    %9 = sbr.rel (0) target = $region5
  $region4: #{transformer_forward.37} parent=0 // pred_region
    _
  $region5: #{transformer_forward.37} parent=0 // pred_fallthru
    _
  // Predicated region
  $region6: #{transformer_forward.37} parent=0 // pred_check
    _
  $region7: #{transformer_forward.37} parent=0 // pred_check_branch
    %11 = sbr.rel (0) target = $region9
  $region8: #{transformer_forward.37} parent=0 // pred_region
    _
  $region9: #{transformer_forward.37} parent=0 // pred_fallthru
    _
  // Predicated region
  $region10: #{transformer_forward.37} parent=0 // pred_check
    _
  $region11: #{transformer_forward.37} parent=0 // pred_check_branch
    %13 = sbr.rel (0) target = $region13
  $region12: #{transformer_forward.37} parent=0 // pred_region
    _
  $region13: #{transformer_forward.37} parent=0 // pred_fallthru
    _
  %v15 = vld [vmem:[%s0] sm:$0xff]
  %v16 = vld [vmem:[%s0 + $0x8] sm:$0xff]
  %v17 = vpack.c.bf16 %v16, %v15
  %v18 = vld [vmem:[%s1] sm:$0xf]
  %v19 = vld [vmem:[%s1 + $0x4] sm:$0xf]
  %v20 = vld [vmem:[%s1 + $0x8] sm:$0xf]
  %v21 = vld [vmem:[%s1 + $0xc] sm:$0xf]
  %v22 = vld [vmem:[%s2] sm:$0x1]
  %v24 = vperm.slane %v22, 0
  %v30 = vunpack.c.l.b16 %v18
  %v31 = vunpack.c.l.b16 %v19
  %v32 = vunpack.c.l.b16 %v20
  %v33 = vunpack.c.l.b16 %v21
  %v34 = vpack.c.b16 %v31, %v30
  %v35 = vpack.c.b16 %v33, %v32
  %vm38 = vcmask 261120
  %v40 = vsel %vm38, %v17, 0
  %42 = vmatpush.bf16.msra.mxu0 0
  %43 = vmatpush.bf16.msra.mxu0 0
  %44 = vmatpush.bf16.msra.mxu0 0
  %45 = vmatpush.bf16.msra.mxu0 0
  %46 = vmatpush.bf16.msra.mxu0 0
  %47 = vmatpush.bf16.msra.mxu0 0
  %48 = vmatpush.bf16.msra.mxu0 %v35
  %49 = vmatpush.bf16.msra.mxu0 %v34
  %50 = vmatmul.bf16.gmra.mxu0 %v40
  %v51 = vpop.f32.mrf.mxu0
  %v52 = vadd.f32 %v24, %v51
  %v53 = vpop.f32.mrf.mxu0
  %v54 = vadd.f32 %v24, %v53
  %55 = vdwg.mxu0
  %vm56 = vcmask 523264
  %57 = vst.msk [vmem:[%s3] sm:$0xff] %vm56, %v52
  %58 = vst.msk [vmem:[%s3 + $0x8] sm:$0xff] %vm56, %v54
  // Predicated region
  $region14: #{transformer_forward.37} parent=0 // pred_check
    _
  $region15: #{transformer_forward.37} parent=0 // pred_check_branch
    %60 = sbr.rel (0) target = $region17
  $region16: #{transformer_forward.37} parent=0 // pred_region
    _
  $region17: #{transformer_forward.37} parent=0 // pred_fallthru
    _
  // Predicated region
  $region18: #{transformer_forward.37} parent=0 // pred_check
    _
  $region19: #{transformer_forward.37} parent=0 // pred_check_branch
    %62 = sbr.rel (0) target = $region21
  $region20: #{transformer_forward.37} parent=0 // pred_region
    _
  $region21: #{transformer_forward.37} parent=0 // pred_fallthru
    _

// kernel: transformer_forward.35
$region0: #{transformer_forward.35}
  #allocation0 [shape = 'u32[]', space=smem, size = 0x4, offset = 0x4, fixed_abs, tag = 'smem constant byte address 0x4 - core index']
  #allocation1 [shape = 'u32[72,128]{1,0:T(1,128)}', space=vmem, size = 0x9000, scoped, tag = 'internal scratch']
  %s0 = inlined_call_operand.vmem [shape: f32[16,32], index: 0, kind: input, shape index: {}]
  %s1 = inlined_call_operand.vmem [shape: bf16[32,32], index: 1, kind: input, shape index: {}]
  %s2 = inlined_call_operand.vmem [shape: f32[1,32], index: 2, kind: input, shape index: {}]
  %s3 = inlined_call_operand.vmem [shape: f32[16,32], index: 3, kind: input, shape index: {}]
  %s4 = inlined_call_operand.vmem [shape: f32[1,32], index: 4, kind: input, shape index: {}]
  %s5 = inlined_call_operand.hbm [shape: f32[1,32], index: 5, kind: input, shape index: {}]
  %s6 = inlined_call_operand.vmem [shape: f32[16,32], index: 6, kind: output, shape index: {}]
  %s7 = sld [smem:[#allocation0]]
  $region38: #{transformer_forward.35} parent=0
    _
  %s9 = ssub.s32 1, %s7
  %s10 = scalar_select 0, %s9, %s7
  $region1: #{transformer_forward.35} parent=0
    #allocation2 [shape = 'u8[512]{0}', space=vmem, size = 0x400, scoped, tag = 'input window, operand 5, single buffered']
    #allocation3 [shape = 's32[1]{0}', space=sflag, size = 0x4, scoped, tag = 'scoped memory for transformer_forward.35']
    %11 = vsyncpa [#allocation3], 0
    // Predicated region
    $region2: #{transformer_forward.35} parent=1 // pred_check
      _
    $region3: #{transformer_forward.35} parent=1 // pred_check_branch
      %13 = sbr.rel (0) target = $region5
    $region4: #{transformer_forward.35} parent=1 // pred_region
      _
    $region5: #{transformer_forward.35} parent=1 // pred_fallthru
      _
    // Predicated region
    $region6: #{transformer_forward.35} parent=1 // pred_check
      _
    $region7: #{transformer_forward.35} parent=1 // pred_check_branch
      %15 = sbr.rel (0) target = $region9
    $region8: #{transformer_forward.35} parent=1 // pred_region
      _
    $region9: #{transformer_forward.35} parent=1 // pred_fallthru
      _
    // Predicated region
    $region10: #{transformer_forward.35} parent=1 // pred_check
      _
    $region11: #{transformer_forward.35} parent=1 // pred_check_branch
      %17 = sbr.rel (0) target = $region13
    $region12: #{transformer_forward.35} parent=1 // pred_region
      _
    $region13: #{transformer_forward.35} parent=1 // pred_fallthru
      _
    // Predicated region
    $region14: #{transformer_forward.35} parent=1 // pred_check
      _
    $region15: #{transformer_forward.35} parent=1 // pred_check_branch
      %19 = sbr.rel (0) target = $region17
    $region16: #{transformer_forward.35} parent=1 // pred_region
      _
    $region17: #{transformer_forward.35} parent=1 // pred_fallthru
      _
    // Predicated region
    $region18: #{transformer_forward.35} parent=1 // pred_check
      _
    $region19: #{transformer_forward.35} parent=1 // pred_check_branch
      %21 = sbr.rel (0) target = $region21
    $region20: #{transformer_forward.35} parent=1 // pred_region
      _
    $region21: #{transformer_forward.35} parent=1 // pred_fallthru
      _
    // Predicated region
    $region22: #{transformer_forward.35} parent=1 // pred_check
      _
    $region23: #{transformer_forward.35} parent=1 // pred_check_branch
      %23 = sbr.rel (0) target = $region25
    $region24: #{transformer_forward.35} parent=1 // pred_region
      %25 = vsyncadd [#allocation3], 0
      %s27 = sshll.u32 %s5, 4
      %s28 = int_to_ptr.hbm [resolvable:$true] %s27
      %s29 = sshll.u32 [#allocation2], 4
      %s30 = int_to_ptr.vmem [resolvable:$true] %s29
      %32 = dma.hbm_to_vmem [thread:$0]  %s28, 16, %s30, [#allocation3]
    $region25: #{transformer_forward.35} parent=1 // pred_fallthru
      _
    // Predicated region
    $region26: #{transformer_forward.35} parent=1 // pred_check
      _
    $region27: #{transformer_forward.35} parent=1 // pred_check_branch
      %34 = sbr.rel (0) target = $region29
    $region28: #{transformer_forward.35} parent=1 // pred_region
      %36 = dma.done [#allocation3], 16
    $region29: #{transformer_forward.35} parent=1 // pred_fallthru
      _
    %v38 = vld [vmem:[%s0] sm:$0xff]
    %v39 = vld [vmem:[%s0 + $0x8] sm:$0xff]
    %v40 = vpack.c.bf16 %v39, %v38
    %v41 = vld [vmem:[%s1] sm:$0xf]
    %v42 = vld [vmem:[%s1 + $0x4] sm:$0xf]
    %v43 = vld [vmem:[%s1 + $0x8] sm:$0xf]
    %v44 = vld [vmem:[%s1 + $0xc] sm:$0xf]
    %v45 = vld [vmem:[%s2] sm:$0x1]
    %v47 = vperm.slane %v45, 0
    %v53 = vunpack.c.l.b16 %v41
    %v54 = vunpack.c.l.b16 %v42
    %v55 = vunpack.c.l.b16 %v43
    %v56 = vunpack.c.l.b16 %v44
    %v57 = vpack.c.b16 %v54, %v53
    %v58 = vpack.c.b16 %v56, %v55
    %vm61 = vcmask 261120
    %v63 = vsel %vm61, %v40, 0
    %65 = vmatpush.bf16.msra.mxu0 0
    %66 = vmatpush.bf16.msra.mxu0 0
    %67 = vmatpush.bf16.msra.mxu0 0
    %68 = vmatpush.bf16.msra.mxu0 0
    %69 = vmatpush.bf16.msra.mxu0 0
    %70 = vmatpush.bf16.msra.mxu0 0
    %71 = vmatpush.bf16.msra.mxu0 %v58
    %72 = vmatpush.bf16.msra.mxu0 %v57
    %73 = vmatmul.bf16.gmra.mxu0 %v63
    %v74 = vpop.f32.mrf.mxu0
    %v75 = vadd.f32 %v47, %v74
    %v76 = vpop.f32.mrf.mxu0
    %v77 = vadd.f32 %v47, %v76
    %78 = vdwg.mxu0
    %v79 = vld [vmem:[%s3] sm:$0xff]
    %v80 = vld [vmem:[%s3 + $0x8] sm:$0xff]
    %v81 = vadd.f32 %v75, %v79
    %v82 = vadd.f32 %v77, %v80
    %v83 = vsel %vm61, %v81, 0.0
    %84 = vadd.xlane.f32.xlu0 %v83
    %v85 = vpop.xlane.xlu0 %84
    %v86 = vsel %vm61, %v82, 0.0
    %87 = vadd.xlane.f32.xlu0 %v86
    %v88 = vpop.xlane.xlu0 %87
    %v89 = vrcp.pop 32.0
    %v90 = vmul.f32 32.0, %v89
    %v91 = vsub.f32 1.0, %v90
    %v92 = vmul.f32 %v89, %v91
    %v93 = vadd.f32 %v89, %v92
    %vm94 = vweird.f32 %v89
    %v95 = vsel %vm94, %v89, %v93
    %v96 = vmul.f32 %v85, %v95
    %v97 = vmul.f32 %v88, %v95
    %v98 = vsub.f32 %v81, %v96
    %v99 = vsub.f32 %v82, %v97
    %v100 = vmul.f32 %v98, %v98
    %v101 = vmul.f32 %v99, %v99
    %v102 = vsel %vm61, %v100, 0.0
    %103 = vadd.xlane.f32.xlu0 %v102
    %v104 = vpop.xlane.xlu0 %103
    %v105 = vsel %vm61, %v101, 0.0
    %106 = vadd.xlane.f32.xlu0 %v105
    %v107 = vpop.xlane.xlu0 %106
    %v108 = vmul.f32 %v104, %v95
    %v109 = vmul.f32 %v107, %v95
    %v110 = vadd.f32 %v108, 1e-05
    %v111 = vadd.f32 %v109, 1e-05
    %v112 = vrsqrt.pop %v110
    %v113 = vmul.f32 %v112, %v110
    %v114 = vmul.f32 %v113, %v112
    %v115 = vmul.f32 0.5, %v114
    %v116 = vsub.f32 1.5, %v115
    %v117 = vmul.f32 %v112, %v116
    %vm118 = vweird.f32 %v110
    %vm119 = vweird.f32 %v112
    %vm120 = vmor %vm118, %vm119
    %v121 = vsel %vm120, %v112, %v117
    %v122 = vrsqrt.pop %v111
    %v123 = vmul.f32 %v122, %v111
    %v124 = vmul.f32 %v123, %v122
    %v125 = vmul.f32 0.5, %v124
    %v126 = vsub.f32 1.5, %v125
    %v127 = vmul.f32 %v122, %v126
    %vm128 = vweird.f32 %v111
    %vm129 = vweird.f32 %v122
    %vm130 = vmor %vm128, %vm129
    %v131 = vsel %vm130, %v122, %v127
    %v132 = vmul.f32 %v98, %v121
    %v133 = vmul.f32 %v99, %v131
    %v134 = vld [vmem:[%s4] sm:$0x1]
    %v136 = vperm.slane %v134, 0
    %v138 = vmul.f32 %v132, %v136
    %v139 = vmul.f32 %v133, %v136
    %v140 = vld [vmem:[#allocation2] sm:$0x1]
    %v142 = vperm.slane %v140, 0
    %v144 = vadd.f32 %v138, %v142
    %v145 = vadd.f32 %v139, %v142
    %146 = vst.msk [vmem:[%s6] sm:$0xff] %vm61, %v144
    %147 = vst.msk [vmem:[%s6 + $0x8] sm:$0xff] %vm61, %v145
    // Predicated region
    $region30: #{transformer_forward.35} parent=1 // pred_check
      _
    $region31: #{transformer_forward.35} parent=1 // pred_check_branch
      %149 = sbr.rel (0) target = $region33
    $region32: #{transformer_forward.35} parent=1 // pred_region
      _
    $region33: #{transformer_forward.35} parent=1 // pred_fallthru
      _
    // Predicated region
    $region34: #{transformer_forward.35} parent=1 // pred_check
      _
    $region35: #{transformer_forward.35} parent=1 // pred_check_branch
      %151 = sbr.rel (0) target = $region37
    $region36: #{transformer_forward.35} parent=1 // pred_region
      _
    $region37: #{transformer_forward.35} parent=1 // pred_fallthru
      _
    %152 = vsyncpa [#allocation3], 1

// kernel: transformer_forward.36
$region0: #{transformer_forward.36}
  #allocation0 [shape = 'u32[]', space=smem, size = 0x4, offset = 0x4, fixed_abs, tag = 'smem constant byte address 0x4 - core index']
  #allocation1 [shape = 'u32[72,128]{1,0:T(1,128)}', space=vmem, size = 0x9000, scoped, tag = 'internal scratch']
  %s0 = inlined_call_operand.vmem [shape: f32[16,32], index: 0, kind: input, shape index: {}]
  %s1 = inlined_call_operand.vmem [shape: bf16[32,32], index: 1, kind: input, shape index: {}]
  %s2 = inlined_call_operand.hbm [shape: f32[1,32], index: 2, kind: input, shape index: {}]
  %s3 = inlined_call_operand.vmem [shape: f32[16,32], index: 3, kind: output, shape index: {}]
  %s4 = sld [smem:[#allocation0]]
  $region26: #{transformer_forward.36} parent=0
    _
  %s6 = ssub.s32 1, %s4
  %s7 = scalar_select 0, %s6, %s4
  $region1: #{transformer_forward.36} parent=0
    #allocation2 [shape = 'u8[512]{0}', space=vmem, size = 0x400, scoped, tag = 'input window, operand 2, single buffered']
    #allocation3 [shape = 's32[1]{0}', space=sflag, size = 0x4, scoped, tag = 'scoped memory for transformer_forward.36']
    %8 = vsyncpa [#allocation3], 0
    // Predicated region
    $region2: #{transformer_forward.36} parent=1 // pred_check
      _
    $region3: #{transformer_forward.36} parent=1 // pred_check_branch
      %10 = sbr.rel (0) target = $region5
    $region4: #{transformer_forward.36} parent=1 // pred_region
      _
    $region5: #{transformer_forward.36} parent=1 // pred_fallthru
      _
    // Predicated region
    $region6: #{transformer_forward.36} parent=1 // pred_check
      _
    $region7: #{transformer_forward.36} parent=1 // pred_check_branch
      %12 = sbr.rel (0) target = $region9
    $region8: #{transformer_forward.36} parent=1 // pred_region
      _
    $region9: #{transformer_forward.36} parent=1 // pred_fallthru
      _
    // Predicated region
    $region10: #{transformer_forward.36} parent=1 // pred_check
      _
    $region11: #{transformer_forward.36} parent=1 // pred_check_branch
      %14 = sbr.rel (0) target = $region13
    $region12: #{transformer_forward.36} parent=1 // pred_region
      %16 = vsyncadd [#allocation3], 0
      %s18 = sshll.u32 %s2, 4
      %s19 = int_to_ptr.hbm [resolvable:$true] %s18
      %s20 = sshll.u32 [#allocation2], 4
      %s21 = int_to_ptr.vmem [resolvable:$true] %s20
      %23 = dma.hbm_to_vmem [thread:$0]  %s19, 16, %s21, [#allocation3]
    $region13: #{transformer_forward.36} parent=1 // pred_fallthru
      _
    // Predicated region
    $region14: #{transformer_forward.36} parent=1 // pred_check
      _
    $region15: #{transformer_forward.36} parent=1 // pred_check_branch
      %25 = sbr.rel (0) target = $region17
    $region16: #{transformer_forward.36} parent=1 // pred_region
      %27 = dma.done [#allocation3], 16
    $region17: #{transformer_forward.36} parent=1 // pred_fallthru
      _
    %v29 = vld [vmem:[%s0] sm:$0xff]
    %v30 = vld [vmem:[%s0 + $0x8] sm:$0xff]
    %v31 = vpack.c.bf16 %v30, %v29
    %v32 = vld [vmem:[%s1] sm:$0xf]
    %v33 = vld [vmem:[%s1 + $0x4] sm:$0xf]
    %v34 = vld [vmem:[%s1 + $0x8] sm:$0xf]
    %v35 = vld [vmem:[%s1 + $0xc] sm:$0xf]
    %v36 = vld [vmem:[#allocation2] sm:$0x1]
    %v38 = vperm.slane %v36, 0
    %v44 = vunpack.c.l.b16 %v32
    %v45 = vunpack.c.l.b16 %v33
    %v46 = vunpack.c.l.b16 %v34
    %v47 = vunpack.c.l.b16 %v35
    %v48 = vpack.c.b16 %v45, %v44
    %v49 = vpack.c.b16 %v47, %v46
    %vm52 = vcmask 261120
    %v54 = vsel %vm52, %v31, 0
    %56 = vmatpush.bf16.msra.mxu0 0
    %57 = vmatpush.bf16.msra.mxu0 0
    %58 = vmatpush.bf16.msra.mxu0 0
    %59 = vmatpush.bf16.msra.mxu0 0
    %60 = vmatpush.bf16.msra.mxu0 0
    %61 = vmatpush.bf16.msra.mxu0 0
    %62 = vmatpush.bf16.msra.mxu0 %v49
    %63 = vmatpush.bf16.msra.mxu0 %v48
    %64 = vmatmul.bf16.gmra.mxu0 %v54
    %v65 = vpop.f32.mrf.mxu0
    %v66 = vadd.f32 %v38, %v65
    %v67 = vpop.f32.mrf.mxu0
    %v68 = vadd.f32 %v38, %v67
    %69 = vdwg.mxu0
    %70 = vst.msk [vmem:[%s3] sm:$0xff] %vm52, %v66
    %71 = vst.msk [vmem:[%s3 + $0x8] sm:$0xff] %vm52, %v68
    // Predicated region
    $region18: #{transformer_forward.36} parent=1 // pred_check
      _
    $region19: #{transformer_forward.36} parent=1 // pred_check_branch
      %73 = sbr.rel (0) target = $region21
    $region20: #{transformer_forward.36} parent=1 // pred_region
      _
    $region21: #{transformer_forward.36} parent=1 // pred_fallthru
      _
    // Predicated region
    $region22: #{transformer_forward.36} parent=1 // pred_check
      _
    $region23: #{transformer_forward.36} parent=1 // pred_check_branch
      %75 = sbr.rel (0) target = $region25
    $region24: #{transformer_forward.36} parent=1 // pred_region
      _
    $region25: #{transformer_forward.36} parent=1 // pred_fallthru
      _
    %76 = vsyncpa [#allocation3], 1

// kernel: transformer_forward.39
$region0: #{transformer_forward.39}
  #allocation0 [shape = 'u32[]', space=smem, size = 0x4, offset = 0x4, fixed_abs, tag = 'smem constant byte address 0x4 - core index']
  #allocation1 [shape = 'u32[72,128]{1,0:T(1,128)}', space=vmem, size = 0x9000, scoped, tag = 'internal scratch']
  %s0 = inlined_call_operand.vmem [shape: f32[16,32], index: 0, kind: input, shape index: {}]
  %s1 = inlined_call_operand.vmem [shape: bf16[32,32], index: 1, kind: input, shape index: {}]
  %s2 = inlined_call_operand.hbm [shape: f32[1,32], index: 2, kind: input, shape index: {}]
  %s3 = inlined_call_operand.vmem [shape: f32[16,32], index: 3, kind: input, shape index: {}]
  %s4 = inlined_call_operand.hbm [shape: f32[1,32], index: 4, kind: input, shape index: {}]
  %s5 = inlined_call_operand.hbm [shape: f32[1,32], index: 5, kind: input, shape index: {}]
  %s6 = inlined_call_operand.vmem [shape: f32[16,32], index: 6, kind: output, shape index: {}]
  %s7 = sld [smem:[#allocation0]]
  $region46: #{transformer_forward.39} parent=0
    _
  %s9 = ssub.s32 1, %s7
  %s10 = scalar_select 0, %s9, %s7
  $region1: #{transformer_forward.39} parent=0
    #allocation2 [shape = 'u8[512]{0}', space=vmem, size = 0x400, scoped, tag = 'input window, operand 2, single buffered']
    #allocation3 [shape = 's32[1]{0}', space=sflag, size = 0x4, scoped, tag = 'scoped memory for transformer_forward.39']
    #allocation4 [shape = 'u8[512]{0}', space=vmem, size = 0x400, scoped, tag = 'input window, operand 4, single buffered']
    #allocation5 [shape = 's32[1]{0}', space=sflag, size = 0x4, scoped, tag = 'scoped memory for transformer_forward.39']
    #allocation6 [shape = 'u8[512]{0}', space=vmem, size = 0x400, scoped, tag = 'input window, operand 5, single buffered']
    %11 = vsyncpa [#allocation3], 0
    %12 = vsyncpa [#allocation5], 0
    // Predicated region
    $region2: #{transformer_forward.39} parent=1 // pred_check
      _
    $region3: #{transformer_forward.39} parent=1 // pred_check_branch
      %14 = sbr.rel (0) target = $region5
    $region4: #{transformer_forward.39} parent=1 // pred_region
      _
    $region5: #{transformer_forward.39} parent=1 // pred_fallthru
      _
    // Predicated region
    $region6: #{transformer_forward.39} parent=1 // pred_check
      _
    $region7: #{transformer_forward.39} parent=1 // pred_check_branch
      %16 = sbr.rel (0) target = $region9
    $region8: #{transformer_forward.39} parent=1 // pred_region
      _
    $region9: #{transformer_forward.39} parent=1 // pred_fallthru
      _
    // Predicated region
    $region10: #{transformer_forward.39} parent=1 // pred_check
      _
    $region11: #{transformer_forward.39} parent=1 // pred_check_branch
      %18 = sbr.rel (0) target = $region13
    $region12: #{transformer_forward.39} parent=1 // pred_region
      %20 = vsyncadd [#allocation3], 0
      %s22 = sshll.u32 %s2, 4
      %s23 = int_to_ptr.hbm [resolvable:$true] %s22
      %s24 = sshll.u32 [#allocation2], 4
      %s25 = int_to_ptr.vmem [resolvable:$true] %s24
      %27 = dma.hbm_to_vmem [thread:$0]  %s23, 16, %s25, [#allocation3]
    $region13: #{transformer_forward.39} parent=1 // pred_fallthru
      _
    // Predicated region
    $region14: #{transformer_forward.39} parent=1 // pred_check
      _
    $region15: #{transformer_forward.39} parent=1 // pred_check_branch
      %29 = sbr.rel (0) target = $region17
    $region16: #{transformer_forward.39} parent=1 // pred_region
      _
    $region17: #{transformer_forward.39} parent=1 // pred_fallthru
      _
    // Predicated region
    $region18: #{transformer_forward.39} parent=1 // pred_check
      _
    $region19: #{transformer_forward.39} parent=1 // pred_check_branch
      %31 = sbr.rel (0) target = $region21
    $region20: #{transformer_forward.39} parent=1 // pred_region
      %33 = vsyncadd [#allocation5], 0
      %s35 = sshll.u32 %s4, 4
      %s36 = int_to_ptr.hbm [resolvable:$true] %s35
      %s37 = sshll.u32 [#allocation4], 4
      %s38 = int_to_ptr.vmem [resolvable:$true] %s37
      %40 = dma.hbm_to_vmem [thread:$0]  %s36, 16, %s38, [#allocation5]
    $region21: #{transformer_forward.39} parent=1 // pred_fallthru
      _
    // Predicated region
    $region22: #{transformer_forward.39} parent=1 // pred_check
      _
    $region23: #{transformer_forward.39} parent=1 // pred_check_branch
      %42 = sbr.rel (0) target = $region25
    $region24: #{transformer_forward.39} parent=1 // pred_region
      %44 = vsyncadd [#allocation5], 0
      %s46 = sshll.u32 %s5, 4
      %s47 = int_to_ptr.hbm [resolvable:$true] %s46
      %s48 = sshll.u32 [#allocation6], 4
      %s49 = int_to_ptr.vmem [resolvable:$true] %s48
      %51 = dma.hbm_to_vmem [thread:$0]  %s47, 16, %s49, [#allocation5]
    $region25: #{transformer_forward.39} parent=1 // pred_fallthru
      _
    // Predicated region
    $region26: #{transformer_forward.39} parent=1 // pred_check
      _
    $region27: #{transformer_forward.39} parent=1 // pred_check_branch
      %53 = sbr.rel (0) target = $region29
    $region28: #{transformer_forward.39} parent=1 // pred_region
      %55 = dma.done [#allocation3], 16
    $region29: #{transformer_forward.39} parent=1 // pred_fallthru
      _
    // Predicated region
    $region30: #{transformer_forward.39} parent=1 // pred_check
      _
    $region31: #{transformer_forward.39} parent=1 // pred_check_branch
      %57 = sbr.rel (0) target = $region33
    $region32: #{transformer_forward.39} parent=1 // pred_region
      %59 = dma.done [#allocation5], 16
    $region33: #{transformer_forward.39} parent=1 // pred_fallthru
      _
    // Predicated region
    $region34: #{transformer_forward.39} parent=1 // pred_check
      _
    $region35: #{transformer_forward.39} parent=1 // pred_check_branch
      %61 = sbr.rel (0) target = $region37
    $region36: #{transformer_forward.39} parent=1 // pred_region
      %63 = dma.done [#allocation5], 16
    $region37: #{transformer_forward.39} parent=1 // pred_fallthru
      _
    %v65 = vld [vmem:[%s0] sm:$0xff]
    %v66 = vld [vmem:[%s0 + $0x8] sm:$0xff]
    %v67 = vpack.c.bf16 %v66, %v65
    %v68 = vld [vmem:[%s1] sm:$0xf]
    %v69 = vld [vmem:[%s1 + $0x4] sm:$0xf]
    %v70 = vld [vmem:[%s1 + $0x8] sm:$0xf]
    %v71 = vld [vmem:[%s1 + $0xc] sm:$0xf]
    %v72 = vld [vmem:[#allocation2] sm:$0x1]
    %v74 = vperm.slane %v72, 0
    %v80 = vunpack.c.l.b16 %v68
    %v81 = vunpack.c.l.b16 %v69
    %v82 = vunpack.c.l.b16 %v70
    %v83 = vunpack.c.l.b16 %v71
    %v84 = vpack.c.b16 %v81, %v80
    %v85 = vpack.c.b16 %v83, %v82
    %vm88 = vcmask 261120
    %v90 = vsel %vm88, %v67, 0
    %92 = vmatpush.bf16.msra.mxu0 0
    %93 = vmatpush.bf16.msra.mxu0 0
    %94 = vmatpush.bf16.msra.mxu0 0
    %95 = vmatpush.bf16.msra.mxu0 0
    %96 = vmatpush.bf16.msra.mxu0 0
    %97 = vmatpush.bf16.msra.mxu0 0
    %98 = vmatpush.bf16.msra.mxu0 %v85
    %99 = vmatpush.bf16.msra.mxu0 %v84
    %100 = vmatmul.bf16.gmra.mxu0 %v90
    %v101 = vpop.f32.mrf.mxu0
    %v102 = vadd.f32 %v74, %v101
    %v103 = vpop.f32.mrf.mxu0
    %v104 = vadd.f32 %v74, %v103
    %105 = vdwg.mxu0
    %v106 = vld [vmem:[%s3] sm:$0xff]
    %v107 = vld [vmem:[%s3 + $0x8] sm:$0xff]
    %v108 = vadd.f32 %v102, %v106
    %v109 = vadd.f32 %v104, %v107
    %v110 = vsel %vm88, %v108, 0.0
    %111 = vadd.xlane.f32.xlu0 %v110
    %v112 = vpop.xlane.xlu0 %111
    %v113 = vsel %vm88, %v109, 0.0
    %114 = vadd.xlane.f32.xlu0 %v113
    %v115 = vpop.xlane.xlu0 %114
    %v116 = vrcp.pop 32.0
    %v117 = vmul.f32 32.0, %v116
    %v118 = vsub.f32 1.0, %v117
    %v119 = vmul.f32 %v116, %v118
    %v120 = vadd.f32 %v116, %v119
    %vm121 = vweird.f32 %v116
    %v122 = vsel %vm121, %v116, %v120
    %v123 = vmul.f32 %v112, %v122
    %v124 = vmul.f32 %v115, %v122
    %v125 = vsub.f32 %v108, %v123
    %v126 = vsub.f32 %v109, %v124
    %v127 = vmul.f32 %v125, %v125
    %v128 = vmul.f32 %v126, %v126
    %v129 = vsel %vm88, %v127, 0.0
    %130 = vadd.xlane.f32.xlu0 %v129
    %v131 = vpop.xlane.xlu0 %130
    %v132 = vsel %vm88, %v128, 0.0
    %133 = vadd.xlane.f32.xlu0 %v132
    %v134 = vpop.xlane.xlu0 %133
    %v135 = vmul.f32 %v131, %v122
    %v136 = vmul.f32 %v134, %v122
    %v137 = vadd.f32 %v135, 1e-05
    %v138 = vadd.f32 %v136, 1e-05
    %v139 = vrsqrt.pop %v137
    %v140 = vmul.f32 %v139, %v137
    %v141 = vmul.f32 %v140, %v139
    %v142 = vmul.f32 0.5, %v141
    %v143 = vsub.f32 1.5, %v142
    %v144 = vmul.f32 %v139, %v143
    %vm145 = vweird.f32 %v137
    %vm146 = vweird.f32 %v139
    %vm147 = vmor %vm145, %vm146
    %v148 = vsel %vm147, %v139, %v144
    %v149 = vrsqrt.pop %v138
    %v150 = vmul.f32 %v149, %v138
    %v151 = vmul.f32 %v150, %v149
    %v152 = vmul.f32 0.5, %v151
    %v153 = vsub.f32 1.5, %v152
    %v154 = vmul.f32 %v149, %v153
    %vm155 = vweird.f32 %v138
    %vm156 = vweird.f32 %v149
    %vm157 = vmor %vm155, %vm156
    %v158 = vsel %vm157, %v149, %v154
    %v159 = vmul.f32 %v125, %v148
    %v160 = vmul.f32 %v126, %v158
    %v161 = vld [vmem:[#allocation4] sm:$0x1]
    %v163 = vperm.slane %v161, 0
    %v165 = vmul.f32 %v159, %v163
    %v166 = vmul.f32 %v160, %v163
    %v167 = vld [vmem:[#allocation6] sm:$0x1]
    %v169 = vperm.slane %v167, 0
    %v171 = vadd.f32 %v165, %v169
    %v172 = vadd.f32 %v166, %v169
    %173 = vst.msk [vmem:[%s6] sm:$0xff] %vm88, %v171
    %174 = vst.msk [vmem:[%s6 + $0x8] sm:$0xff] %vm88, %v172
    // Predicated region
    $region38: #{transformer_forward.39} parent=1 // pred_check
      _
    $region39: #{transformer_forward.39} parent=1 // pred_check_branch
      %176 = sbr.rel (0) target = $region41
    $region40: #{transformer_forward.39} parent=1 // pred_region
      _
    $region41: #{transformer_forward.39} parent=1 // pred_fallthru
      _
    // Predicated region
    $region42: #{transformer_forward.39} parent=1 // pred_check
      _
    $region43: #{transformer_forward.39} parent=1 // pred_check_branch
      %178 = sbr.rel (0) target = $region45
    $region44: #{transformer_forward.39} parent=1 // pred_region
      _
    $region45: #{transformer_forward.39} parent=1 // pred_fallthru
      _
    %179 = vsyncpa [#allocation3], 1
    %180 = vsyncpa [#allocation5], 1

// kernel: transformer_forward.44
$region0: #{transformer_forward.44}
  #allocation0 [shape = 'u32[]', space=smem, size = 0x4, offset = 0x4, fixed_abs, tag = 'smem constant byte address 0x4 - core index']
  #allocation1 [shape = 'u32[72,128]{1,0:T(1,128)}', space=vmem, size = 0x9000, scoped, tag = 'internal scratch']
  %s0 = inlined_call_operand.vmem [shape: f32[16,32], index: 0, kind: input, shape index: {}]
  %s1 = inlined_call_operand.vmem [shape: bf16[32,32], index: 1, kind: input, shape index: {}]
  %s2 = inlined_call_operand.vmem [shape: f32[1,32], index: 2, kind: input, shape index: {}]
  %s3 = inlined_call_operand.vmem [shape: f32[16,32], index: 3, kind: output, shape index: {}]
  %s4 = sld [smem:[#allocation0]]
  $region22: #{transformer_forward.44} parent=0
    _
  %s6 = ssub.s32 1, %s4
  %s7 = scalar_select 0, %s6, %s4
  // Predicated region
  $region2: #{transformer_forward.44} parent=0 // pred_check
    _
  $region3: #{transformer_forward.44} parent=0 // pred_check_branch
    %9 = sbr.rel (0) target = $region5
  $region4: #{transformer_forward.44} parent=0 // pred_region
    _
  $region5: #{transformer_forward.44} parent=0 // pred_fallthru
    _
  // Predicated region
  $region6: #{transformer_forward.44} parent=0 // pred_check
    _
  $region7: #{transformer_forward.44} parent=0 // pred_check_branch
    %11 = sbr.rel (0) target = $region9
  $region8: #{transformer_forward.44} parent=0 // pred_region
    _
  $region9: #{transformer_forward.44} parent=0 // pred_fallthru
    _
  // Predicated region
  $region10: #{transformer_forward.44} parent=0 // pred_check
    _
  $region11: #{transformer_forward.44} parent=0 // pred_check_branch
    %13 = sbr.rel (0) target = $region13
  $region12: #{transformer_forward.44} parent=0 // pred_region
    _
  $region13: #{transformer_forward.44} parent=0 // pred_fallthru
    _
  %v15 = vld [vmem:[%s0] sm:$0xff]
  %v16 = vld [vmem:[%s0 + $0x8] sm:$0xff]
  %v17 = vpack.c.bf16 %v16, %v15
  %v18 = vld [vmem:[%s1] sm:$0xf]
  %v19 = vld [vmem:[%s1 + $0x4] sm:$0xf]
  %v20 = vld [vmem:[%s1 + $0x8] sm:$0xf]
  %v21 = vld [vmem:[%s1 + $0xc] sm:$0xf]
  %v22 = vld [vmem:[%s2] sm:$0x1]
  %v24 = vperm.slane %v22, 0
  %v30 = vunpack.c.l.b16 %v18
  %v31 = vunpack.c.l.b16 %v19
  %v32 = vunpack.c.l.b16 %v20
  %v33 = vunpack.c.l.b16 %v21
  %v34 = vpack.c.b16 %v31, %v30
  %v35 = vpack.c.b16 %v33, %v32
  %vm38 = vcmask 261120
  %v40 = vsel %vm38, %v17, 0
  %42 = vmatpush.bf16.msra.mxu0 0
  %43 = vmatpush.bf16.msra.mxu0 0
  %44 = vmatpush.bf16.msra.mxu0 0
  %45 = vmatpush.bf16.msra.mxu0 0
  %46 = vmatpush.bf16.msra.mxu0 0
  %47 = vmatpush.bf16.msra.mxu0 0
  %48 = vmatpush.bf16.msra.mxu0 %v35
  %49 = vmatpush.bf16.msra.mxu0 %v34
  %50 = vmatmul.bf16.gmra.mxu0 %v40
  %v51 = vpop.f32.mrf.mxu0
  %v52 = vadd.f32 %v24, %v51
  %v53 = vpop.f32.mrf.mxu0
  %v54 = vadd.f32 %v24, %v53
  %55 = vdwg.mxu0
  %56 = vst.msk [vmem:[%s3] sm:$0xff] %vm38, %v52
  %57 = vst.msk [vmem:[%s3 + $0x8] sm:$0xff] %vm38, %v54
  // Predicated region
  $region14: #{transformer_forward.44} parent=0 // pred_check
    _
  $region15: #{transformer_forward.44} parent=0 // pred_check_branch
    %59 = sbr.rel (0) target = $region17
  $region16: #{transformer_forward.44} parent=0 // pred_region
    _
  $region17: #{transformer_forward.44} parent=0 // pred_fallthru
    _
  // Predicated region
  $region18: #{transformer_forward.44} parent=0 // pred_check
    _
  $region19: #{transformer_forward.44} parent=0 // pred_check_branch
    %61 = sbr.rel (0) target = $region21
  $region20: #{transformer_forward.44} parent=0 // pred_region
    _
  $region21: #{transformer_forward.44} parent=0 // pred_fallthru
    _

// kernel: transformer_forward.41
$region0: #{transformer_forward.41}
  #allocation0 [shape = 'u32[]', space=smem, size = 0x4, offset = 0x4, fixed_abs, tag = 'smem constant byte address 0x4 - core index']
  #allocation1 [shape = 'u32[72,128]{1,0:T(1,128)}', space=vmem, size = 0x9000, scoped, tag = 'internal scratch']
  %s0 = inlined_call_operand.vmem [shape: f32[16,32], index: 0, kind: input, shape index: {}]
  %s1 = inlined_call_operand.vmem [shape: bf16[32,96], index: 1, kind: input, shape index: {}]
  %s2 = inlined_call_operand.hbm [shape: f32[1,96], index: 2, kind: input, shape index: {}]
  %s3 = inlined_call_operand.vmem [shape: f32[16,32], index: 3, kind: output, shape index: {0}]
  %s4 = inlined_call_operand.vmem [shape: f32[16,64], index: 4, kind: output, shape index: {1}]
  %5 = xla_tuple %s3, %s4
  %s6 = sld [smem:[#allocation0]]
  $region34: #{transformer_forward.41} parent=0
    _
  %s8 = ssub.s32 1, %s6
  %s9 = scalar_select 0, %s8, %s6
  $region1: #{transformer_forward.41} parent=0
    #allocation2 [shape = 'u8[512]{0}', space=vmem, size = 0x400, scoped, tag = 'input window, operand 2, single buffered']
    #allocation3 [shape = 's32[1]{0}', space=sflag, size = 0x4, scoped, tag = 'scoped memory for transformer_forward.41']
    %10 = vsyncpa [#allocation3], 0
    // Predicated region
    $region2: #{transformer_forward.41} parent=1 // pred_check
      _
    $region3: #{transformer_forward.41} parent=1 // pred_check_branch
      %12 = sbr.rel (0) target = $region5
    $region4: #{transformer_forward.41} parent=1 // pred_region
      _
    $region5: #{transformer_forward.41} parent=1 // pred_fallthru
      _
    // Predicated region
    $region6: #{transformer_forward.41} parent=1 // pred_check
      _
    $region7: #{transformer_forward.41} parent=1 // pred_check_branch
      %14 = sbr.rel (0) target = $region9
    $region8: #{transformer_forward.41} parent=1 // pred_region
      _
    $region9: #{transformer_forward.41} parent=1 // pred_fallthru
      _
    // Predicated region
    $region10: #{transformer_forward.41} parent=1 // pred_check
      _
    $region11: #{transformer_forward.41} parent=1 // pred_check_branch
      %16 = sbr.rel (0) target = $region13
    $region12: #{transformer_forward.41} parent=1 // pred_region
      %18 = vsyncadd [#allocation3], 0
      %s20 = sshll.u32 %s2, 4
      %s21 = int_to_ptr.hbm [resolvable:$true] %s20
      %s22 = sshll.u32 [#allocation2], 4
      %s23 = int_to_ptr.vmem [resolvable:$true] %s22
      %25 = dma.hbm_to_vmem [thread:$0]  %s21, 16, %s23, [#allocation3]
    $region13: #{transformer_forward.41} parent=1 // pred_fallthru
      _
    // Predicated region
    $region14: #{transformer_forward.41} parent=1 // pred_check
      _
    $region15: #{transformer_forward.41} parent=1 // pred_check_branch
      %27 = sbr.rel (0) target = $region17
    $region16: #{transformer_forward.41} parent=1 // pred_region
      %29 = dma.done [#allocation3], 16
    $region17: #{transformer_forward.41} parent=1 // pred_fallthru
      _
    %v31 = vld [vmem:[%s0] sm:$0xff]
    %v32 = vld [vmem:[%s0 + $0x8] sm:$0xff]
    %v33 = vpack.c.bf16 %v32, %v31
    %v34 = vld [vmem:[%s1] sm:$0xf]
    %v35 = vld [vmem:[%s1 + $0x4] sm:$0xf]
    %v36 = vld [vmem:[%s1 + $0x8] sm:$0xf]
    %v37 = vld [vmem:[%s1 + $0xc] sm:$0xf]
    %v38 = vld [vmem:[#allocation2] sm:$0x1]
    %v40 = vperm.slane %v38, 0
    %v46 = vunpack.c.l.b16 %v34
    %v47 = vunpack.c.l.b16 %v35
    %v48 = vunpack.c.l.b16 %v36
    %v49 = vunpack.c.l.b16 %v37
    %v50 = vpack.c.b16 %v47, %v46
    %v51 = vpack.c.b16 %v49, %v48
    %vm54 = vcmask 261120
    %v56 = vsel %vm54, %v33, 0
    %58 = vmatpush.bf16.msra.mxu0 0
    %59 = vmatpush.bf16.msra.mxu0 0
    %60 = vmatpush.bf16.msra.mxu0 0
    %61 = vmatpush.bf16.msra.mxu0 0
    %62 = vmatpush.bf16.msra.mxu0 0
    %63 = vmatpush.bf16.msra.mxu0 0
    %64 = vmatpush.bf16.msra.mxu0 %v51
    %65 = vmatpush.bf16.msra.mxu0 %v50
    %66 = vmatmul.bf16.gmra.mxu0 %v56
    %v67 = vpop.f32.mrf.mxu0
    %v68 = vadd.f32 %v40, %v67
    %v69 = vpop.f32.mrf.mxu0
    %v70 = vadd.f32 %v40, %v69
    %71 = vdwg.mxu0
    %72 = vst.msk [vmem:[%s3] sm:$0xff] %vm54, %v68
    %73 = vst.msk [vmem:[%s3 + $0x8] sm:$0xff] %vm54, %v70
    %76 = vrot.lane.b32.xlu0 %v68, 96
    %v77 = vpop.permute.xlu0 %76
    %78 = vrot.lane.b32.xlu0 %v70, 96
    %v79 = vpop.permute.xlu0 %78
    %vm82 = vcmask 523264
    %83 = vst.msk [vmem:[%s4] sm:$0xff] %vm82, %v77
    %84 = vst.msk [vmem:[%s4 + $0x8] sm:$0xff] %vm82, %v79
    // Predicated region
    $region18: #{transformer_forward.41} parent=1 // pred_check
      _
    $region19: #{transformer_forward.41} parent=1 // pred_check_branch
      %86 = sbr.rel (0) target = $region21
    $region20: #{transformer_forward.41} parent=1 // pred_region
      _
    $region21: #{transformer_forward.41} parent=1 // pred_fallthru
      _
    // Predicated region
    $region22: #{transformer_forward.41} parent=1 // pred_check
      _
    $region23: #{transformer_forward.41} parent=1 // pred_check_branch
      %88 = sbr.rel (0) target = $region25
    $region24: #{transformer_forward.41} parent=1 // pred_region
      _
    $region25: #{transformer_forward.41} parent=1 // pred_fallthru
      _
    // Predicated region
    $region26: #{transformer_forward.41} parent=1 // pred_check
      _
    $region27: #{transformer_forward.41} parent=1 // pred_check_branch
      %90 = sbr.rel (0) target = $region29
    $region28: #{transformer_forward.41} parent=1 // pred_region
      _
    $region29: #{transformer_forward.41} parent=1 // pred_fallthru
      _
    // Predicated region
    $region30: #{transformer_forward.41} parent=1 // pred_check
      _
    $region31: #{transformer_forward.41} parent=1 // pred_check_branch
      %92 = sbr.rel (0) target = $region33
    $region32: #{transformer_forward.41} parent=1 // pred_region
      _
    $region33: #{transformer_forward.41} parent=1 // pred_fallthru
      _
    %93 = vsyncpa [#allocation3], 1

// kernel: transformer_forward.40
$region0: #{transformer_forward.40}
  #allocation0 [shape = 'u32[]', space=smem, size = 0x4, offset = 0x4, fixed_abs, tag = 'smem constant byte address 0x4 - core index']
  #allocation1 [shape = 'u32[72,128]{1,0:T(1,128)}', space=vmem, size = 0x9000, scoped, tag = 'internal scratch']
  %s0 = inlined_call_operand.vmem [shape: f32[16,32], index: 0, kind: input, shape index: {}]
  %s1 = inlined_call_operand.vmem [shape: bf16[32,64], index: 1, kind: input, shape index: {}]
  %s2 = inlined_call_operand.vmem [shape: f32[1,64], index: 2, kind: input, shape index: {}]
  %s3 = inlined_call_operand.vmem [shape: bf16[64,32], index: 3, kind: input, shape index: {}]
  %s4 = inlined_call_operand.hbm [shape: f32[1,32], index: 4, kind: input, shape index: {}]
  %s5 = inlined_call_operand.hbm [shape: f32[1,32], index: 5, kind: input, shape index: {}]
  %s6 = inlined_call_operand.hbm [shape: f32[1,32], index: 6, kind: input, shape index: {}]
  %s7 = inlined_call_operand.vmem [shape: f32[16,32], index: 7, kind: output, shape index: {}]
  %s8 = sld [smem:[#allocation0]]
  $region50: #{transformer_forward.40} parent=0
    _
  %s10 = ssub.s32 1, %s8
  %s11 = scalar_select 0, %s10, %s8
  $region1: #{transformer_forward.40} parent=0
    #allocation2 [shape = 'u8[512]{0}', space=vmem, size = 0x400, scoped, tag = 'input window, operand 4, single buffered']
    #allocation3 [shape = 's32[1]{0}', space=sflag, size = 0x4, scoped, tag = 'scoped memory for transformer_forward.40']
    #allocation4 [shape = 'u8[512]{0}', space=vmem, size = 0x400, scoped, tag = 'input window, operand 5, single buffered']
    #allocation5 [shape = 's32[1]{0}', space=sflag, size = 0x4, scoped, tag = 'scoped memory for transformer_forward.40']
    #allocation6 [shape = 'u8[512]{0}', space=vmem, size = 0x400, scoped, tag = 'input window, operand 6, single buffered']
    %12 = vsyncpa [#allocation3], 0
    %13 = vsyncpa [#allocation5], 0
    // Predicated region
    $region2: #{transformer_forward.40} parent=1 // pred_check
      _
    $region3: #{transformer_forward.40} parent=1 // pred_check_branch
      %15 = sbr.rel (0) target = $region5
    $region4: #{transformer_forward.40} parent=1 // pred_region
      _
    $region5: #{transformer_forward.40} parent=1 // pred_fallthru
      _
    // Predicated region
    $region6: #{transformer_forward.40} parent=1 // pred_check
      _
    $region7: #{transformer_forward.40} parent=1 // pred_check_branch
      %17 = sbr.rel (0) target = $region9
    $region8: #{transformer_forward.40} parent=1 // pred_region
      _
    $region9: #{transformer_forward.40} parent=1 // pred_fallthru
      _
    // Predicated region
    $region10: #{transformer_forward.40} parent=1 // pred_check
      _
    $region11: #{transformer_forward.40} parent=1 // pred_check_branch
      %19 = sbr.rel (0) target = $region13
    $region12: #{transformer_forward.40} parent=1 // pred_region
      _
    $region13: #{transformer_forward.40} parent=1 // pred_fallthru
      _
    // Predicated region
    $region14: #{transformer_forward.40} parent=1 // pred_check
      _
    $region15: #{transformer_forward.40} parent=1 // pred_check_branch
      %21 = sbr.rel (0) target = $region17
    $region16: #{transformer_forward.40} parent=1 // pred_region
      _
    $region17: #{transformer_forward.40} parent=1 // pred_fallthru
      _
    // Predicated region
    $region18: #{transformer_forward.40} parent=1 // pred_check
      _
    $region19: #{transformer_forward.40} parent=1 // pred_check_branch
      %23 = sbr.rel (0) target = $region21
    $region20: #{transformer_forward.40} parent=1 // pred_region
      %25 = vsyncadd [#allocation3], 0
      %s27 = sshll.u32 %s4, 4
      %s28 = int_to_ptr.hbm [resolvable:$true] %s27
      %s29 = sshll.u32 [#allocation2], 4
      %s30 = int_to_ptr.vmem [resolvable:$true] %s29
      %32 = dma.hbm_to_vmem [thread:$0]  %s28, 16, %s30, [#allocation3]
    $region21: #{transformer_forward.40} parent=1 // pred_fallthru
      _
    // Predicated region
    $region22: #{transformer_forward.40} parent=1 // pred_check
      _
    $region23: #{transformer_forward.40} parent=1 // pred_check_branch
      %34 = sbr.rel (0) target = $region25
    $region24: #{transformer_forward.40} parent=1 // pred_region
      %36 = vsyncadd [#allocation5], 0
      %s38 = sshll.u32 %s5, 4
      %s39 = int_to_ptr.hbm [resolvable:$true] %s38
      %s40 = sshll.u32 [#allocation4], 4
      %s41 = int_to_ptr.vmem [resolvable:$true] %s40
      %43 = dma.hbm_to_vmem [thread:$0]  %s39, 16, %s41, [#allocation5]
    $region25: #{transformer_forward.40} parent=1 // pred_fallthru
      _
    // Predicated region
    $region26: #{transformer_forward.40} parent=1 // pred_check
      _
    $region27: #{transformer_forward.40} parent=1 // pred_check_branch
      %45 = sbr.rel (0) target = $region29
    $region28: #{transformer_forward.40} parent=1 // pred_region
      %47 = vsyncadd [#allocation5], 0
      %s49 = sshll.u32 %s6, 4
      %s50 = int_to_ptr.hbm [resolvable:$true] %s49
      %s51 = sshll.u32 [#allocation6], 4
      %s52 = int_to_ptr.vmem [resolvable:$true] %s51
      %54 = dma.hbm_to_vmem [thread:$0]  %s50, 16, %s52, [#allocation5]
    $region29: #{transformer_forward.40} parent=1 // pred_fallthru
      _
    // Predicated region
    $region30: #{transformer_forward.40} parent=1 // pred_check
      _
    $region31: #{transformer_forward.40} parent=1 // pred_check_branch
      %56 = sbr.rel (0) target = $region33
    $region32: #{transformer_forward.40} parent=1 // pred_region
      %58 = dma.done [#allocation3], 16
    $region33: #{transformer_forward.40} parent=1 // pred_fallthru
      _
    // Predicated region
    $region34: #{transformer_forward.40} parent=1 // pred_check
      _
    $region35: #{transformer_forward.40} parent=1 // pred_check_branch
      %60 = sbr.rel (0) target = $region37
    $region36: #{transformer_forward.40} parent=1 // pred_region
      %62 = dma.done [#allocation5], 16
    $region37: #{transformer_forward.40} parent=1 // pred_fallthru
      _
    // Predicated region
    $region38: #{transformer_forward.40} parent=1 // pred_check
      _
    $region39: #{transformer_forward.40} parent=1 // pred_check_branch
      %64 = sbr.rel (0) target = $region41
    $region40: #{transformer_forward.40} parent=1 // pred_region
      %66 = dma.done [#allocation5], 16
    $region41: #{transformer_forward.40} parent=1 // pred_fallthru
      _
    %v68 = vld [vmem:[%s0] sm:$0xff]
    %v69 = vld [vmem:[%s0 + $0x8] sm:$0xff]
    %v70 = vpack.c.bf16 %v69, %v68
    %v71 = vld [vmem:[%s1] sm:$0xf]
    %v72 = vld [vmem:[%s1 + $0x4] sm:$0xf]
    %v73 = vld [vmem:[%s1 + $0x8] sm:$0xf]
    %v74 = vld [vmem:[%s1 + $0xc] sm:$0xf]
    %v75 = vld [vmem:[%s2] sm:$0x1]
    %v77 = vperm.slane %v75, 0
    %v83 = vunpack.c.l.b16 %v71
    %v84 = vunpack.c.l.b16 %v72
    %v85 = vunpack.c.l.b16 %v73
    %v86 = vunpack.c.l.b16 %v74
    %v87 = vpack.c.b16 %v84, %v83
    %v88 = vpack.c.b16 %v86, %v85
    %vm91 = vcmask 261120
    %v93 = vsel %vm91, %v70, 0
    %95 = vmatpush.bf16.msra.mxu0 0
    %96 = vmatpush.bf16.msra.mxu0 0
    %97 = vmatpush.bf16.msra.mxu0 0
    %98 = vmatpush.bf16.msra.mxu0 0
    %99 = vmatpush.bf16.msra.mxu0 0
    %100 = vmatpush.bf16.msra.mxu0 0
    %101 = vmatpush.bf16.msra.mxu0 %v88
    %102 = vmatpush.bf16.msra.mxu0 %v87
    %103 = vmatmul.bf16.gmra.mxu0 %v93
    %v104 = vpop.f32.mrf.mxu0
    %v105 = vadd.f32 %v77, %v104
    %v106 = vpop.f32.mrf.mxu0
    %v107 = vadd.f32 %v77, %v106
    %108 = vdwg.mxu0
    %v109 = vmax.f32 %v105, 0.0
    %v110 = vmax.f32 %v107, 0.0
    %v111 = vpack.c.bf16 %v110, %v109
    %v112 = vld [vmem:[%s3] sm:$0xf]
    %v113 = vld [vmem:[%s3 + $0x4] sm:$0xf]
    %v114 = vld [vmem:[%s3 + $0x8] sm:$0xf]
    %v115 = vld [vmem:[%s3 + $0xc] sm:$0xf]
    %v116 = vld [vmem:[%s3 + $0x10] sm:$0xf]
    %v117 = vld [vmem:[%s3 + $0x14] sm:$0xf]
    %v118 = vld [vmem:[%s3 + $0x18] sm:$0xf]
    %v119 = vld [vmem:[%s3 + $0x1c] sm:$0xf]
    %v120 = vld [vmem:[#allocation2] sm:$0x1]
    %v122 = vperm.slane %v120, 0
    %v132 = vunpack.c.l.b16 %v112
    %v133 = vunpack.c.l.b16 %v113
    %v134 = vunpack.c.l.b16 %v114
    %v135 = vunpack.c.l.b16 %v115
    %v136 = vunpack.c.l.b16 %v116
    %v137 = vunpack.c.l.b16 %v117
    %v138 = vunpack.c.l.b16 %v118
    %v139 = vunpack.c.l.b16 %v119
    %v140 = vpack.c.b16 %v133, %v132
    %v141 = vpack.c.b16 %v135, %v134
    %v142 = vpack.c.b16 %v137, %v136
    %v143 = vpack.c.b16 %v139, %v138
    %vm148 = vcmask 523264
    %v150 = vsel %vm148, %v111, 0
    %152 = vmatpush.bf16.msra.mxu0 0
    %153 = vmatpush.bf16.msra.mxu0 0
    %154 = vmatpush.bf16.msra.mxu0 0
    %155 = vmatpush.bf16.msra.mxu0 0
    %156 = vmatpush.bf16.msra.mxu0 %v143
    %157 = vmatpush.bf16.msra.mxu0 %v142
    %158 = vmatpush.bf16.msra.mxu0 %v141
    %159 = vmatpush.bf16.msra.mxu0 %v140
    %160 = vmatmul.bf16.gmra.mxu0 %v150
    %v161 = vpop.f32.mrf.mxu0
    %v162 = vadd.f32 %v122, %v161
    %v163 = vpop.f32.mrf.mxu0
    %v164 = vadd.f32 %v122, %v163
    %165 = vdwg.mxu0
    %v166 = vadd.f32 %v162, %v68
    %v167 = vadd.f32 %v164, %v69
    %v168 = vsel %vm91, %v166, 0.0
    %169 = vadd.xlane.f32.xlu0 %v168
    %v170 = vpop.xlane.xlu0 %169
    %v171 = vsel %vm91, %v167, 0.0
    %172 = vadd.xlane.f32.xlu0 %v171
    %v173 = vpop.xlane.xlu0 %172
    %v174 = vrcp.pop 32.0
    %v175 = vmul.f32 32.0, %v174
    %v176 = vsub.f32 1.0, %v175
    %v177 = vmul.f32 %v174, %v176
    %v178 = vadd.f32 %v174, %v177
    %vm179 = vweird.f32 %v174
    %v180 = vsel %vm179, %v174, %v178
    %v181 = vmul.f32 %v170, %v180
    %v182 = vmul.f32 %v173, %v180
    %v183 = vsub.f32 %v166, %v181
    %v184 = vsub.f32 %v167, %v182
    %v185 = vmul.f32 %v183, %v183
    %v186 = vmul.f32 %v184, %v184
    %v187 = vsel %vm91, %v185, 0.0
    %188 = vadd.xlane.f32.xlu0 %v187
    %v189 = vpop.xlane.xlu0 %188
    %v190 = vsel %vm91, %v186, 0.0
    %191 = vadd.xlane.f32.xlu0 %v190
    %v192 = vpop.xlane.xlu0 %191
    %v193 = vmul.f32 %v189, %v180
    %v194 = vmul.f32 %v192, %v180
    %v195 = vadd.f32 %v193, 1e-05
    %v196 = vadd.f32 %v194, 1e-05
    %v197 = vrsqrt.pop %v195
    %v198 = vmul.f32 %v197, %v195
    %v199 = vmul.f32 %v198, %v197
    %v200 = vmul.f32 0.5, %v199
    %v201 = vsub.f32 1.5, %v200
    %v202 = vmul.f32 %v197, %v201
    %vm203 = vweird.f32 %v195
    %vm204 = vweird.f32 %v197
    %vm205 = vmor %vm203, %vm204
    %v206 = vsel %vm205, %v197, %v202
    %v207 = vrsqrt.pop %v196
    %v208 = vmul.f32 %v207, %v196
    %v209 = vmul.f32 %v208, %v207
    %v210 = vmul.f32 0.5, %v209
    %v211 = vsub.f32 1.5, %v210
    %v212 = vmul.f32 %v207, %v211
    %vm213 = vweird.f32 %v196
    %vm214 = vweird.f32 %v207
    %vm215 = vmor %vm213, %vm214
    %v216 = vsel %vm215, %v207, %v212
    %v217 = vmul.f32 %v183, %v206
    %v218 = vmul.f32 %v184, %v216
    %v219 = vld [vmem:[#allocation4] sm:$0x1]
    %v221 = vperm.slane %v219, 0
    %v223 = vmul.f32 %v217, %v221
    %v224 = vmul.f32 %v218, %v221
    %v225 = vld [vmem:[#allocation6] sm:$0x1]
    %v227 = vperm.slane %v225, 0
    %v229 = vadd.f32 %v223, %v227
    %v230 = vadd.f32 %v224, %v227
    %231 = vst.msk [vmem:[%s7] sm:$0xff] %vm91, %v229
    %232 = vst.msk [vmem:[%s7 + $0x8] sm:$0xff] %vm91, %v230
    // Predicated region
    $region42: #{transformer_forward.40} parent=1 // pred_check
      _
    $region43: #{transformer_forward.40} parent=1 // pred_check_branch
      %234 = sbr.rel (0) target = $region45
    $region44: #{transformer_forward.40} parent=1 // pred_region
      _
    $region45: #{transformer_forward.40} parent=1 // pred_fallthru
      _
    // Predicated region
    $region46: #{transformer_forward.40} parent=1 // pred_check
      _
    $region47: #{transformer_forward.40} parent=1 // pred_check_branch
      %236 = sbr.rel (0) target = $region49
    $region48: #{transformer_forward.40} parent=1 // pred_region
      _
    $region49: #{transformer_forward.40} parent=1 // pred_fallthru
      _
    %237 = vsyncpa [#allocation3], 1
    %238 = vsyncpa [#allocation5], 1

// kernel: transformer_forward.49
$region0: #{transformer_forward.49}
  #allocation0 [shape = 'u32[]', space=smem, size = 0x4, offset = 0x4, fixed_abs, tag = 'smem constant byte address 0x4 - core index']
  #allocation1 [shape = 'u32[72,128]{1,0:T(1,128)}', space=vmem, size = 0x9000, scoped, tag = 'internal scratch']
  #allocation2 [shape = 'f32[16,64]{1,0:T(8,128)}', space=vmem, size = 0x2000, scoped, tag = 'scratch operand']
  %s0 = inlined_call_operand.vmem [shape: f32[16,32], index: 0, kind: input, shape index: {}]
  %s1 = inlined_call_operand.vmem [shape: bf16[32,64], index: 1, kind: input, shape index: {}]
  %s2 = inlined_call_operand.vmem [shape: f32[1,64], index: 2, kind: input, shape index: {}]
  %s3 = inlined_call_operand.hbm [shape: f32[16,64], index: 3, kind: output, shape index: {}]
  %s4 = sld [smem:[#allocation0]]
  $region30: #{transformer_forward.49} parent=0
    _
  %s6 = ssub.s32 1, %s4
  %s7 = scalar_select 0, %s6, %s4
  $region1: #{transformer_forward.49} parent=0
    #allocation3 [shape = 'u8[8192]{0}', space=vmem, size = 0x2000, scoped, tag = 'output window, operand 0, single buffered']
    #allocation4 [shape = 's32[1]{0}', space=sflag, size = 0x4, scoped, tag = 'scoped memory for transformer_forward.49']
    %8 = vsyncpa [#allocation4], 0
    // Predicated region
    $region2: #{transformer_forward.49} parent=1 // pred_check
      _
    $region3: #{transformer_forward.49} parent=1 // pred_check_branch
      %10 = sbr.rel (0) target = $region5
    $region4: #{transformer_forward.49} parent=1 // pred_region
      _
    $region5: #{transformer_forward.49} parent=1 // pred_fallthru
      _
    // Predicated region
    $region6: #{transformer_forward.49} parent=1 // pred_check
      _
    $region7: #{transformer_forward.49} parent=1 // pred_check_branch
      %12 = sbr.rel (0) target = $region9
    $region8: #{transformer_forward.49} parent=1 // pred_region
      _
    $region9: #{transformer_forward.49} parent=1 // pred_fallthru
      _
    // Predicated region
    $region10: #{transformer_forward.49} parent=1 // pred_check
      _
    $region11: #{transformer_forward.49} parent=1 // pred_check_branch
      %14 = sbr.rel (0) target = $region13
    $region12: #{transformer_forward.49} parent=1 // pred_region
      _
    $region13: #{transformer_forward.49} parent=1 // pred_fallthru
      _
    %p16 = scmp.eq.s32.totalorder 0, 0
    // Predicated region
    $region14: #{transformer_forward.49} parent=1 // pred_check
      %p17 = pneg %p16
    $region15: #{transformer_forward.49} parent=1 // pred_check_branch
      %19 = sbr.rel (%p17) target = $region17
    $region16: #{transformer_forward.49} parent=1 // pred_region
      %vm20 = vcmask 523264
      %21 = vst.msk [vmem:[#allocation2] sm:$0xff] %vm20, 0.0
      %22 = vst.msk [vmem:[#allocation2 + $0x8] sm:$0xff] %vm20, 0.0
    $region17: #{transformer_forward.49} parent=1 // pred_fallthru
      _
    %v23 = vld [vmem:[#allocation2] sm:$0xff]
    %v24 = vld [vmem:[#allocation2 + $0x8] sm:$0xff]
    %v25 = vld [vmem:[%s0] sm:$0xff]
    %v26 = vld [vmem:[%s0 + $0x8] sm:$0xff]
    %v27 = vpack.c.bf16 %v26, %v25
    %v28 = vld [vmem:[%s1] sm:$0xf]
    %v29 = vld [vmem:[%s1 + $0x4] sm:$0xf]
    %v30 = vld [vmem:[%s1 + $0x8] sm:$0xf]
    %v31 = vld [vmem:[%s1 + $0xc] sm:$0xf]
    %v36 = vunpack.c.l.b16 %v28
    %v37 = vunpack.c.l.b16 %v29
    %v38 = vunpack.c.l.b16 %v30
    %v39 = vunpack.c.l.b16 %v31
    %v40 = vpack.c.b16 %v37, %v36
    %v41 = vpack.c.b16 %v39, %v38
    %vm44 = vcmask 261120
    %v46 = vsel %vm44, %v27, 0
    %48 = vmatpush.bf16.msra.mxu0 0
    %49 = vmatpush.bf16.msra.mxu0 0
    %50 = vmatpush.bf16.msra.mxu0 0
    %51 = vmatpush.bf16.msra.mxu0 0
    %52 = vmatpush.bf16.msra.mxu0 0
    %53 = vmatpush.bf16.msra.mxu0 0
    %54 = vmatpush.bf16.msra.mxu0 %v41
    %55 = vmatpush.bf16.msra.mxu0 %v40
    %56 = vmatmul.bf16.gmra.mxu0 %v46
    %v57 = vpop.f32.mrf.mxu0
    %v58 = vadd.f32 0.0, %v57
    %v59 = vpop.f32.mrf.mxu0
    %v60 = vadd.f32 0.0, %v59
    %61 = vdwg.mxu0
    %v62 = vadd.f32 %v23, %v58
    %v63 = vadd.f32 %v24, %v60
    %vm64 = vcmask 523264
    %65 = vst.msk [vmem:[#allocation2] sm:$0xff] %vm64, %v62
    %66 = vst.msk [vmem:[#allocation2 + $0x8] sm:$0xff] %vm64, %v63
    // Predicated region
    $region18: #{transformer_forward.49} parent=1 // pred_check
      %p67 = pneg %p16
    $region19: #{transformer_forward.49} parent=1 // pred_check_branch
      %69 = sbr.rel (%p67) target = $region21
    $region20: #{transformer_forward.49} parent=1 // pred_region
      %v70 = vld [vmem:[#allocation2] sm:$0xff]
      %v71 = vld [vmem:[#allocation2 + $0x8] sm:$0xff]
      %v72 = vld [vmem:[%s2] sm:$0x1]
      %v74 = vperm.slane %v72, 0
      %v76 = vadd.f32 %v70, %v74
      %v77 = vadd.f32 %v71, %v74
      %78 = vst.msk [vmem:[#allocation3] sm:$0xff] %vm64, %v76
      %79 = vst.msk [vmem:[#allocation3 + $0x8] sm:$0xff] %vm64, %v77
    $region21: #{transformer_forward.49} parent=1 // pred_fallthru
      _
    // Predicated region
    $region22: #{transformer_forward.49} parent=1 // pred_check
      _
    $region23: #{transformer_forward.49} parent=1 // pred_check_branch
      %81 = sbr.rel (0) target = $region25
    $region24: #{transformer_forward.49} parent=1 // pred_region
      %83 = vsyncadd [#allocation4], 0
      %s84 = sshll.u32 [#allocation3], 4
      %s85 = int_to_ptr.vmem [resolvable:$true] %s84
      %s86 = sshll.u32 %s3, 4
      %s87 = int_to_ptr.hbm [resolvable:$true] %s86
      %92 = dma.vmem_to_hbm [thread:$0]  %s85, 256, %s87, [#allocation4], 128, 128, 8
    $region25: #{transformer_forward.49} parent=1 // pred_fallthru
      _
    // Predicated region
    $region26: #{transformer_forward.49} parent=1 // pred_check
      _
    $region27: #{transformer_forward.49} parent=1 // pred_check_branch
      %94 = sbr.rel (0) target = $region29
    $region28: #{transformer_forward.49} parent=1 // pred_region
      %96 = dma.done [#allocation4], 256
    $region29: #{transformer_forward.49} parent=1 // pred_fallthru
      _
    %97 = vsyncpa [#allocation4], 1

</llo_original>
